<compile_context>
chip_gen: v6e
topology: v6e:2x2x1
jax: 0.10.0
libtpu: 0.0.40
codegen_flags: <defaults>
</compile_context>

<pallas_src>
import functools

import jax
import jax.numpy as jnp
from jax import lax
from jax.experimental import pallas as pl
from jax.experimental.pallas import tpu as pltpu

MID = 64          # hidden channel count of the residual block
BN_EPS = 1e-5


# --------------------------------------------------------------------------
# Kernel
# --------------------------------------------------------------------------
def _conv3_rows(v, wb_ref, top, bot):
    """3x3 conv with the W-taps folded into banded weights.

    v      : (M, K) f32    rows = (image-row), lanes = W*channels
    wb_ref : (3, K, N)     banded weights (BN scale pre-folded), one per H-tap
    top/bot: (M, 1) bool   rows with h == 0 / h == H-1 (mask the H boundary;
                           also kills cross-image rows when batch is folded)
    returns (M, N) f32
    """
    cdt = wb_ref.dtype
    m = v.shape[0]
    vc = v.astype(cdt)                      # single hoisted cast (no-op at f32)

    # center tap (dh = 0): init the accumulator with the first dot
    acc = jnp.dot(vc, wb_ref[1], preferred_element_type=jnp.float32)
    # dh = -1: output row h consumes input row h-1 -> roll down by 1, mask h==0
    v_up = jnp.where(top, 0.0, pltpu.roll(vc, shift=1, axis=0))
    acc += jnp.dot(v_up, wb_ref[0], preferred_element_type=jnp.float32)
    # dh = +1: output row h consumes input row h+1 -> circular roll by (M-1)
    # (pltpu.roll needs a non-negative shift); wrap rows are masked via bot.
    v_dn = jnp.where(bot, 0.0, pltpu.roll(vc, shift=m - 1, axis=0))
    acc += jnp.dot(v_dn, wb_ref[2], preferred_element_type=jnp.float32)
    return acc


def _resblock_kernel(x_ref, w1b_ref, b1_ref, w2b_ref, b2_ref, o_ref, *, H):
    """One (b_tile) slab of images per grid step.

    x_ref  : (B, H, W*Cin)  f32   input (lane-dense spatial/channel fold)
    w1b_ref: (3, W*Cin, W*MID)    banded conv1 weights (BN1 scale folded in)
    b1     : (1, W*MID)     f32   folded BN1 bias (tiled over W)
    w2b_ref: (3, W*MID, W*Cin)    banded conv2 weights (BN2 scale folded in)
    b2     : (1, W*Cin)     f32   folded BN2 bias (tiled over W)
    o_ref  : (B, H, W*Cin)  f32   output
    """
    B, _, WC = x_ref.shape
    M = B * H
    x = x_ref[...].reshape(M, WC)                      # fold batch into M

    m_idx = lax.broadcasted_iota(jnp.int32, (M, 1), 0)
    h_idx = (m_idx % H) if B > 1 else m_idx            # row index within image
    top = h_idx == 0
    bot = h_idx == (H - 1)

    # conv1 (3x3, pad 1) + folded BN1 + ReLU
    a1 = _conv3_rows(x, w1b_ref, top, bot)             # (M, W*MID) f32
    h1 = jnp.maximum(a1 + b1_ref[...], 0.0)

    # conv2 (3x3, pad 1) + folded BN2 + ReLU
    a2 = _conv3_rows(h1, w2b_ref, top, bot)            # (M, W*Cin) f32
    y = jnp.maximum(a2 + b2_ref[...], 0.0)

    # residual add
    o_ref[...] = (x + y).reshape(o_ref.shape)


# --------------------------------------------------------------------------
# Wrapper helpers
# --------------------------------------------------------------------------
def _band_conv_weights(w, width):
    """Fold the 3 W-taps of a 3x3 conv into per-H-tap banded matrices.

    w: (3, 3, Cin, Cout) HWIO.  Returns (3, width*Cin, width*Cout) with
    band[kh][wi*Cin + c, wo*Cout + o] = w[kh, wi-wo+1, c, o] for |wi-wo| <= 1,
    else 0 (so the W zero-padding is baked into the weights).
    """
    _, _, ci, co = w.shape
    taps = []
    for kh in range(3):
        acc = jnp.zeros((width * ci, width * co), w.dtype)
        for kw in range(3):
            dw = kw - 1
            band = jnp.eye(width, k=-dw, dtype=w.dtype)  # band[wi,wo]=1 iff wi==wo+dw
            acc = acc + jnp.kron(band, w[kh, kw])
        taps.append(acc)
    return jnp.stack(taps)


def _num_tensorcores():
    """Best-effort TensorCore-per-chip count (perf heuristic only)."""
    try:
        kind = jax.devices()[0].device_kind.lower()
    except Exception:
        return 2
    # v5e / v6e expose a single TensorCore per chip; v4/v5p (megacore) and
    # v7x have two. Unknown / CPU-interpret -> assume 2 (the safe choice).
    if any(t in kind for t in ("v5 lite", "v5lite", "v5e", "v6 lite", "v6e")):
        return 1
    return 2


def _pick_b_tile(N, H):
    """Pick how many images to fold into one grid step (M = b_tile * H).

    Per the perf review:
      * 1-TC chips (v5e/v6e): the grid is a serial loop -> fold the whole
        batch (fewest ~0.35us grid steps, best MXU row fill), capping M~256.
      * 2-TC chips (v7x): keep >= 2 grid steps so
        dimension_semantics=("parallel",) shards across both TensorCores.
    """
    if N <= 1:
        return max(N, 1)
    min_steps = _num_tensorcores()
    target_m = 256                       # v6e/v7x MXU native row count
    best = 1
    for bt in range(1, N + 1):
        if N % bt:
            continue
        if N // bt < min_steps:
            break
        if bt * H <= target_m or bt == 1:
            best = bt
    return best


# --------------------------------------------------------------------------
# Wrapper
# --------------------------------------------------------------------------
def residual_block_pallas(x_nhwc, w1, s1, b1, w2, s2, b2, *, b_tile=None,
                          compute_dtype=jnp.float32, alias_input=False):
    """x_nhwc: (N, H, W, Cin) float32; w1: (3,3,Cin,MID); w2: (3,3,MID,Cin).

    s*/b*: folded BN scale/bias, shape (MID,) / (Cin,).
    """
    N, H, W, Cin = x_nhwc.shape
    if b_tile is None:
        b_tile = _pick_b_tile(N, H)
    assert N % b_tile == 0, "b_tile must divide the batch"
    WC = W * Cin
    WM = W * MID

    # Lane-dense view + weight preprocessing (cheap, traced once).
    x_flat = x_nhwc.reshape(N, H, WC)                         # free reshape
    # Fold the BN scale into the conv output channels (drops two VPU passes
    # and two operands in the kernel).
    w1s = w1 * s1.reshape(1, 1, 1, -1)
    w2s = w2 * s2.reshape(1, 1, 1, -1)
    w1b = _band_conv_weights(w1s, W).astype(compute_dtype)    # (3, WC, WM)
    w2b = _band_conv_weights(w2s, W).astype(compute_dtype)    # (3, WM, WC)
    b1t = jnp.tile(b1.reshape(-1), W).reshape(1, WM).astype(jnp.float32)
    b2t = jnp.tile(b2.reshape(-1), W).reshape(1, WC).astype(jnp.float32)

    kernel = functools.partial(_resblock_kernel, H=H)

    out_flat = pl.pallas_call(
        kernel,
        out_shape=jax.ShapeDtypeStruct((N, H, WC), jnp.float32),
        grid_spec=pltpu.PrefetchScalarGridSpec(
            num_scalar_prefetch=0,
            grid=(N // b_tile,),
            in_specs=[
                pl.BlockSpec((b_tile, H, WC), lambda b: (b, 0, 0)),
                # Grid-invariant weights/biases (constant index_map). At W=16
                # they total <2 MiB; single-buffering them (pl.Buffered(1)) is
                # deferred until W / b_tile are scaled up.
                pl.BlockSpec((3, WC, WM), lambda b: (0, 0, 0)),
                pl.BlockSpec((1, WM), lambda b: (0, 0)),
                pl.BlockSpec((3, WM, WC), lambda b: (0, 0, 0)),
                pl.BlockSpec((1, WC), lambda b: (0, 0)),
            ],
            out_specs=pl.BlockSpec((b_tile, H, WC), lambda b: (b, 0, 0)),
        ),
        compiler_params=pltpu.CompilerParams(
            dimension_semantics=("parallel",),
            # Explicit VMEM budget; re-derive when scaling W (banded weights
            # grow O(W^2)) or b_tile, especially on v7x (64 MiB physical).
            vmem_limit_bytes=32 * 1024 * 1024,
        ),
        # x and out have identical shape/dtype and x is fully read before the
        # writeback, so callers that donate x can alias it to the output.
        input_output_aliases=({0: 0} if alias_input else {}),
    )(x_flat, w1b, b1t, w2b, b2t)

    return out_flat.reshape(N, H, W, Cin)


# --------------------------------------------------------------------------
# BN folding + pure-JAX reference
# --------------------------------------------------------------------------
def _fold_bn(conv_bias, gamma, beta, running_mean, running_var, eps=BN_EPS):
    scale = gamma / jnp.sqrt(running_var + eps)
    bias = (conv_bias - running_mean) * scale + beta
    return scale, bias


def _reference(x_nhwc, w1, s1, b1, w2, s2, b2):
    """Pure-JAX reference (NHWC, HWIO convs), f32 end to end."""
    dn = ("NHWC", "HWIO", "NHWC")
    h = lax.conv_general_dilated(x_nhwc, w1, (1, 1), "SAME",
                                 dimension_numbers=dn)
    h = jnp.maximum(h * s1.reshape(1, 1, 1, -1) + b1.reshape(1, 1, 1, -1), 0.0)
    y = lax.conv_general_dilated(h, w2, (1, 1), "SAME",
                                 dimension_numbers=dn)
    y = jnp.maximum(y * s2.reshape(1, 1, 1, -1) + b2.reshape(1, 1, 1, -1), 0.0)
    return x_nhwc + y


if __name__ == "__main__":
    key = jax.random.PRNGKey(0)
    N, Cin, H, Wsz = 2, 4, 16, 16

    k = jax.random.split(key, 8)
    # Input in PyTorch NCHW convention, moved to NHWC for the kernel.
    x_nchw = jax.random.normal(k[0], (N, Cin, H, Wsz), jnp.float32)
    x_nhwc = jnp.transpose(x_nchw, (0, 2, 3, 1))

    # Conv weights (HWIO layout for the kernel) + conv biases.
    w1 = jax.random.normal(k[1], (3, 3, Cin, MID), jnp.float32) * 0.1
    cb1 = jax.random.normal(k[2], (MID,), jnp.float32) * 0.1
    w2 = jax.random.normal(k[3], (3, 3, MID, Cin), jnp.float32) * 0.1
    cb2 = jax.random.normal(k[4], (Cin,), jnp.float32) * 0.1

    # BatchNorm params at PyTorch defaults (gamma=1, beta=0, running_mean=0,
    # running_var=1), applied in eval mode and folded into scale/bias.
    g1, be1 = jnp.ones((MID,), jnp.float32), jnp.zeros((MID,), jnp.float32)
    rm1, rv1 = jnp.zeros((MID,), jnp.float32), jnp.ones((MID,), jnp.float32)
    g2, be2 = jnp.ones((Cin,), jnp.float32), jnp.zeros((Cin,), jnp.float32)
    rm2, rv2 = jnp.zeros((Cin,), jnp.float32), jnp.ones((Cin,), jnp.float32)

    s1, b1 = _fold_bn(cb1, g1, be1, rm1, rv1)
    s2, b2 = _fold_bn(cb2, g2, be2, rm2, rv2)

    out_nhwc = jax.jit(residual_block_pallas)(x_nhwc, w1, s1, b1, w2, s2, b2)
    out_nhwc = jax.block_until_ready(out_nhwc)

    ref = _reference(x_nhwc, w1, s1, b1, w2, s2, b2)
    assert out_nhwc.shape == (N, H, Wsz, Cin)
    max_err = float(jnp.max(jnp.abs(out_nhwc - ref)))
    # f32 operands with f32 accumulation; tolerance now only covers default
    # TPU matmul precision, not a bf16 downcast.
    assert jnp.allclose(out_nhwc, ref, atol=2e-2, rtol=2e-2), (
        f"mismatch vs reference (max abs err {max_err})")

    # Back to the PyTorch NCHW convention if the caller wants it.
    _out_nchw = jnp.transpose(out_nhwc, (0, 3, 1, 2))

    print("KERNEL_OK")
</pallas_src>

<mosaic_0001>
module attributes {stable_mosaic.version = 11 : i64} {
  func.func @_resblock_kernel(%arg0: i32, %arg1: memref<1x16x64xf32, #tpu.memory_space<vmem>>, %arg2: memref<3x64x1024xf32, #tpu.memory_space<vmem>>, %arg3: memref<1x1024xf32, #tpu.memory_space<vmem>>, %arg4: memref<3x1024x64xf32, #tpu.memory_space<vmem>>, %arg5: memref<1x64xf32, #tpu.memory_space<vmem>>, %arg6: memref<1x16x64xf32, #tpu.memory_space<vmem>>) attributes {dimension_semantics = [#tpu.dimension_semantics<parallel>], iteration_bounds = array<i64: 2>, scalar_prefetch = 0 : i64, scratch_operands = 0 : i64, tpu.core_type = #tpu.core_type<tc>, window_params = [{transform_indices = @transform_0, window_bounds = array<i64: 1, 16, 64>}, {pipeline_mode = #tpu.pipeline_mode<synchronous>, transform_indices = @transform_1, window_bounds = array<i64: 3, 64, 1024>}, {pipeline_mode = #tpu.pipeline_mode<synchronous>, transform_indices = @transform_2, window_bounds = array<i64: 1, 1024>}, {pipeline_mode = #tpu.pipeline_mode<synchronous>, transform_indices = @transform_3, window_bounds = array<i64: 3, 1024, 64>}, {pipeline_mode = #tpu.pipeline_mode<synchronous>, transform_indices = @transform_4, window_bounds = array<i64: 1, 64>}, {transform_indices = @transform_5, window_bounds = array<i64: 1, 16, 64>}]} {
    %c0 = arith.constant 0 : index
    %c0_0 = arith.constant 0 : index
    %c0_1 = arith.constant 0 : index
    %0 = vector.load %arg1[%c0, %c0_0, %c0_1] : memref<1x16x64xf32, #tpu.memory_space<vmem>>, vector<1x16x64xf32>
    %1 = vector.shape_cast %0 : vector<1x16x64xf32> to vector<16x64xf32>
    %2 = tpu.iota {dimensions = array<i32: 0>} : vector<16x1xi32>
    %c0_i32 = arith.constant 0 : i32
    %3 = vector.broadcast %c0_i32 : i32 to vector<16x1xi32>
    %4 = arith.cmpi eq, %2, %3 : vector<16x1xi32>
    %c15_i32 = arith.constant 15 : i32
    %5 = vector.broadcast %c15_i32 : i32 to vector<16x1xi32>
    %6 = arith.cmpi eq, %2, %5 : vector<16x1xi32>
    %c1 = arith.constant 1 : index
    %c0_2 = arith.constant 0 : index
    %c0_3 = arith.constant 0 : index
    %7 = vector.load %arg2[%c1, %c0_2, %c0_3] : memref<3x64x1024xf32, #tpu.memory_space<vmem>>, vector<1x64x1024xf32>
    %8 = vector.shape_cast %7 : vector<1x64x1024xf32> to vector<64x1024xf32>
    %cst = arith.constant dense<0.000000e+00> : vector<16x1024xf32>
    %9 = tpu.matmul %1, %8, %cst {dimension_numbers = #tpu.dot_dimension_numbers<[1], [0], [0], [1], [0, 0, 1, 1], [], []>} : vector<16x64xf32>, vector<64x1024xf32>, vector<16x1024xf32> -> vector<16x1024xf32>
    %c1_i32 = arith.constant 1 : i32
    %10 = tpu.dynamic_rotate %1 by %c1_i32 dim 0 : vector<16x64xf32>, i32 -> vector<16x64xf32>
    %cst_4 = arith.constant 0.000000e+00 : f32
    %11 = vector.shape_cast %4 : vector<16x1xi1> to vector<16x1xi1>
    %12 = vector.broadcast %11 : vector<16x1xi1> to vector<16x64xi1>
    %13 = vector.broadcast %cst_4 : f32 to vector<16x64xf32>
    %14 = arith.select %12, %13, %10 : vector<16x64xi1>, vector<16x64xf32>
    %c0_5 = arith.constant 0 : index
    %c0_6 = arith.constant 0 : index
    %c0_7 = arith.constant 0 : index
    %15 = vector.load %arg2[%c0_5, %c0_6, %c0_7] : memref<3x64x1024xf32, #tpu.memory_space<vmem>>, vector<1x64x1024xf32>
    %16 = vector.shape_cast %15 : vector<1x64x1024xf32> to vector<64x1024xf32>
    %cst_8 = arith.constant dense<0.000000e+00> : vector<16x1024xf32>
    %17 = tpu.matmul %14, %16, %cst_8 {dimension_numbers = #tpu.dot_dimension_numbers<[1], [0], [0], [1], [0, 0, 1, 1], [], []>} : vector<16x64xf32>, vector<64x1024xf32>, vector<16x1024xf32> -> vector<16x1024xf32>
    %18 = arith.addf %9, %17 : vector<16x1024xf32>
    %c15_i32_9 = arith.constant 15 : i32
    %19 = tpu.dynamic_rotate %1 by %c15_i32_9 dim 0 : vector<16x64xf32>, i32 -> vector<16x64xf32>
    %cst_10 = arith.constant 0.000000e+00 : f32
    %20 = vector.shape_cast %6 : vector<16x1xi1> to vector<16x1xi1>
    %21 = vector.broadcast %20 : vector<16x1xi1> to vector<16x64xi1>
    %22 = vector.broadcast %cst_10 : f32 to vector<16x64xf32>
    %23 = arith.select %21, %22, %19 : vector<16x64xi1>, vector<16x64xf32>
    %c2 = arith.constant 2 : index
    %c0_11 = arith.constant 0 : index
    %c0_12 = arith.constant 0 : index
    %24 = vector.load %arg2[%c2, %c0_11, %c0_12] : memref<3x64x1024xf32, #tpu.memory_space<vmem>>, vector<1x64x1024xf32>
    %25 = vector.shape_cast %24 : vector<1x64x1024xf32> to vector<64x1024xf32>
    %cst_13 = arith.constant dense<0.000000e+00> : vector<16x1024xf32>
    %26 = tpu.matmul %23, %25, %cst_13 {dimension_numbers = #tpu.dot_dimension_numbers<[1], [0], [0], [1], [0, 0, 1, 1], [], []>} : vector<16x64xf32>, vector<64x1024xf32>, vector<16x1024xf32> -> vector<16x1024xf32>
    %27 = arith.addf %18, %26 : vector<16x1024xf32>
    %c0_14 = arith.constant 0 : index
    %c0_15 = arith.constant 0 : index
    %28 = vector.load %arg3[%c0_14, %c0_15] : memref<1x1024xf32, #tpu.memory_space<vmem>>, vector<1x1024xf32>
    %29 = vector.broadcast %28 : vector<1x1024xf32> to vector<16x1024xf32>
    %30 = arith.addf %27, %29 : vector<16x1024xf32>
    %cst_16 = arith.constant 0.000000e+00 : f32
    %31 = vector.broadcast %cst_16 : f32 to vector<16x1024xf32>
    %32 = arith.maximumf %30, %31 : vector<16x1024xf32>
    %c1_17 = arith.constant 1 : index
    %c0_18 = arith.constant 0 : index
    %c0_19 = arith.constant 0 : index
    %33 = vector.load %arg4[%c1_17, %c0_18, %c0_19] : memref<3x1024x64xf32, #tpu.memory_space<vmem>>, vector<1x1024x64xf32>
    %34 = vector.shape_cast %33 : vector<1x1024x64xf32> to vector<1024x64xf32>
    %cst_20 = arith.constant dense<0.000000e+00> : vector<16x64xf32>
    %35 = tpu.matmul %32, %34, %cst_20 {dimension_numbers = #tpu.dot_dimension_numbers<[1], [0], [0], [1], [0, 0, 1, 1], [], []>} : vector<16x1024xf32>, vector<1024x64xf32>, vector<16x64xf32> -> vector<16x64xf32>
    %c1_i32_21 = arith.constant 1 : i32
    %36 = tpu.dynamic_rotate %32 by %c1_i32_21 dim 0 : vector<16x1024xf32>, i32 -> vector<16x1024xf32>
    %cst_22 = arith.constant 0.000000e+00 : f32
    %37 = vector.shape_cast %4 : vector<16x1xi1> to vector<16x1xi1>
    %38 = vector.broadcast %37 : vector<16x1xi1> to vector<16x1024xi1>
    %39 = vector.broadcast %cst_22 : f32 to vector<16x1024xf32>
    %40 = arith.select %38, %39, %36 : vector<16x1024xi1>, vector<16x1024xf32>
    %c0_23 = arith.constant 0 : index
    %c0_24 = arith.constant 0 : index
    %c0_25 = arith.constant 0 : index
    %41 = vector.load %arg4[%c0_23, %c0_24, %c0_25] : memref<3x1024x64xf32, #tpu.memory_space<vmem>>, vector<1x1024x64xf32>
    %42 = vector.shape_cast %41 : vector<1x1024x64xf32> to vector<1024x64xf32>
    %cst_26 = arith.constant dense<0.000000e+00> : vector<16x64xf32>
    %43 = tpu.matmul %40, %42, %cst_26 {dimension_numbers = #tpu.dot_dimension_numbers<[1], [0], [0], [1], [0, 0, 1, 1], [], []>} : vector<16x1024xf32>, vector<1024x64xf32>, vector<16x64xf32> -> vector<16x64xf32>
    %44 = arith.addf %35, %43 : vector<16x64xf32>
    %c15_i32_27 = arith.constant 15 : i32
    %45 = tpu.dynamic_rotate %32 by %c15_i32_27 dim 0 : vector<16x1024xf32>, i32 -> vector<16x1024xf32>
    %cst_28 = arith.constant 0.000000e+00 : f32
    %46 = vector.shape_cast %6 : vector<16x1xi1> to vector<16x1xi1>
    %47 = vector.broadcast %46 : vector<16x1xi1> to vector<16x1024xi1>
    %48 = vector.broadcast %cst_28 : f32 to vector<16x1024xf32>
    %49 = arith.select %47, %48, %45 : vector<16x1024xi1>, vector<16x1024xf32>
    %c2_29 = arith.constant 2 : index
    %c0_30 = arith.constant 0 : index
    %c0_31 = arith.constant 0 : index
    %50 = vector.load %arg4[%c2_29, %c0_30, %c0_31] : memref<3x1024x64xf32, #tpu.memory_space<vmem>>, vector<1x1024x64xf32>
    %51 = vector.shape_cast %50 : vector<1x1024x64xf32> to vector<1024x64xf32>
    %cst_32 = arith.constant dense<0.000000e+00> : vector<16x64xf32>
    %52 = tpu.matmul %49, %51, %cst_32 {dimension_numbers = #tpu.dot_dimension_numbers<[1], [0], [0], [1], [0, 0, 1, 1], [], []>} : vector<16x1024xf32>, vector<1024x64xf32>, vector<16x64xf32> -> vector<16x64xf32>
    %53 = arith.addf %44, %52 : vector<16x64xf32>
    %c0_33 = arith.constant 0 : index
    %c0_34 = arith.constant 0 : index
    %54 = vector.load %arg5[%c0_33, %c0_34] : memref<1x64xf32, #tpu.memory_space<vmem>>, vector<1x64xf32>
    %55 = vector.broadcast %54 : vector<1x64xf32> to vector<16x64xf32>
    %56 = arith.addf %53, %55 : vector<16x64xf32>
    %cst_35 = arith.constant 0.000000e+00 : f32
    %57 = vector.broadcast %cst_35 : f32 to vector<16x64xf32>
    %58 = arith.maximumf %56, %57 : vector<16x64xf32>
    %59 = arith.addf %1, %58 : vector<16x64xf32>
    %60 = vector.shape_cast %59 : vector<16x64xf32> to vector<1x16x64xf32>
    %c0_36 = arith.constant 0 : index
    %c0_37 = arith.constant 0 : index
    %c0_38 = arith.constant 0 : index
    %61 = vector.load %arg6[%c0_36, %c0_37, %c0_38] : memref<1x16x64xf32, #tpu.memory_space<vmem>>, vector<1x16x64xf32>
    tpu.vector_store %arg6[%c0_36, %c0_37, %c0_38], %60 {strides = array<i32>} : memref<1x16x64xf32, #tpu.memory_space<vmem>>, vector<1x16x64xf32>,
    return
  }
  func.func @transform_0(%arg0: i32) -> (i32, i32, i32) {
    %c0_i32 = arith.constant 0 : i32
    %c0_i32_0 = arith.constant 0 : i32
    %c0_i32_1 = arith.constant 0 : i32
    return %arg0, %c0_i32, %c0_i32_0 : i32, i32, i32
  }
  func.func @transform_1(%arg0: i32) -> (i32, i32, i32) {
    %c0_i32 = arith.constant 0 : i32
    %c0_i32_0 = arith.constant 0 : i32
    %c0_i32_1 = arith.constant 0 : i32
    %c0_i32_2 = arith.constant 0 : i32
    return %c0_i32, %c0_i32_0, %c0_i32_1 : i32, i32, i32
  }
  func.func @transform_2(%arg0: i32) -> (i32, i32) {
    %c0_i32 = arith.constant 0 : i32
    %c0_i32_0 = arith.constant 0 : i32
    %c0_i32_1 = arith.constant 0 : i32
    return %c0_i32, %c0_i32_0 : i32, i32
  }
  func.func @transform_3(%arg0: i32) -> (i32, i32, i32) {
    %c0_i32 = arith.constant 0 : i32
    %c0_i32_0 = arith.constant 0 : i32
    %c0_i32_1 = arith.constant 0 : i32
    %c0_i32_2 = arith.constant 0 : i32
    return %c0_i32, %c0_i32_0, %c0_i32_1 : i32, i32, i32
  }
  func.func @transform_4(%arg0: i32) -> (i32, i32) {
    %c0_i32 = arith.constant 0 : i32
    %c0_i32_0 = arith.constant 0 : i32
    %c0_i32_1 = arith.constant 0 : i32
    return %c0_i32, %c0_i32_0 : i32, i32
  }
  func.func @transform_5(%arg0: i32) -> (i32, i32, i32) {
    %c0_i32 = arith.constant 0 : i32
    %c0_i32_0 = arith.constant 0 : i32
    %c0_i32_1 = arith.constant 0 : i32
    return %arg0, %c0_i32, %c0_i32_0 : i32, i32, i32
  }
}

</mosaic_0001>

<llo_original>
// kernel: tile.13
$region0: #{tile.13}
  #allocation0 [shape = 's32[1]{0}', space=sflag, size = 0x4, scoped, tag = 'scoped memory for tile.13']
  %s0 = inlined_call_operand.vmem [shape: f32[64], index: 0, kind: input, shape index: {}]
  %s1 = inlined_call_operand.vmem [shape: f32[16,64], index: 1, kind: output, shape index: {}]
  // Predicated region
  $region2: #{tile.13} parent=0 // pred_check
    _
  $region3: #{tile.13} parent=0 // pred_check_branch
    %3 = sbr.rel (0) target = $region5
  $region4: #{tile.13} parent=0 // pred_region
    _
  $region5: #{tile.13} parent=0 // pred_fallthru
    _
  %v4 = vld [vmem:[%s0] ss:$0 sm:$0xff]
  %5 = vst [vmem:[%s1] sm:$0xff] %v4
  %s6 = scalar_lea.vmem %s1, 8
  %7 = vst [vmem:[%s6] sm:$0xff] %v4

// kernel: tile.14
$region0: #{tile.14}
  %s0 = inlined_call_operand.vmem [shape: f32[16,64], index: 0, kind: input, shape index: {}]
  %s1 = inlined_call_operand.vmem [shape: f32[1,1024], index: 1, kind: output, shape index: {}]
  $region1: #{tile.14} parent=0
    #allocation0 [shape = 'u8[32768]{0}', space=vmem, size = 0x8000, scoped, tag = 'scoped mem for output reshape']
    %v2 = vld [vmem:[%s0] ss:$2 sm:$0xff]
    %vm3 = vcmask 523264
    %4 = vst.msk [vmem:[#allocation0] ss:$8 sm:$0xf] %vm3, %v2
    %5 = vst.msk [vmem:[#allocation0] ss:$8 sm:$0xf0] %vm3, %v2
    %s6 = scalar_lea.vmem %s0, 1
    %v7 = vld [vmem:[%s6] ss:$2 sm:$0xff]
    %8 = vrot.lane.b32.xlu0 %v7, 64
    %v9 = vpop.permute.xlu0 %8
    %vm10 = vcmask 1048064
    %11 = vst.msk [vmem:[#allocation0] ss:$8 sm:$0xf] %vm10, %v9
    %12 = vst.msk [vmem:[#allocation0] ss:$8 sm:$0xf0] %vm10, %v9
    %s14 = sshll.u32 1, 1
    %s15 = ssub.s32 %s14, 1
    %v17 = vld [vmem:[#allocation0] sm:%s15]
    %s18 = sshll.u32 1, 1
    %s19 = ssub.s32 %s18, 1
    %20 = vst [vmem:[%s1] sm:%s19] %v17
    %s21 = scalar_lea.vmem [#allocation0], 8
    %v22 = vld [vmem:[%s21] sm:%s15]
    %s23 = sshll.u32 1, 1
    %s24 = ssub.s32 %s23, 1
    %s25 = scalar_lea.vmem %s1, 1
    %26 = vst [vmem:[%s25] sm:%s24] %v22
    %s27 = scalar_lea.vmem [#allocation0], 16
    %v28 = vld [vmem:[%s27] sm:%s15]
    %s29 = sshll.u32 1, 1
    %s30 = ssub.s32 %s29, 1
    %s31 = smul.addr 1, 2
    %s32 = scalar_lea.vmem %s1, %s31
    %33 = vst [vmem:[%s32] sm:%s30] %v28
    %s34 = scalar_lea.vmem [#allocation0], 24
    %v35 = vld [vmem:[%s34] sm:%s15]
    %s36 = sshll.u32 1, 1
    %s37 = ssub.s32 %s36, 1
    %s38 = smul.addr 1, 3
    %s39 = scalar_lea.vmem %s1, %s38
    %40 = vst [vmem:[%s39] sm:%s37] %v35
    %s41 = scalar_lea.vmem [#allocation0], 32
    %v42 = vld [vmem:[%s41] sm:%s15]
    %s43 = sshll.u32 1, 1
    %s44 = ssub.s32 %s43, 1
    %s45 = smul.addr 1, 4
    %s46 = scalar_lea.vmem %s1, %s45
    %47 = vst [vmem:[%s46] sm:%s44] %v42
    %s48 = scalar_lea.vmem [#allocation0], 40
    %v49 = vld [vmem:[%s48] sm:%s15]
    %s50 = sshll.u32 1, 1
    %s51 = ssub.s32 %s50, 1
    %s52 = smul.addr 1, 5
    %s53 = scalar_lea.vmem %s1, %s52
    %54 = vst [vmem:[%s53] sm:%s51] %v49
    %s55 = scalar_lea.vmem [#allocation0], 48
    %v56 = vld [vmem:[%s55] sm:%s15]
    %s57 = sshll.u32 1, 1
    %s58 = ssub.s32 %s57, 1
    %s59 = smul.addr 1, 6
    %s60 = scalar_lea.vmem %s1, %s59
    %61 = vst [vmem:[%s60] sm:%s58] %v56
    %s62 = scalar_lea.vmem [#allocation0], 56
    %v63 = vld [vmem:[%s62] sm:%s15]
    %s64 = sshll.u32 1, 1
    %s65 = ssub.s32 %s64, 1
    %s66 = smul.addr 1, 7
    %s67 = scalar_lea.vmem %s1, %s66
    %68 = vst [vmem:[%s67] sm:%s65] %v63

// kernel: tile.18
$region0: #{tile.18}
  #allocation0 [shape = 's32[1]{0}', space=sflag, size = 0x4, scoped, tag = 'scoped memory for tile.18']
  %s0 = inlined_call_operand.vmem [shape: f32[4], index: 0, kind: input, shape index: {}]
  %s1 = inlined_call_operand.vmem [shape: f32[16,4], index: 1, kind: output, shape index: {}]
  // Predicated region
  $region2: #{tile.18} parent=0 // pred_check
    _
  $region3: #{tile.18} parent=0 // pred_check_branch
    %3 = sbr.rel (0) target = $region5
  $region4: #{tile.18} parent=0 // pred_region
    _
  $region5: #{tile.18} parent=0 // pred_fallthru
    _
  %v4 = vld [vmem:[%s0] ss:$0 sm:$0xff]
  %5 = vst [vmem:[%s1] sm:$0xff] %v4
  %s6 = scalar_lea.vmem %s1, 8
  %7 = vst [vmem:[%s6] sm:$0xff] %v4

// kernel: tile.19
$region0: #{tile.19}
  %s0 = inlined_call_operand.vmem [shape: f32[16,4], index: 0, kind: input, shape index: {}]
  %s1 = inlined_call_operand.vmem [shape: f32[1,64], index: 1, kind: output, shape index: {}]
  $region1: #{tile.19} parent=0
    #allocation0 [shape = 'u8[4096]{0}', space=vmem, size = 0x1000, scoped, tag = 'scoped mem for output reshape']
    %v2 = vld [vmem:[%s0] sm:$0x1]
    %vm3 = vcmask 31744
    %4 = vst.msk [vmem:[#allocation0] sm:$0x1] %vm3, %v2
    %s5 = scalar_lea.vmem %s0, 15
    %v6 = vld [vmem:[%s5] sm:$0x1]
    %7 = vrot.lane.b32.xlu0 %v6, 60
    %v8 = vpop.permute.xlu0 %7
    %vm9 = vcmask 523744
    %10 = vst.msk [vmem:[#allocation0] sm:$0x1] %vm9, %v8
    %s11 = scalar_lea.vmem %s0, 14
    %v12 = vld [vmem:[%s11] sm:$0x1]
    %13 = vrot.lane.b32.xlu0 %v12, 56
    %v14 = vpop.permute.xlu0 %13
    %vm15 = vcmask 490944
    %16 = vst.msk [vmem:[#allocation0] sm:$0x1] %vm15, %v14
    %s17 = scalar_lea.vmem %s0, 13
    %v18 = vld [vmem:[%s17] sm:$0x1]
    %19 = vrot.lane.b32.xlu0 %v18, 52
    %v20 = vpop.permute.xlu0 %19
    %vm21 = vcmask 458144
    %22 = vst.msk [vmem:[#allocation0] sm:$0x1] %vm21, %v20
    %s23 = scalar_lea.vmem %s0, 12
    %v24 = vld [vmem:[%s23] sm:$0x1]
    %25 = vrot.lane.b32.xlu0 %v24, 48
    %v26 = vpop.permute.xlu0 %25
    %vm27 = vcmask 425344
    %28 = vst.msk [vmem:[#allocation0] sm:$0x1] %vm27, %v26
    %s29 = scalar_lea.vmem %s0, 11
    %v30 = vld [vmem:[%s29] sm:$0x1]
    %31 = vrot.lane.b32.xlu0 %v30, 44
    %v32 = vpop.permute.xlu0 %31
    %vm33 = vcmask 392544
    %34 = vst.msk [vmem:[#allocation0] sm:$0x1] %vm33, %v32
    %s35 = scalar_lea.vmem %s0, 10
    %v36 = vld [vmem:[%s35] sm:$0x1]
    %37 = vrot.lane.b32.xlu0 %v36, 40
    %v38 = vpop.permute.xlu0 %37
    %vm39 = vcmask 359744
    %40 = vst.msk [vmem:[#allocation0] sm:$0x1] %vm39, %v38
    %s41 = scalar_lea.vmem %s0, 9
    %v42 = vld [vmem:[%s41] sm:$0x1]
    %43 = vrot.lane.b32.xlu0 %v42, 36
    %v44 = vpop.permute.xlu0 %43
    %vm45 = vcmask 326944
    %46 = vst.msk [vmem:[#allocation0] sm:$0x1] %vm45, %v44
    %s47 = scalar_lea.vmem %s0, 8
    %v48 = vld [vmem:[%s47] sm:$0x1]
    %49 = vrot.lane.b32.xlu0 %v48, 32
    %v50 = vpop.permute.xlu0 %49
    %vm51 = vcmask 294144
    %52 = vst.msk [vmem:[#allocation0] sm:$0x1] %vm51, %v50
    %s53 = scalar_lea.vmem %s0, 7
    %v54 = vld [vmem:[%s53] sm:$0x1]
    %55 = vrot.lane.b32.xlu0 %v54, 28
    %v56 = vpop.permute.xlu0 %55
    %vm57 = vcmask 261344
    %58 = vst.msk [vmem:[#allocation0] sm:$0x1] %vm57, %v56
    %s59 = scalar_lea.vmem %s0, 6
    %v60 = vld [vmem:[%s59] sm:$0x1]
    %61 = vrot.lane.b32.xlu0 %v60, 24
    %v62 = vpop.permute.xlu0 %61
    %vm63 = vcmask 228544
    %64 = vst.msk [vmem:[#allocation0] sm:$0x1] %vm63, %v62
    %s65 = scalar_lea.vmem %s0, 5
    %v66 = vld [vmem:[%s65] sm:$0x1]
    %67 = vrot.lane.b32.xlu0 %v66, 20
    %v68 = vpop.permute.xlu0 %67
    %vm69 = vcmask 195744
    %70 = vst.msk [vmem:[#allocation0] sm:$0x1] %vm69, %v68
    %s71 = scalar_lea.vmem %s0, 4
    %v72 = vld [vmem:[%s71] sm:$0x1]
    %73 = vrot.lane.b32.xlu0 %v72, 16
    %v74 = vpop.permute.xlu0 %73
    %vm75 = vcmask 162944
    %76 = vst.msk [vmem:[#allocation0] sm:$0x1] %vm75, %v74
    %s77 = scalar_lea.vmem %s0, 3
    %v78 = vld [vmem:[%s77] sm:$0x1]
    %79 = vrot.lane.b32.xlu0 %v78, 12
    %v80 = vpop.permute.xlu0 %79
    %vm81 = vcmask 130144
    %82 = vst.msk [vmem:[#allocation0] sm:$0x1] %vm81, %v80
    %s83 = scalar_lea.vmem %s0, 2
    %v84 = vld [vmem:[%s83] sm:$0x1]
    %85 = vrot.lane.b32.xlu0 %v84, 8
    %v86 = vpop.permute.xlu0 %85
    %vm87 = vcmask 97344
    %88 = vst.msk [vmem:[#allocation0] sm:$0x1] %vm87, %v86
    %s89 = scalar_lea.vmem %s0, 1
    %v90 = vld [vmem:[%s89] sm:$0x1]
    %91 = vrot.lane.b32.xlu0 %v90, 4
    %v92 = vpop.permute.xlu0 %91
    %vm93 = vcmask 64544
    %94 = vst.msk [vmem:[#allocation0] sm:$0x1] %vm93, %v92
    %s96 = sshll.u32 1, 1
    %s97 = ssub.s32 %s96, 1
    %v99 = vld [vmem:[#allocation0] sm:%s97]
    %s100 = sshll.u32 1, 1
    %s101 = ssub.s32 %s100, 1
    %102 = vst [vmem:[%s1] sm:%s101] %v99

// kernel: residual_block_pallas.1
$region0: #{residual_block_pallas.1}
  #allocation0 [shape = 'u32[]', space=smem, size = 0x4, offset = 0x4, fixed_abs, tag = 'smem constant byte address 0x4 - core index']
  #allocation1 [shape = 'u32[144,128]{1,0:T(1,128)}', space=vmem, size = 0x12000, scoped, tag = 'internal scratch']
  %s0 = inlined_call_operand.vmem [shape: f32[2,16,64], index: 0, kind: input, shape index: {}]
  %s1 = inlined_call_operand.vmem [shape: f32[3,64,1024], index: 1, kind: input, shape index: {}]
  %s2 = inlined_call_operand.vmem [shape: f32[1,1024], index: 2, kind: input, shape index: {}]
  %s3 = inlined_call_operand.vmem [shape: f32[3,1024,64], index: 3, kind: input, shape index: {}]
  %s4 = inlined_call_operand.vmem [shape: f32[1,64], index: 4, kind: input, shape index: {}]
  %s5 = inlined_call_operand.vmem [shape: f32[2,16,64], index: 5, kind: output, shape index: {}]
  %s6 = sld [smem:[#allocation0]]
  $region53: #{residual_block_pallas.1} parent=0
    _
  %s8 = ssub.s32 1, %s6
  %s9 = scalar_select 0, %s8, %s6
  loop: start=0, step=1, limit=4
  $region2: #{residual_block_pallas.1} parent=0 // loop_pre_header
    _
  $region3: #{residual_block_pallas.1} parent=0 // loop_header
    %s11 = sphi 0, %s15
    %p12 = scmp.ge.s32.totalorder %s11, 4
    %s21 = sphi 0, %s23
    %s24 = sphi 0, %s21
    %s25 = sphi 0, %s24
    %s41 = sphi 0, %s25
    %s45 = sphi 0, %s45
    %s47 = sphi 0, %s45
    %s48 = sphi 0, %s47
    %s62 = sphi 0, %s48
    %s66 = sphi 0, %s66
    %s68 = sphi 0, %s66
    %s69 = sphi 0, %s68
    %s83 = sphi 0, %s69
    %s87 = sphi 0, %s87
    %s89 = sphi 0, %s87
    %s90 = sphi 0, %s89
    %s104 = sphi 0, %s90
    %s108 = sphi 0, %s108
    %s110 = sphi 0, %s108
    %s111 = sphi 0, %s110
    %s125 = sphi 0, %s111
    %s131 = sphi 0, %s133
    %s134 = sphi 0, %s131
    %s135 = sphi 0, %s134
    %s151 = sphi 0, %s135
  $region4: #{residual_block_pallas.1} parent=0 // loop_header_branch
    %14 = sbr.rel (%p12) target = $region8
  $region5: #{residual_block_pallas.1} parent=0 // loop_body
    %s16 = ssub.s32 %s11, 1
    %s17 = ssub.s32 %s11, 2
    %s18 = sadd.s32 %s11, 1
    %s19 = ssub.s32 %s11, %s18
    %p20 = scmp.eq.s32.totalorder %s19, 0
    %s22 = sadd.s32 %s21, 1
    %s23 = scalar_select %p20, %s21, %s22
    %p26 = pneg %p20
    %p27 = scmp.eq.s32.totalorder %s11, 1
    %p28 = por %p26, %p27
    %p29 = scmp.ne.s32.totalorder %s21, %s24
    %p30 = scmp.eq.s32.totalorder %s11, 0
    %p31 = por %p29, %p30
    %p32 = scmp.ne.s32.totalorder %s21, %s24
    %p33 = scmp.eq.s32.totalorder %s16, 1
    %p34 = por %p32, %p33
    %p35 = scmp.ne.s32.totalorder %s24, %s25
    %p36 = scmp.eq.s32.totalorder %s16, 0
    %p37 = por %p35, %p36
    %p38 = scmp.ne.s32.totalorder %s24, %s25
    %p39 = scmp.eq.s32.totalorder %s17, 1
    %p40 = por %p38, %p39
    %p42 = scmp.ne.s32.totalorder %s25, %s41
    %p43 = scmp.eq.s32.totalorder %s17, 0
    %p44 = por %p42, %p43
    %s46 = sadd.s32 %s45, 1
    %p49 = scmp.eq.s32.totalorder %s11, 1
    %p50 = scmp.ne.s32.totalorder %s45, %s47
    %p51 = scmp.eq.s32.totalorder %s11, 0
    %p52 = por %p50, %p51
    %p53 = scmp.ne.s32.totalorder %s45, %s47
    %p54 = scmp.eq.s32.totalorder %s16, 1
    %p55 = por %p53, %p54
    %p56 = scmp.ne.s32.totalorder %s47, %s48
    %p57 = scmp.eq.s32.totalorder %s16, 0
    %p58 = por %p56, %p57
    %p59 = scmp.ne.s32.totalorder %s47, %s48
    %p60 = scmp.eq.s32.totalorder %s17, 1
    %p61 = por %p59, %p60
    %p63 = scmp.ne.s32.totalorder %s48, %s62
    %p64 = scmp.eq.s32.totalorder %s17, 0
    %p65 = por %p63, %p64
    %s67 = sadd.s32 %s66, 1
    %p70 = scmp.eq.s32.totalorder %s11, 1
    %p71 = scmp.ne.s32.totalorder %s66, %s68
    %p72 = scmp.eq.s32.totalorder %s11, 0
    %p73 = por %p71, %p72
    %p74 = scmp.ne.s32.totalorder %s66, %s68
    %p75 = scmp.eq.s32.totalorder %s16, 1
    %p76 = por %p74, %p75
    %p77 = scmp.ne.s32.totalorder %s68, %s69
    %p78 = scmp.eq.s32.totalorder %s16, 0
    %p79 = por %p77, %p78
    %p80 = scmp.ne.s32.totalorder %s68, %s69
    %p81 = scmp.eq.s32.totalorder %s17, 1
    %p82 = por %p80, %p81
    %p84 = scmp.ne.s32.totalorder %s69, %s83
    %p85 = scmp.eq.s32.totalorder %s17, 0
    %p86 = por %p84, %p85
    %s88 = sadd.s32 %s87, 1
    %p91 = scmp.eq.s32.totalorder %s11, 1
    %p92 = scmp.ne.s32.totalorder %s87, %s89
    %p93 = scmp.eq.s32.totalorder %s11, 0
    %p94 = por %p92, %p93
    %p95 = scmp.ne.s32.totalorder %s87, %s89
    %p96 = scmp.eq.s32.totalorder %s16, 1
    %p97 = por %p95, %p96
    %p98 = scmp.ne.s32.totalorder %s89, %s90
    %p99 = scmp.eq.s32.totalorder %s16, 0
    %p100 = por %p98, %p99
    %p101 = scmp.ne.s32.totalorder %s89, %s90
    %p102 = scmp.eq.s32.totalorder %s17, 1
    %p103 = por %p101, %p102
    %p105 = scmp.ne.s32.totalorder %s90, %s104
    %p106 = scmp.eq.s32.totalorder %s17, 0
    %p107 = por %p105, %p106
    %s109 = sadd.s32 %s108, 1
    %p112 = scmp.eq.s32.totalorder %s11, 1
    %p113 = scmp.ne.s32.totalorder %s108, %s110
    %p114 = scmp.eq.s32.totalorder %s11, 0
    %p115 = por %p113, %p114
    %p116 = scmp.ne.s32.totalorder %s108, %s110
    %p117 = scmp.eq.s32.totalorder %s16, 1
    %p118 = por %p116, %p117
    %p119 = scmp.ne.s32.totalorder %s110, %s111
    %p120 = scmp.eq.s32.totalorder %s16, 0
    %p121 = por %p119, %p120
    %p122 = scmp.ne.s32.totalorder %s110, %s111
    %p123 = scmp.eq.s32.totalorder %s17, 1
    %p124 = por %p122, %p123
    %p126 = scmp.ne.s32.totalorder %s111, %s125
    %p127 = scmp.eq.s32.totalorder %s17, 0
    %p128 = por %p126, %p127
    %s129 = ssub.s32 %s11, %s18
    %p130 = scmp.eq.s32.totalorder %s129, 0
    %s132 = sadd.s32 %s131, 1
    %s133 = scalar_select %p130, %s131, %s132
    %p136 = pneg %p130
    %p137 = scmp.eq.s32.totalorder %s11, 1
    %p138 = por %p136, %p137
    %p139 = scmp.ne.s32.totalorder %s131, %s134
    %p140 = scmp.eq.s32.totalorder %s11, 0
    %p141 = por %p139, %p140
    %p142 = scmp.ne.s32.totalorder %s131, %s134
    %p143 = scmp.eq.s32.totalorder %s16, 1
    %p144 = por %p142, %p143
    %p145 = scmp.ne.s32.totalorder %s134, %s135
    %p146 = scmp.eq.s32.totalorder %s16, 0
    %p147 = por %p145, %p146
    %p148 = scmp.ne.s32.totalorder %s134, %s135
    %p149 = scmp.eq.s32.totalorder %s17, 1
    %p150 = por %p148, %p149
    %p152 = scmp.ne.s32.totalorder %s135, %s151
    %p153 = scmp.eq.s32.totalorder %s17, 0
    %p154 = por %p152, %p153
    %p155 = scmp.le.s32.totalorder 1, %s11
    %p156 = scmp.lt.s32.totalorder %s11, 3
    %p157 = pnand %p155, %p156
    %p158 = pneg %p157
    // Predicated region
    $region9: #{residual_block_pallas.1} parent=5 // pred_check
      _
    $region10: #{residual_block_pallas.1} parent=5 // pred_check_branch
      %160 = sbr.rel (%p157) target = $region12
    $region11: #{residual_block_pallas.1} parent=5 // pred_region
      %s161 = ssub.s32 %s11, 1
      // Predicated region
      $region13: #{residual_block_pallas.1} parent=11 // pred_check
        %p162 = pneg %p58
      $region14: #{residual_block_pallas.1} parent=11 // pred_check_branch
        %164 = sbr.rel (%p162) target = $region16
      $region15: #{residual_block_pallas.1} parent=11 // pred_region
        _
      $region16: #{residual_block_pallas.1} parent=11 // pred_fallthru
        _
      // Predicated region
      $region17: #{residual_block_pallas.1} parent=11 // pred_check
        %p165 = pneg %p79
      $region18: #{residual_block_pallas.1} parent=11 // pred_check_branch
        %167 = sbr.rel (%p165) target = $region20
      $region19: #{residual_block_pallas.1} parent=11 // pred_region
        _
      $region20: #{residual_block_pallas.1} parent=11 // pred_fallthru
        _
      // Predicated region
      $region21: #{residual_block_pallas.1} parent=11 // pred_check
        %p168 = pneg %p100
      $region22: #{residual_block_pallas.1} parent=11 // pred_check_branch
        %170 = sbr.rel (%p168) target = $region24
      $region23: #{residual_block_pallas.1} parent=11 // pred_region
        _
      $region24: #{residual_block_pallas.1} parent=11 // pred_fallthru
        _
      // Predicated region
      $region25: #{residual_block_pallas.1} parent=11 // pred_check
        %p171 = pneg %p121
      $region26: #{residual_block_pallas.1} parent=11 // pred_check_branch
        %173 = sbr.rel (%p171) target = $region28
      $region27: #{residual_block_pallas.1} parent=11 // pred_region
        _
      $region28: #{residual_block_pallas.1} parent=11 // pred_fallthru
        _
    $region12: #{residual_block_pallas.1} parent=5 // pred_fallthru
      _
    %p174 = scmp.lt.s32.totalorder %s11, 2
    // Predicated region
    $region29: #{residual_block_pallas.1} parent=5 // pred_check
      %p175 = pneg %p174
    $region30: #{residual_block_pallas.1} parent=5 // pred_check_branch
      %177 = sbr.rel (%p175) target = $region32
    $region31: #{residual_block_pallas.1} parent=5 // pred_region
      // Predicated region
      $region33: #{residual_block_pallas.1} parent=31 // pred_check
        %p178 = pneg %p31
      $region34: #{residual_block_pallas.1} parent=31 // pred_check_branch
        %180 = sbr.rel (%p178) target = $region36
      $region35: #{residual_block_pallas.1} parent=31 // pred_region
        %p181 = scmp.lt.s32.totalorder %s11, 1
        %s182 = scalar_select %p181, %s11, 1
        %s183 = smul.addr %s182, 2
        %s184 = smul.addr %s183, 8
        %s185 = scalar_lea.vmem %s0, %s184
      $region36: #{residual_block_pallas.1} parent=31 // pred_fallthru
        _
    $region32: #{residual_block_pallas.1} parent=5 // pred_fallthru
      _
    %p186 = scmp.le.s32.totalorder 1, %s11
    %p187 = scmp.lt.s32.totalorder %s11, 3
    %p188 = pnand %p186, %p187
    %p189 = pneg %p188
    // Predicated region
    $region37: #{residual_block_pallas.1} parent=5 // pred_check
      _
    $region38: #{residual_block_pallas.1} parent=5 // pred_check_branch
      %191 = sbr.rel (%p188) target = $region40
    $region39: #{residual_block_pallas.1} parent=5 // pred_region
      %s192 = ssub.s32 %s11, 1
      %p193 = scmp.lt.s32.totalorder %s16, 1
      %s194 = scalar_select %p193, %s16, 1
      %s195 = smul.addr %s194, 2
      %s196 = smul.addr %s195, 8
      %s197 = scalar_lea.vmem %s0, %s196
      %p198 = pneg %p37
      %p199 = pneg %p34
      %p200 = pneg %p58
      %p201 = pneg %p55
      %p202 = pneg %p79
      %p203 = pneg %p76
      %p204 = pneg %p100
      %p205 = pneg %p97
      %p206 = pneg %p121
      %p207 = pneg %p118
      %p208 = pneg %p147
      %p209 = pneg %p144
      %p210 = scmp.lt.s32.totalorder %s16, 1
      %s211 = scalar_select %p210, %s16, 1
      %s212 = smul.addr %s211, 2
      %s213 = smul.addr %s212, 8
      %s214 = scalar_lea.vmem %s5, %s213
      %p215 = scmp.lt.s32.totalorder %s16, 1
      %s216 = scalar_select %p215, %s16, 1
      %s217 = smul.addr %s216, 2
      %s218 = smul.addr %s217, 8
      %s219 = scalar_lea.vmem %s0, %s218
      %p220 = scmp.lt.s32.totalorder %s16, 1
      %s221 = scalar_select %p220, %s16, 1
      %s222 = smul.addr %s221, 2
      %s223 = smul.addr %s222, 8
      %s224 = scalar_lea.vmem %s5, %s223
      %v225 = vld [vmem:[%s219] sm:$0xff]
      %v226 = vld [vmem:[%s219 + $0x8] sm:$0xff]
      %v227 = vlaneseq
      %v228 = vshrl.u32 %v227, 7
      %v229 = vadd.s32 %v228, 8
      %vm230 = vcmp.eq.s32.totalorder %v228, 0
      %vm231 = vcmp.eq.s32.totalorder %v229, 0
      %vm232 = vcmp.eq.s32.totalorder %v228, 15
      %vm233 = vcmp.eq.s32.totalorder %v229, 15
      %s234 = scalar_lea.vmem %s1, 512
      %v235 = vld [vmem:[%s234] sm:$0xff]
      %v236 = vld [vmem:[%s234 + $0x8] sm:$0xff]
      %v237 = vld [vmem:[%s234 + $0x10] sm:$0xff]
      %v238 = vld [vmem:[%s234 + $0x18] sm:$0xff]
      %v239 = vld [vmem:[%s234 + $0x20] sm:$0xff]
      %v240 = vld [vmem:[%s234 + $0x28] sm:$0xff]
      %v241 = vld [vmem:[%s234 + $0x30] sm:$0xff]
      %v242 = vld [vmem:[%s234 + $0x38] sm:$0xff]
      %v243 = vld [vmem:[%s234 + $0x40] sm:$0xff]
      %v244 = vld [vmem:[%s234 + $0x48] sm:$0xff]
      %v245 = vld [vmem:[%s234 + $0x50] sm:$0xff]
      %v246 = vld [vmem:[%s234 + $0x58] sm:$0xff]
      %v247 = vld [vmem:[%s234 + $0x60] sm:$0xff]
      %v248 = vld [vmem:[%s234 + $0x68] sm:$0xff]
      %v249 = vld [vmem:[%s234 + $0x70] sm:$0xff]
      %v250 = vld [vmem:[%s234 + $0x78] sm:$0xff]
      %v251 = vld [vmem:[%s234 + $0x80] sm:$0xff]
      %v252 = vld [vmem:[%s234 + $0x88] sm:$0xff]
      %v253 = vld [vmem:[%s234 + $0x90] sm:$0xff]
      %v254 = vld [vmem:[%s234 + $0x98] sm:$0xff]
      %v255 = vld [vmem:[%s234 + $0xa0] sm:$0xff]
      %v256 = vld [vmem:[%s234 + $0xa8] sm:$0xff]
      %v257 = vld [vmem:[%s234 + $0xb0] sm:$0xff]
      %v258 = vld [vmem:[%s234 + $0xb8] sm:$0xff]
      %v259 = vld [vmem:[%s234 + $0xc0] sm:$0xff]
      %v260 = vld [vmem:[%s234 + $0xc8] sm:$0xff]
      %v261 = vld [vmem:[%s234 + $0xd0] sm:$0xff]
      %v262 = vld [vmem:[%s234 + $0xd8] sm:$0xff]
      %v263 = vld [vmem:[%s234 + $0xe0] sm:$0xff]
      %v264 = vld [vmem:[%s234 + $0xe8] sm:$0xff]
      %v265 = vld [vmem:[%s234 + $0xf0] sm:$0xff]
      %v266 = vld [vmem:[%s234 + $0xf8] sm:$0xff]
      %v267 = vld [vmem:[%s234 + $0x100] sm:$0xff]
      %v268 = vld [vmem:[%s234 + $0x108] sm:$0xff]
      %v269 = vld [vmem:[%s234 + $0x110] sm:$0xff]
      %v270 = vld [vmem:[%s234 + $0x118] sm:$0xff]
      %v271 = vld [vmem:[%s234 + $0x120] sm:$0xff]
      %v272 = vld [vmem:[%s234 + $0x128] sm:$0xff]
      %v273 = vld [vmem:[%s234 + $0x130] sm:$0xff]
      %v274 = vld [vmem:[%s234 + $0x138] sm:$0xff]
      %v275 = vld [vmem:[%s234 + $0x140] sm:$0xff]
      %v276 = vld [vmem:[%s234 + $0x148] sm:$0xff]
      %v277 = vld [vmem:[%s234 + $0x150] sm:$0xff]
      %v278 = vld [vmem:[%s234 + $0x158] sm:$0xff]
      %v279 = vld [vmem:[%s234 + $0x160] sm:$0xff]
      %v280 = vld [vmem:[%s234 + $0x168] sm:$0xff]
      %v281 = vld [vmem:[%s234 + $0x170] sm:$0xff]
      %v282 = vld [vmem:[%s234 + $0x178] sm:$0xff]
      %v283 = vld [vmem:[%s234 + $0x180] sm:$0xff]
      %v284 = vld [vmem:[%s234 + $0x188] sm:$0xff]
      %v285 = vld [vmem:[%s234 + $0x190] sm:$0xff]
      %v286 = vld [vmem:[%s234 + $0x198] sm:$0xff]
      %v287 = vld [vmem:[%s234 + $0x1a0] sm:$0xff]
      %v288 = vld [vmem:[%s234 + $0x1a8] sm:$0xff]
      %v289 = vld [vmem:[%s234 + $0x1b0] sm:$0xff]
      %v290 = vld [vmem:[%s234 + $0x1b8] sm:$0xff]
      %v291 = vld [vmem:[%s234 + $0x1c0] sm:$0xff]
      %v292 = vld [vmem:[%s234 + $0x1c8] sm:$0xff]
      %v293 = vld [vmem:[%s234 + $0x1d0] sm:$0xff]
      %v294 = vld [vmem:[%s234 + $0x1d8] sm:$0xff]
      %v295 = vld [vmem:[%s234 + $0x1e0] sm:$0xff]
      %v296 = vld [vmem:[%s234 + $0x1e8] sm:$0xff]
      %v297 = vld [vmem:[%s234 + $0x1f0] sm:$0xff]
      %v298 = vld [vmem:[%s234 + $0x1f8] sm:$0xff]
      %v299 = vrot.slane %v225, 7
      %v300 = vrot.slane %v226, 7
      %vm301 = vcmp.lt.s32.totalorder %v228, 1
      %v302 = vsel %vm301, %v299, %v300
      %v303 = vsel %vm301, %v300, %v299
      %v304 = vsel %vm230, 1, 0
      %v305 = vsel %vm231, 1, 0
      %vm306 = vcmp.eq.s32.totalorder %v304, 1
      %vm307 = vcmp.eq.s32.totalorder %v305, 1
      %v308 = vsel %vm306, 0.0, %v303
      %v309 = vsel %vm307, 0.0, %v302
      %v310 = vld [vmem:[%s1] sm:$0xff]
      %v311 = vld [vmem:[%s1 + $0x8] sm:$0xff]
      %v312 = vld [vmem:[%s1 + $0x10] sm:$0xff]
      %v313 = vld [vmem:[%s1 + $0x18] sm:$0xff]
      %v314 = vld [vmem:[%s1 + $0x20] sm:$0xff]
      %v315 = vld [vmem:[%s1 + $0x28] sm:$0xff]
      %v316 = vld [vmem:[%s1 + $0x30] sm:$0xff]
      %v317 = vld [vmem:[%s1 + $0x38] sm:$0xff]
      %v318 = vld [vmem:[%s1 + $0x40] sm:$0xff]
      %v319 = vld [vmem:[%s1 + $0x48] sm:$0xff]
      %v320 = vld [vmem:[%s1 + $0x50] sm:$0xff]
      %v321 = vld [vmem:[%s1 + $0x58] sm:$0xff]
      %v322 = vld [vmem:[%s1 + $0x60] sm:$0xff]
      %v323 = vld [vmem:[%s1 + $0x68] sm:$0xff]
      %v324 = vld [vmem:[%s1 + $0x70] sm:$0xff]
      %v325 = vld [vmem:[%s1 + $0x78] sm:$0xff]
      %v326 = vld [vmem:[%s1 + $0x80] sm:$0xff]
      %v327 = vld [vmem:[%s1 + $0x88] sm:$0xff]
      %v328 = vld [vmem:[%s1 + $0x90] sm:$0xff]
      %v329 = vld [vmem:[%s1 + $0x98] sm:$0xff]
      %v330 = vld [vmem:[%s1 + $0xa0] sm:$0xff]
      %v331 = vld [vmem:[%s1 + $0xa8] sm:$0xff]
      %v332 = vld [vmem:[%s1 + $0xb0] sm:$0xff]
      %v333 = vld [vmem:[%s1 + $0xb8] sm:$0xff]
      %v334 = vld [vmem:[%s1 + $0xc0] sm:$0xff]
      %v335 = vld [vmem:[%s1 + $0xc8] sm:$0xff]
      %v336 = vld [vmem:[%s1 + $0xd0] sm:$0xff]
      %v337 = vld [vmem:[%s1 + $0xd8] sm:$0xff]
      %v338 = vld [vmem:[%s1 + $0xe0] sm:$0xff]
      %v339 = vld [vmem:[%s1 + $0xe8] sm:$0xff]
      %v340 = vld [vmem:[%s1 + $0xf0] sm:$0xff]
      %v341 = vld [vmem:[%s1 + $0xf8] sm:$0xff]
      %v342 = vld [vmem:[%s1 + $0x100] sm:$0xff]
      %v343 = vld [vmem:[%s1 + $0x108] sm:$0xff]
      %v344 = vld [vmem:[%s1 + $0x110] sm:$0xff]
      %v345 = vld [vmem:[%s1 + $0x118] sm:$0xff]
      %v346 = vld [vmem:[%s1 + $0x120] sm:$0xff]
      %v347 = vld [vmem:[%s1 + $0x128] sm:$0xff]
      %v348 = vld [vmem:[%s1 + $0x130] sm:$0xff]
      %v349 = vld [vmem:[%s1 + $0x138] sm:$0xff]
      %v350 = vld [vmem:[%s1 + $0x140] sm:$0xff]
      %v351 = vld [vmem:[%s1 + $0x148] sm:$0xff]
      %v352 = vld [vmem:[%s1 + $0x150] sm:$0xff]
      %v353 = vld [vmem:[%s1 + $0x158] sm:$0xff]
      %v354 = vld [vmem:[%s1 + $0x160] sm:$0xff]
      %v355 = vld [vmem:[%s1 + $0x168] sm:$0xff]
      %v356 = vld [vmem:[%s1 + $0x170] sm:$0xff]
      %v357 = vld [vmem:[%s1 + $0x178] sm:$0xff]
      %v358 = vld [vmem:[%s1 + $0x180] sm:$0xff]
      %v359 = vld [vmem:[%s1 + $0x188] sm:$0xff]
      %v360 = vld [vmem:[%s1 + $0x190] sm:$0xff]
      %v361 = vld [vmem:[%s1 + $0x198] sm:$0xff]
      %v362 = vld [vmem:[%s1 + $0x1a0] sm:$0xff]
      %v363 = vld [vmem:[%s1 + $0x1a8] sm:$0xff]
      %v364 = vld [vmem:[%s1 + $0x1b0] sm:$0xff]
      %v365 = vld [vmem:[%s1 + $0x1b8] sm:$0xff]
      %v366 = vld [vmem:[%s1 + $0x1c0] sm:$0xff]
      %v367 = vld [vmem:[%s1 + $0x1c8] sm:$0xff]
      %v368 = vld [vmem:[%s1 + $0x1d0] sm:$0xff]
      %v369 = vld [vmem:[%s1 + $0x1d8] sm:$0xff]
      %v370 = vld [vmem:[%s1 + $0x1e0] sm:$0xff]
      %v371 = vld [vmem:[%s1 + $0x1e8] sm:$0xff]
      %v372 = vld [vmem:[%s1 + $0x1f0] sm:$0xff]
      %v373 = vld [vmem:[%s1 + $0x1f8] sm:$0xff]
      %vm374 = vcmask 523264
      %v376 = vsel %vm374, %v308, 0
      %v379 = vsel %vm374, %v309, 0
      %381 = vmatprep.subr.mxu0 0.0
      %382 = vmatpush1.msra.mxu0 0.0
      %383 = vmatprep.subr.mxu0 0.0
      %384 = vmatpush1.msra.mxu0 0.0
      %385 = vmatprep.subr.mxu0 0.0
      %386 = vmatpush1.msra.mxu0 0.0
      %387 = vmatprep.subr.mxu0 0.0
      %388 = vmatpush1.msra.mxu0 0.0
      %389 = vmatprep.subr.mxu0 0.0
      %390 = vmatpush1.msra.mxu0 0.0
      %391 = vmatprep.subr.mxu0 0.0
      %392 = vmatpush1.msra.mxu0 0.0
      %393 = vmatprep.subr.mxu0 0.0
      %394 = vmatpush1.msra.mxu0 0.0
      %395 = vmatprep.subr.mxu0 0.0
      %396 = vmatpush1.msra.mxu0 0.0
      %397 = vmatprep.subr.mxu0 %v367
      %398 = vmatpush1.msra.mxu0 %v366
      %399 = vmatprep.subr.mxu0 %v359
      %400 = vmatpush1.msra.mxu0 %v358
      %401 = vmatprep.subr.mxu0 %v351
      %402 = vmatpush1.msra.mxu0 %v350
      %403 = vmatprep.subr.mxu0 %v343
      %404 = vmatpush1.msra.mxu0 %v342
      %405 = vmatprep.subr.mxu0 %v335
      %406 = vmatpush1.msra.mxu0 %v334
      %407 = vmatprep.subr.mxu0 %v327
      %408 = vmatpush1.msra.mxu0 %v326
      %409 = vmatprep.subr.mxu0 %v319
      %410 = vmatpush1.msra.mxu0 %v318
      %411 = vmatprep.subr.mxu0 %v311
      %412 = vmatpush1.msra.mxu0 %v310
      %413 = vmatprep.subr.mxu0 0.0
      %414 = vmatpush2.msra.mxu0 0.0
      %415 = vmatprep.subr.mxu0 0.0
      %416 = vmatpush2.msra.mxu0 0.0
      %417 = vmatprep.subr.mxu0 0.0
      %418 = vmatpush2.msra.mxu0 0.0
      %419 = vmatprep.subr.mxu0 0.0
      %420 = vmatpush2.msra.mxu0 0.0
      %421 = vmatprep.subr.mxu0 0.0
      %422 = vmatpush2.msra.mxu0 0.0
      %423 = vmatprep.subr.mxu0 0.0
      %424 = vmatpush2.msra.mxu0 0.0
      %425 = vmatprep.subr.mxu0 0.0
      %426 = vmatpush2.msra.mxu0 0.0
      %427 = vmatprep.subr.mxu0 0.0
      %428 = vmatpush2.msra.mxu0 0.0
      %429 = vmatprep.subr.mxu0 0.0
      %430 = vmatpush2.msra.mxu0 0.0
      %431 = vmatprep.subr.mxu0 0.0
      %432 = vmatpush2.msra.mxu0 0.0
      %433 = vmatprep.subr.mxu0 0.0
      %434 = vmatpush2.msra.mxu0 0.0
      %435 = vmatprep.subr.mxu0 0.0
      %436 = vmatpush2.msra.mxu0 0.0
      %437 = vmatprep.subr.mxu0 0.0
      %438 = vmatpush2.msra.mxu0 0.0
      %439 = vmatprep.subr.mxu0 0.0
      %440 = vmatpush2.msra.mxu0 0.0
      %441 = vmatprep.subr.mxu0 0.0
      %442 = vmatpush2.msra.mxu0 0.0
      %443 = vmatprep.subr.mxu0 0.0
      %444 = vmatpush2.msra.mxu0 0.0
      %445 = vmatprep.mubr.f32.mxu0 0.0
      %446 = vmatmul.mubr.f32.gmra.mxu0 %v376
      %v447 = vpop.f32.mrf.mxu0
      %v448 = vadd.f32 0.0, %v447
      %v449 = vpop.f32.mrf.mxu0
      %v450 = vadd.f32 0.0, %v449
      %451 = vmatprep.mubr.f32.mxu0 0.0
      %452 = vmatmul.mubr.f32.gmra.mxu0 %v379
      %v453 = vpop.f32.mrf.mxu0
      %v454 = vadd.f32 0.0, %v453
      %v455 = vpop.f32.mrf.mxu0
      %v456 = vadd.f32 0.0, %v455
      %457 = vdwg.mxu0
      %458 = vmatprep.subr.mxu0 0.0
      %459 = vmatpush1.msra.mxu0 0.0
      %460 = vmatprep.subr.mxu0 0.0
      %461 = vmatpush1.msra.mxu0 0.0
      %462 = vmatprep.subr.mxu0 0.0
      %463 = vmatpush1.msra.mxu0 0.0
      %464 = vmatprep.subr.mxu0 0.0
      %465 = vmatpush1.msra.mxu0 0.0
      %466 = vmatprep.subr.mxu0 0.0
      %467 = vmatpush1.msra.mxu0 0.0
      %468 = vmatprep.subr.mxu0 0.0
      %469 = vmatpush1.msra.mxu0 0.0
      %470 = vmatprep.subr.mxu0 0.0
      %471 = vmatpush1.msra.mxu0 0.0
      %472 = vmatprep.subr.mxu0 0.0
      %473 = vmatpush1.msra.mxu0 0.0
      %474 = vmatprep.subr.mxu0 %v369
      %475 = vmatpush1.msra.mxu0 %v368
      %476 = vmatprep.subr.mxu0 %v361
      %477 = vmatpush1.msra.mxu0 %v360
      %478 = vmatprep.subr.mxu0 %v353
      %479 = vmatpush1.msra.mxu0 %v352
      %480 = vmatprep.subr.mxu0 %v345
      %481 = vmatpush1.msra.mxu0 %v344
      %482 = vmatprep.subr.mxu0 %v337
      %483 = vmatpush1.msra.mxu0 %v336
      %484 = vmatprep.subr.mxu0 %v329
      %485 = vmatpush1.msra.mxu0 %v328
      %486 = vmatprep.subr.mxu0 %v321
      %487 = vmatpush1.msra.mxu0 %v320
      %488 = vmatprep.subr.mxu0 %v313
      %489 = vmatpush1.msra.mxu0 %v312
      %490 = vmatprep.subr.mxu0 0.0
      %491 = vmatpush2.msra.mxu0 0.0
      %492 = vmatprep.subr.mxu0 0.0
      %493 = vmatpush2.msra.mxu0 0.0
      %494 = vmatprep.subr.mxu0 0.0
      %495 = vmatpush2.msra.mxu0 0.0
      %496 = vmatprep.subr.mxu0 0.0
      %497 = vmatpush2.msra.mxu0 0.0
      %498 = vmatprep.subr.mxu0 0.0
      %499 = vmatpush2.msra.mxu0 0.0
      %500 = vmatprep.subr.mxu0 0.0
      %501 = vmatpush2.msra.mxu0 0.0
      %502 = vmatprep.subr.mxu0 0.0
      %503 = vmatpush2.msra.mxu0 0.0
      %504 = vmatprep.subr.mxu0 0.0
      %505 = vmatpush2.msra.mxu0 0.0
      %506 = vmatprep.subr.mxu0 0.0
      %507 = vmatpush2.msra.mxu0 0.0
      %508 = vmatprep.subr.mxu0 0.0
      %509 = vmatpush2.msra.mxu0 0.0
      %510 = vmatprep.subr.mxu0 0.0
      %511 = vmatpush2.msra.mxu0 0.0
      %512 = vmatprep.subr.mxu0 0.0
      %513 = vmatpush2.msra.mxu0 0.0
      %514 = vmatprep.subr.mxu0 0.0
      %515 = vmatpush2.msra.mxu0 0.0
      %516 = vmatprep.subr.mxu0 0.0
      %517 = vmatpush2.msra.mxu0 0.0
      %518 = vmatprep.subr.mxu0 0.0
      %519 = vmatpush2.msra.mxu0 0.0
      %520 = vmatprep.subr.mxu0 0.0
      %521 = vmatpush2.msra.mxu0 0.0
      %522 = vmatprep.mubr.f32.mxu0 0.0
      %523 = vmatmul.mubr.f32.gmra.mxu0 %v376
      %v524 = vpop.f32.mrf.mxu0
      %v525 = vadd.f32 0.0, %v524
      %v526 = vpop.f32.mrf.mxu0
      %v527 = vadd.f32 0.0, %v526
      %528 = vmatprep.mubr.f32.mxu0 0.0
      %529 = vmatmul.mubr.f32.gmra.mxu0 %v379
      %v530 = vpop.f32.mrf.mxu0
      %v531 = vadd.f32 0.0, %v530
      %v532 = vpop.f32.mrf.mxu0
      %v533 = vadd.f32 0.0, %v532
      %534 = vdwg.mxu0
      %535 = vmatprep.subr.mxu0 0.0
      %536 = vmatpush1.msra.mxu0 0.0
      %537 = vmatprep.subr.mxu0 0.0
      %538 = vmatpush1.msra.mxu0 0.0
      %539 = vmatprep.subr.mxu0 0.0
      %540 = vmatpush1.msra.mxu0 0.0
      %541 = vmatprep.subr.mxu0 0.0
      %542 = vmatpush1.msra.mxu0 0.0
      %543 = vmatprep.subr.mxu0 0.0
      %544 = vmatpush1.msra.mxu0 0.0
      %545 = vmatprep.subr.mxu0 0.0
      %546 = vmatpush1.msra.mxu0 0.0
      %547 = vmatprep.subr.mxu0 0.0
      %548 = vmatpush1.msra.mxu0 0.0
      %549 = vmatprep.subr.mxu0 0.0
      %550 = vmatpush1.msra.mxu0 0.0
      %551 = vmatprep.subr.mxu0 %v371
      %552 = vmatpush1.msra.mxu0 %v370
      %553 = vmatprep.subr.mxu0 %v363
      %554 = vmatpush1.msra.mxu0 %v362
      %555 = vmatprep.subr.mxu0 %v355
      %556 = vmatpush1.msra.mxu0 %v354
      %557 = vmatprep.subr.mxu0 %v347
      %558 = vmatpush1.msra.mxu0 %v346
      %559 = vmatprep.subr.mxu0 %v339
      %560 = vmatpush1.msra.mxu0 %v338
      %561 = vmatprep.subr.mxu0 %v331
      %562 = vmatpush1.msra.mxu0 %v330
      %563 = vmatprep.subr.mxu0 %v323
      %564 = vmatpush1.msra.mxu0 %v322
      %565 = vmatprep.subr.mxu0 %v315
      %566 = vmatpush1.msra.mxu0 %v314
      %567 = vmatprep.subr.mxu0 0.0
      %568 = vmatpush2.msra.mxu0 0.0
      %569 = vmatprep.subr.mxu0 0.0
      %570 = vmatpush2.msra.mxu0 0.0
      %571 = vmatprep.subr.mxu0 0.0
      %572 = vmatpush2.msra.mxu0 0.0
      %573 = vmatprep.subr.mxu0 0.0
      %574 = vmatpush2.msra.mxu0 0.0
      %575 = vmatprep.subr.mxu0 0.0
      %576 = vmatpush2.msra.mxu0 0.0
      %577 = vmatprep.subr.mxu0 0.0
      %578 = vmatpush2.msra.mxu0 0.0
      %579 = vmatprep.subr.mxu0 0.0
      %580 = vmatpush2.msra.mxu0 0.0
      %581 = vmatprep.subr.mxu0 0.0
      %582 = vmatpush2.msra.mxu0 0.0
      %583 = vmatprep.subr.mxu0 0.0
      %584 = vmatpush2.msra.mxu0 0.0
      %585 = vmatprep.subr.mxu0 0.0
      %586 = vmatpush2.msra.mxu0 0.0
      %587 = vmatprep.subr.mxu0 0.0
      %588 = vmatpush2.msra.mxu0 0.0
      %589 = vmatprep.subr.mxu0 0.0
      %590 = vmatpush2.msra.mxu0 0.0
      %591 = vmatprep.subr.mxu0 0.0
      %592 = vmatpush2.msra.mxu0 0.0
      %593 = vmatprep.subr.mxu0 0.0
      %594 = vmatpush2.msra.mxu0 0.0
      %595 = vmatprep.subr.mxu0 0.0
      %596 = vmatpush2.msra.mxu0 0.0
      %597 = vmatprep.subr.mxu0 0.0
      %598 = vmatpush2.msra.mxu0 0.0
      %599 = vmatprep.mubr.f32.mxu0 0.0
      %600 = vmatmul.mubr.f32.gmra.mxu0 %v376
      %v601 = vpop.f32.mrf.mxu0
      %v602 = vadd.f32 0.0, %v601
      %v603 = vpop.f32.mrf.mxu0
      %v604 = vadd.f32 0.0, %v603
      %605 = vmatprep.mubr.f32.mxu0 0.0
      %606 = vmatmul.mubr.f32.gmra.mxu0 %v379
      %v607 = vpop.f32.mrf.mxu0
      %v608 = vadd.f32 0.0, %v607
      %v609 = vpop.f32.mrf.mxu0
      %v610 = vadd.f32 0.0, %v609
      %611 = vdwg.mxu0
      %612 = vmatprep.subr.mxu0 0.0
      %613 = vmatpush1.msra.mxu0 0.0
      %614 = vmatprep.subr.mxu0 0.0
      %615 = vmatpush1.msra.mxu0 0.0
      %616 = vmatprep.subr.mxu0 0.0
      %617 = vmatpush1.msra.mxu0 0.0
      %618 = vmatprep.subr.mxu0 0.0
      %619 = vmatpush1.msra.mxu0 0.0
      %620 = vmatprep.subr.mxu0 0.0
      %621 = vmatpush1.msra.mxu0 0.0
      %622 = vmatprep.subr.mxu0 0.0
      %623 = vmatpush1.msra.mxu0 0.0
      %624 = vmatprep.subr.mxu0 0.0
      %625 = vmatpush1.msra.mxu0 0.0
      %626 = vmatprep.subr.mxu0 0.0
      %627 = vmatpush1.msra.mxu0 0.0
      %628 = vmatprep.subr.mxu0 %v373
      %629 = vmatpush1.msra.mxu0 %v372
      %630 = vmatprep.subr.mxu0 %v365
      %631 = vmatpush1.msra.mxu0 %v364
      %632 = vmatprep.subr.mxu0 %v357
      %633 = vmatpush1.msra.mxu0 %v356
      %634 = vmatprep.subr.mxu0 %v349
      %635 = vmatpush1.msra.mxu0 %v348
      %636 = vmatprep.subr.mxu0 %v341
      %637 = vmatpush1.msra.mxu0 %v340
      %638 = vmatprep.subr.mxu0 %v333
      %639 = vmatpush1.msra.mxu0 %v332
      %640 = vmatprep.subr.mxu0 %v325
      %641 = vmatpush1.msra.mxu0 %v324
      %642 = vmatprep.subr.mxu0 %v317
      %643 = vmatpush1.msra.mxu0 %v316
      %644 = vmatprep.subr.mxu0 0.0
      %645 = vmatpush2.msra.mxu0 0.0
      %646 = vmatprep.subr.mxu0 0.0
      %647 = vmatpush2.msra.mxu0 0.0
      %648 = vmatprep.subr.mxu0 0.0
      %649 = vmatpush2.msra.mxu0 0.0
      %650 = vmatprep.subr.mxu0 0.0
      %651 = vmatpush2.msra.mxu0 0.0
      %652 = vmatprep.subr.mxu0 0.0
      %653 = vmatpush2.msra.mxu0 0.0
      %654 = vmatprep.subr.mxu0 0.0
      %655 = vmatpush2.msra.mxu0 0.0
      %656 = vmatprep.subr.mxu0 0.0
      %657 = vmatpush2.msra.mxu0 0.0
      %658 = vmatprep.subr.mxu0 0.0
      %659 = vmatpush2.msra.mxu0 0.0
      %660 = vmatprep.subr.mxu0 0.0
      %661 = vmatpush2.msra.mxu0 0.0
      %662 = vmatprep.subr.mxu0 0.0
      %663 = vmatpush2.msra.mxu0 0.0
      %664 = vmatprep.subr.mxu0 0.0
      %665 = vmatpush2.msra.mxu0 0.0
      %666 = vmatprep.subr.mxu0 0.0
      %667 = vmatpush2.msra.mxu0 0.0
      %668 = vmatprep.subr.mxu0 0.0
      %669 = vmatpush2.msra.mxu0 0.0
      %670 = vmatprep.subr.mxu0 0.0
      %671 = vmatpush2.msra.mxu0 0.0
      %672 = vmatprep.subr.mxu0 0.0
      %673 = vmatpush2.msra.mxu0 0.0
      %674 = vmatprep.subr.mxu0 0.0
      %675 = vmatpush2.msra.mxu0 0.0
      %676 = vmatprep.mubr.f32.mxu0 0.0
      %677 = vmatmul.mubr.f32.gmra.mxu0 %v376
      %v678 = vpop.f32.mrf.mxu0
      %v679 = vadd.f32 0.0, %v678
      %v680 = vpop.f32.mrf.mxu0
      %v681 = vadd.f32 0.0, %v680
      %682 = vmatprep.mubr.f32.mxu0 0.0
      %683 = vmatmul.mubr.f32.gmra.mxu0 %v379
      %v684 = vpop.f32.mrf.mxu0
      %v685 = vadd.f32 0.0, %v684
      %v686 = vpop.f32.mrf.mxu0
      %v687 = vadd.f32 0.0, %v686
      %688 = vdwg.mxu0
      %v690 = vsel %vm374, %v225, 0
      %v693 = vsel %vm374, %v226, 0
      %695 = vmatprep.subr.mxu0 0.0
      %696 = vmatpush1.msra.mxu0 0.0
      %697 = vmatprep.subr.mxu0 0.0
      %698 = vmatpush1.msra.mxu0 0.0
      %699 = vmatprep.subr.mxu0 0.0
      %700 = vmatpush1.msra.mxu0 0.0
      %701 = vmatprep.subr.mxu0 0.0
      %702 = vmatpush1.msra.mxu0 0.0
      %703 = vmatprep.subr.mxu0 0.0
      %704 = vmatpush1.msra.mxu0 0.0
      %705 = vmatprep.subr.mxu0 0.0
      %706 = vmatpush1.msra.mxu0 0.0
      %707 = vmatprep.subr.mxu0 0.0
      %708 = vmatpush1.msra.mxu0 0.0
      %709 = vmatprep.subr.mxu0 0.0
      %710 = vmatpush1.msra.mxu0 0.0
      %711 = vmatprep.subr.mxu0 %v292
      %712 = vmatpush1.msra.mxu0 %v291
      %713 = vmatprep.subr.mxu0 %v284
      %714 = vmatpush1.msra.mxu0 %v283
      %715 = vmatprep.subr.mxu0 %v276
      %716 = vmatpush1.msra.mxu0 %v275
      %717 = vmatprep.subr.mxu0 %v268
      %718 = vmatpush1.msra.mxu0 %v267
      %719 = vmatprep.subr.mxu0 %v260
      %720 = vmatpush1.msra.mxu0 %v259
      %721 = vmatprep.subr.mxu0 %v252
      %722 = vmatpush1.msra.mxu0 %v251
      %723 = vmatprep.subr.mxu0 %v244
      %724 = vmatpush1.msra.mxu0 %v243
      %725 = vmatprep.subr.mxu0 %v236
      %726 = vmatpush1.msra.mxu0 %v235
      %727 = vmatprep.subr.mxu0 0.0
      %728 = vmatpush2.msra.mxu0 0.0
      %729 = vmatprep.subr.mxu0 0.0
      %730 = vmatpush2.msra.mxu0 0.0
      %731 = vmatprep.subr.mxu0 0.0
      %732 = vmatpush2.msra.mxu0 0.0
      %733 = vmatprep.subr.mxu0 0.0
      %734 = vmatpush2.msra.mxu0 0.0
      %735 = vmatprep.subr.mxu0 0.0
      %736 = vmatpush2.msra.mxu0 0.0
      %737 = vmatprep.subr.mxu0 0.0
      %738 = vmatpush2.msra.mxu0 0.0
      %739 = vmatprep.subr.mxu0 0.0
      %740 = vmatpush2.msra.mxu0 0.0
      %741 = vmatprep.subr.mxu0 0.0
      %742 = vmatpush2.msra.mxu0 0.0
      %743 = vmatprep.subr.mxu0 0.0
      %744 = vmatpush2.msra.mxu0 0.0
      %745 = vmatprep.subr.mxu0 0.0
      %746 = vmatpush2.msra.mxu0 0.0
      %747 = vmatprep.subr.mxu0 0.0
      %748 = vmatpush2.msra.mxu0 0.0
      %749 = vmatprep.subr.mxu0 0.0
      %750 = vmatpush2.msra.mxu0 0.0
      %751 = vmatprep.subr.mxu0 0.0
      %752 = vmatpush2.msra.mxu0 0.0
      %753 = vmatprep.subr.mxu0 0.0
      %754 = vmatpush2.msra.mxu0 0.0
      %755 = vmatprep.subr.mxu0 0.0
      %756 = vmatpush2.msra.mxu0 0.0
      %757 = vmatprep.subr.mxu0 0.0
      %758 = vmatpush2.msra.mxu0 0.0
      %759 = vmatprep.mubr.f32.mxu0 0.0
      %760 = vmatmul.mubr.f32.gmra.mxu0 %v690
      %v761 = vpop.f32.mrf.mxu0
      %v762 = vadd.f32 %v448, %v761
      %v763 = vpop.f32.mrf.mxu0
      %v764 = vadd.f32 %v450, %v763
      %765 = vmatprep.mubr.f32.mxu0 0.0
      %766 = vmatmul.mubr.f32.gmra.mxu0 %v693
      %v767 = vpop.f32.mrf.mxu0
      %v768 = vadd.f32 %v454, %v767
      %v769 = vpop.f32.mrf.mxu0
      %v770 = vadd.f32 %v456, %v769
      %771 = vdwg.mxu0
      %772 = vmatprep.subr.mxu0 0.0
      %773 = vmatpush1.msra.mxu0 0.0
      %774 = vmatprep.subr.mxu0 0.0
      %775 = vmatpush1.msra.mxu0 0.0
      %776 = vmatprep.subr.mxu0 0.0
      %777 = vmatpush1.msra.mxu0 0.0
      %778 = vmatprep.subr.mxu0 0.0
      %779 = vmatpush1.msra.mxu0 0.0
      %780 = vmatprep.subr.mxu0 0.0
      %781 = vmatpush1.msra.mxu0 0.0
      %782 = vmatprep.subr.mxu0 0.0
      %783 = vmatpush1.msra.mxu0 0.0
      %784 = vmatprep.subr.mxu0 0.0
      %785 = vmatpush1.msra.mxu0 0.0
      %786 = vmatprep.subr.mxu0 0.0
      %787 = vmatpush1.msra.mxu0 0.0
      %788 = vmatprep.subr.mxu0 %v294
      %789 = vmatpush1.msra.mxu0 %v293
      %790 = vmatprep.subr.mxu0 %v286
      %791 = vmatpush1.msra.mxu0 %v285
      %792 = vmatprep.subr.mxu0 %v278
      %793 = vmatpush1.msra.mxu0 %v277
      %794 = vmatprep.subr.mxu0 %v270
      %795 = vmatpush1.msra.mxu0 %v269
      %796 = vmatprep.subr.mxu0 %v262
      %797 = vmatpush1.msra.mxu0 %v261
      %798 = vmatprep.subr.mxu0 %v254
      %799 = vmatpush1.msra.mxu0 %v253
      %800 = vmatprep.subr.mxu0 %v246
      %801 = vmatpush1.msra.mxu0 %v245
      %802 = vmatprep.subr.mxu0 %v238
      %803 = vmatpush1.msra.mxu0 %v237
      %804 = vmatprep.subr.mxu0 0.0
      %805 = vmatpush2.msra.mxu0 0.0
      %806 = vmatprep.subr.mxu0 0.0
      %807 = vmatpush2.msra.mxu0 0.0
      %808 = vmatprep.subr.mxu0 0.0
      %809 = vmatpush2.msra.mxu0 0.0
      %810 = vmatprep.subr.mxu0 0.0
      %811 = vmatpush2.msra.mxu0 0.0
      %812 = vmatprep.subr.mxu0 0.0
      %813 = vmatpush2.msra.mxu0 0.0
      %814 = vmatprep.subr.mxu0 0.0
      %815 = vmatpush2.msra.mxu0 0.0
      %816 = vmatprep.subr.mxu0 0.0
      %817 = vmatpush2.msra.mxu0 0.0
      %818 = vmatprep.subr.mxu0 0.0
      %819 = vmatpush2.msra.mxu0 0.0
      %820 = vmatprep.subr.mxu0 0.0
      %821 = vmatpush2.msra.mxu0 0.0
      %822 = vmatprep.subr.mxu0 0.0
      %823 = vmatpush2.msra.mxu0 0.0
      %824 = vmatprep.subr.mxu0 0.0
      %825 = vmatpush2.msra.mxu0 0.0
      %826 = vmatprep.subr.mxu0 0.0
      %827 = vmatpush2.msra.mxu0 0.0
      %828 = vmatprep.subr.mxu0 0.0
      %829 = vmatpush2.msra.mxu0 0.0
      %830 = vmatprep.subr.mxu0 0.0
      %831 = vmatpush2.msra.mxu0 0.0
      %832 = vmatprep.subr.mxu0 0.0
      %833 = vmatpush2.msra.mxu0 0.0
      %834 = vmatprep.subr.mxu0 0.0
      %835 = vmatpush2.msra.mxu0 0.0
      %836 = vmatprep.mubr.f32.mxu0 0.0
      %837 = vmatmul.mubr.f32.gmra.mxu0 %v690
      %v838 = vpop.f32.mrf.mxu0
      %v839 = vadd.f32 %v525, %v838
      %v840 = vpop.f32.mrf.mxu0
      %v841 = vadd.f32 %v527, %v840
      %842 = vmatprep.mubr.f32.mxu0 0.0
      %843 = vmatmul.mubr.f32.gmra.mxu0 %v693
      %v844 = vpop.f32.mrf.mxu0
      %v845 = vadd.f32 %v531, %v844
      %v846 = vpop.f32.mrf.mxu0
      %v847 = vadd.f32 %v533, %v846
      %848 = vdwg.mxu0
      %849 = vmatprep.subr.mxu0 0.0
      %850 = vmatpush1.msra.mxu0 0.0
      %851 = vmatprep.subr.mxu0 0.0
      %852 = vmatpush1.msra.mxu0 0.0
      %853 = vmatprep.subr.mxu0 0.0
      %854 = vmatpush1.msra.mxu0 0.0
      %855 = vmatprep.subr.mxu0 0.0
      %856 = vmatpush1.msra.mxu0 0.0
      %857 = vmatprep.subr.mxu0 0.0
      %858 = vmatpush1.msra.mxu0 0.0
      %859 = vmatprep.subr.mxu0 0.0
      %860 = vmatpush1.msra.mxu0 0.0
      %861 = vmatprep.subr.mxu0 0.0
      %862 = vmatpush1.msra.mxu0 0.0
      %863 = vmatprep.subr.mxu0 0.0
      %864 = vmatpush1.msra.mxu0 0.0
      %865 = vmatprep.subr.mxu0 %v296
      %866 = vmatpush1.msra.mxu0 %v295
      %867 = vmatprep.subr.mxu0 %v288
      %868 = vmatpush1.msra.mxu0 %v287
      %869 = vmatprep.subr.mxu0 %v280
      %870 = vmatpush1.msra.mxu0 %v279
      %871 = vmatprep.subr.mxu0 %v272
      %872 = vmatpush1.msra.mxu0 %v271
      %873 = vmatprep.subr.mxu0 %v264
      %874 = vmatpush1.msra.mxu0 %v263
      %875 = vmatprep.subr.mxu0 %v256
      %876 = vmatpush1.msra.mxu0 %v255
      %877 = vmatprep.subr.mxu0 %v248
      %878 = vmatpush1.msra.mxu0 %v247
      %879 = vmatprep.subr.mxu0 %v240
      %880 = vmatpush1.msra.mxu0 %v239
      %881 = vmatprep.subr.mxu0 0.0
      %882 = vmatpush2.msra.mxu0 0.0
      %883 = vmatprep.subr.mxu0 0.0
      %884 = vmatpush2.msra.mxu0 0.0
      %885 = vmatprep.subr.mxu0 0.0
      %886 = vmatpush2.msra.mxu0 0.0
      %887 = vmatprep.subr.mxu0 0.0
      %888 = vmatpush2.msra.mxu0 0.0
      %889 = vmatprep.subr.mxu0 0.0
      %890 = vmatpush2.msra.mxu0 0.0
      %891 = vmatprep.subr.mxu0 0.0
      %892 = vmatpush2.msra.mxu0 0.0
      %893 = vmatprep.subr.mxu0 0.0
      %894 = vmatpush2.msra.mxu0 0.0
      %895 = vmatprep.subr.mxu0 0.0
      %896 = vmatpush2.msra.mxu0 0.0
      %897 = vmatprep.subr.mxu0 0.0
      %898 = vmatpush2.msra.mxu0 0.0
      %899 = vmatprep.subr.mxu0 0.0
      %900 = vmatpush2.msra.mxu0 0.0
      %901 = vmatprep.subr.mxu0 0.0
      %902 = vmatpush2.msra.mxu0 0.0
      %903 = vmatprep.subr.mxu0 0.0
      %904 = vmatpush2.msra.mxu0 0.0
      %905 = vmatprep.subr.mxu0 0.0
      %906 = vmatpush2.msra.mxu0 0.0
      %907 = vmatprep.subr.mxu0 0.0
      %908 = vmatpush2.msra.mxu0 0.0
      %909 = vmatprep.subr.mxu0 0.0
      %910 = vmatpush2.msra.mxu0 0.0
      %911 = vmatprep.subr.mxu0 0.0
      %912 = vmatpush2.msra.mxu0 0.0
      %913 = vmatprep.mubr.f32.mxu0 0.0
      %914 = vmatmul.mubr.f32.gmra.mxu0 %v690
      %v915 = vpop.f32.mrf.mxu0
      %v916 = vadd.f32 %v602, %v915
      %v917 = vpop.f32.mrf.mxu0
      %v918 = vadd.f32 %v604, %v917
      %919 = vmatprep.mubr.f32.mxu0 0.0
      %920 = vmatmul.mubr.f32.gmra.mxu0 %v693
      %v921 = vpop.f32.mrf.mxu0
      %v922 = vadd.f32 %v608, %v921
      %v923 = vpop.f32.mrf.mxu0
      %v924 = vadd.f32 %v610, %v923
      %925 = vdwg.mxu0
      %926 = vmatprep.subr.mxu0 0.0
      %927 = vmatpush1.msra.mxu0 0.0
      %928 = vmatprep.subr.mxu0 0.0
      %929 = vmatpush1.msra.mxu0 0.0
      %930 = vmatprep.subr.mxu0 0.0
      %931 = vmatpush1.msra.mxu0 0.0
      %932 = vmatprep.subr.mxu0 0.0
      %933 = vmatpush1.msra.mxu0 0.0
      %934 = vmatprep.subr.mxu0 0.0
      %935 = vmatpush1.msra.mxu0 0.0
      %936 = vmatprep.subr.mxu0 0.0
      %937 = vmatpush1.msra.mxu0 0.0
      %938 = vmatprep.subr.mxu0 0.0
      %939 = vmatpush1.msra.mxu0 0.0
      %940 = vmatprep.subr.mxu0 0.0
      %941 = vmatpush1.msra.mxu0 0.0
      %942 = vmatprep.subr.mxu0 %v298
      %943 = vmatpush1.msra.mxu0 %v297
      %944 = vmatprep.subr.mxu0 %v290
      %945 = vmatpush1.msra.mxu0 %v289
      %946 = vmatprep.subr.mxu0 %v282
      %947 = vmatpush1.msra.mxu0 %v281
      %948 = vmatprep.subr.mxu0 %v274
      %949 = vmatpush1.msra.mxu0 %v273
      %950 = vmatprep.subr.mxu0 %v266
      %951 = vmatpush1.msra.mxu0 %v265
      %952 = vmatprep.subr.mxu0 %v258
      %953 = vmatpush1.msra.mxu0 %v257
      %954 = vmatprep.subr.mxu0 %v250
      %955 = vmatpush1.msra.mxu0 %v249
      %956 = vmatprep.subr.mxu0 %v242
      %957 = vmatpush1.msra.mxu0 %v241
      %958 = vmatprep.subr.mxu0 0.0
      %959 = vmatpush2.msra.mxu0 0.0
      %960 = vmatprep.subr.mxu0 0.0
      %961 = vmatpush2.msra.mxu0 0.0
      %962 = vmatprep.subr.mxu0 0.0
      %963 = vmatpush2.msra.mxu0 0.0
      %964 = vmatprep.subr.mxu0 0.0
      %965 = vmatpush2.msra.mxu0 0.0
      %966 = vmatprep.subr.mxu0 0.0
      %967 = vmatpush2.msra.mxu0 0.0
      %968 = vmatprep.subr.mxu0 0.0
      %969 = vmatpush2.msra.mxu0 0.0
      %970 = vmatprep.subr.mxu0 0.0
      %971 = vmatpush2.msra.mxu0 0.0
      %972 = vmatprep.subr.mxu0 0.0
      %973 = vmatpush2.msra.mxu0 0.0
      %974 = vmatprep.subr.mxu0 0.0
      %975 = vmatpush2.msra.mxu0 0.0
      %976 = vmatprep.subr.mxu0 0.0
      %977 = vmatpush2.msra.mxu0 0.0
      %978 = vmatprep.subr.mxu0 0.0
      %979 = vmatpush2.msra.mxu0 0.0
      %980 = vmatprep.subr.mxu0 0.0
      %981 = vmatpush2.msra.mxu0 0.0
      %982 = vmatprep.subr.mxu0 0.0
      %983 = vmatpush2.msra.mxu0 0.0
      %984 = vmatprep.subr.mxu0 0.0
      %985 = vmatpush2.msra.mxu0 0.0
      %986 = vmatprep.subr.mxu0 0.0
      %987 = vmatpush2.msra.mxu0 0.0
      %988 = vmatprep.subr.mxu0 0.0
      %989 = vmatpush2.msra.mxu0 0.0
      %990 = vmatprep.mubr.f32.mxu0 0.0
      %991 = vmatmul.mubr.f32.gmra.mxu0 %v690
      %v992 = vpop.f32.mrf.mxu0
      %v993 = vadd.f32 %v679, %v992
      %v994 = vpop.f32.mrf.mxu0
      %v995 = vadd.f32 %v681, %v994
      %996 = vmatprep.mubr.f32.mxu0 0.0
      %997 = vmatmul.mubr.f32.gmra.mxu0 %v693
      %v998 = vpop.f32.mrf.mxu0
      %v999 = vadd.f32 %v685, %v998
      %v1000 = vpop.f32.mrf.mxu0
      %v1001 = vadd.f32 %v687, %v1000
      %1002 = vdwg.mxu0
      %v1003 = vrot.slane %v225, 1
      %v1004 = vrot.slane %v226, 1
      %vm1005 = vcmp.lt.s32.totalorder %v228, 7
      %v1006 = vsel %vm1005, %v1003, %v1004
      %v1007 = vsel %vm1005, %v1004, %v1003
      %v1008 = vsel %vm232, 1, 0
      %v1009 = vsel %vm233, 1, 0
      %vm1010 = vcmp.eq.s32.totalorder %v1008, 1
      %vm1011 = vcmp.eq.s32.totalorder %v1009, 1
      %v1012 = vsel %vm1010, 0.0, %v1006
      %v1013 = vsel %vm1011, 0.0, %v1007
      %s1014 = scalar_lea.vmem %s1, 1024
      %v1015 = vld [vmem:[%s1014] sm:$0xff]
      %v1016 = vld [vmem:[%s1014 + $0x8] sm:$0xff]
      %v1017 = vld [vmem:[%s1014 + $0x10] sm:$0xff]
      %v1018 = vld [vmem:[%s1014 + $0x18] sm:$0xff]
      %v1019 = vld [vmem:[%s1014 + $0x20] sm:$0xff]
      %v1020 = vld [vmem:[%s1014 + $0x28] sm:$0xff]
      %v1021 = vld [vmem:[%s1014 + $0x30] sm:$0xff]
      %v1022 = vld [vmem:[%s1014 + $0x38] sm:$0xff]
      %v1023 = vld [vmem:[%s1014 + $0x40] sm:$0xff]
      %v1024 = vld [vmem:[%s1014 + $0x48] sm:$0xff]
      %v1025 = vld [vmem:[%s1014 + $0x50] sm:$0xff]
      %v1026 = vld [vmem:[%s1014 + $0x58] sm:$0xff]
      %v1027 = vld [vmem:[%s1014 + $0x60] sm:$0xff]
      %v1028 = vld [vmem:[%s1014 + $0x68] sm:$0xff]
      %v1029 = vld [vmem:[%s1014 + $0x70] sm:$0xff]
      %v1030 = vld [vmem:[%s1014 + $0x78] sm:$0xff]
      %v1031 = vld [vmem:[%s1014 + $0x80] sm:$0xff]
      %v1032 = vld [vmem:[%s1014 + $0x88] sm:$0xff]
      %v1033 = vld [vmem:[%s1014 + $0x90] sm:$0xff]
      %v1034 = vld [vmem:[%s1014 + $0x98] sm:$0xff]
      %v1035 = vld [vmem:[%s1014 + $0xa0] sm:$0xff]
      %v1036 = vld [vmem:[%s1014 + $0xa8] sm:$0xff]
      %v1037 = vld [vmem:[%s1014 + $0xb0] sm:$0xff]
      %v1038 = vld [vmem:[%s1014 + $0xb8] sm:$0xff]
      %v1039 = vld [vmem:[%s1014 + $0xc0] sm:$0xff]
      %v1040 = vld [vmem:[%s1014 + $0xc8] sm:$0xff]
      %v1041 = vld [vmem:[%s1014 + $0xd0] sm:$0xff]
      %v1042 = vld [vmem:[%s1014 + $0xd8] sm:$0xff]
      %v1043 = vld [vmem:[%s1014 + $0xe0] sm:$0xff]
      %v1044 = vld [vmem:[%s1014 + $0xe8] sm:$0xff]
      %v1045 = vld [vmem:[%s1014 + $0xf0] sm:$0xff]
      %v1046 = vld [vmem:[%s1014 + $0xf8] sm:$0xff]
      %v1047 = vld [vmem:[%s1014 + $0x100] sm:$0xff]
      %v1048 = vld [vmem:[%s1014 + $0x108] sm:$0xff]
      %v1049 = vld [vmem:[%s1014 + $0x110] sm:$0xff]
      %v1050 = vld [vmem:[%s1014 + $0x118] sm:$0xff]
      %v1051 = vld [vmem:[%s1014 + $0x120] sm:$0xff]
      %v1052 = vld [vmem:[%s1014 + $0x128] sm:$0xff]
      %v1053 = vld [vmem:[%s1014 + $0x130] sm:$0xff]
      %v1054 = vld [vmem:[%s1014 + $0x138] sm:$0xff]
      %v1055 = vld [vmem:[%s1014 + $0x140] sm:$0xff]
      %v1056 = vld [vmem:[%s1014 + $0x148] sm:$0xff]
      %v1057 = vld [vmem:[%s1014 + $0x150] sm:$0xff]
      %v1058 = vld [vmem:[%s1014 + $0x158] sm:$0xff]
      %v1059 = vld [vmem:[%s1014 + $0x160] sm:$0xff]
      %v1060 = vld [vmem:[%s1014 + $0x168] sm:$0xff]
      %v1061 = vld [vmem:[%s1014 + $0x170] sm:$0xff]
      %v1062 = vld [vmem:[%s1014 + $0x178] sm:$0xff]
      %v1063 = vld [vmem:[%s1014 + $0x180] sm:$0xff]
      %v1064 = vld [vmem:[%s1014 + $0x188] sm:$0xff]
      %v1065 = vld [vmem:[%s1014 + $0x190] sm:$0xff]
      %v1066 = vld [vmem:[%s1014 + $0x198] sm:$0xff]
      %v1067 = vld [vmem:[%s1014 + $0x1a0] sm:$0xff]
      %v1068 = vld [vmem:[%s1014 + $0x1a8] sm:$0xff]
      %v1069 = vld [vmem:[%s1014 + $0x1b0] sm:$0xff]
      %v1070 = vld [vmem:[%s1014 + $0x1b8] sm:$0xff]
      %v1071 = vld [vmem:[%s1014 + $0x1c0] sm:$0xff]
      %v1072 = vld [vmem:[%s1014 + $0x1c8] sm:$0xff]
      %v1073 = vld [vmem:[%s1014 + $0x1d0] sm:$0xff]
      %v1074 = vld [vmem:[%s1014 + $0x1d8] sm:$0xff]
      %v1075 = vld [vmem:[%s1014 + $0x1e0] sm:$0xff]
      %v1076 = vld [vmem:[%s1014 + $0x1e8] sm:$0xff]
      %v1077 = vld [vmem:[%s1014 + $0x1f0] sm:$0xff]
      %v1078 = vld [vmem:[%s1014 + $0x1f8] sm:$0xff]
      %v1080 = vsel %vm374, %v1012, 0
      %v1083 = vsel %vm374, %v1013, 0
      %1085 = vmatprep.subr.mxu0 0.0
      %1086 = vmatpush1.msra.mxu0 0.0
      %1087 = vmatprep.subr.mxu0 0.0
      %1088 = vmatpush1.msra.mxu0 0.0
      %1089 = vmatprep.subr.mxu0 0.0
      %1090 = vmatpush1.msra.mxu0 0.0
      %1091 = vmatprep.subr.mxu0 0.0
      %1092 = vmatpush1.msra.mxu0 0.0
      %1093 = vmatprep.subr.mxu0 0.0
      %1094 = vmatpush1.msra.mxu0 0.0
      %1095 = vmatprep.subr.mxu0 0.0
      %1096 = vmatpush1.msra.mxu0 0.0
      %1097 = vmatprep.subr.mxu0 0.0
      %1098 = vmatpush1.msra.mxu0 0.0
      %1099 = vmatprep.subr.mxu0 0.0
      %1100 = vmatpush1.msra.mxu0 0.0
      %1101 = vmatprep.subr.mxu0 %v1072
      %1102 = vmatpush1.msra.mxu0 %v1071
      %1103 = vmatprep.subr.mxu0 %v1064
      %1104 = vmatpush1.msra.mxu0 %v1063
      %1105 = vmatprep.subr.mxu0 %v1056
      %1106 = vmatpush1.msra.mxu0 %v1055
      %1107 = vmatprep.subr.mxu0 %v1048
      %1108 = vmatpush1.msra.mxu0 %v1047
      %1109 = vmatprep.subr.mxu0 %v1040
      %1110 = vmatpush1.msra.mxu0 %v1039
      %1111 = vmatprep.subr.mxu0 %v1032
      %1112 = vmatpush1.msra.mxu0 %v1031
      %1113 = vmatprep.subr.mxu0 %v1024
      %1114 = vmatpush1.msra.mxu0 %v1023
      %1115 = vmatprep.subr.mxu0 %v1016
      %1116 = vmatpush1.msra.mxu0 %v1015
      %1117 = vmatprep.subr.mxu0 0.0
      %1118 = vmatpush2.msra.mxu0 0.0
      %1119 = vmatprep.subr.mxu0 0.0
      %1120 = vmatpush2.msra.mxu0 0.0
      %1121 = vmatprep.subr.mxu0 0.0
      %1122 = vmatpush2.msra.mxu0 0.0
      %1123 = vmatprep.subr.mxu0 0.0
      %1124 = vmatpush2.msra.mxu0 0.0
      %1125 = vmatprep.subr.mxu0 0.0
      %1126 = vmatpush2.msra.mxu0 0.0
      %1127 = vmatprep.subr.mxu0 0.0
      %1128 = vmatpush2.msra.mxu0 0.0
      %1129 = vmatprep.subr.mxu0 0.0
      %1130 = vmatpush2.msra.mxu0 0.0
      %1131 = vmatprep.subr.mxu0 0.0
      %1132 = vmatpush2.msra.mxu0 0.0
      %1133 = vmatprep.subr.mxu0 0.0
      %1134 = vmatpush2.msra.mxu0 0.0
      %1135 = vmatprep.subr.mxu0 0.0
      %1136 = vmatpush2.msra.mxu0 0.0
      %1137 = vmatprep.subr.mxu0 0.0
      %1138 = vmatpush2.msra.mxu0 0.0
      %1139 = vmatprep.subr.mxu0 0.0
      %1140 = vmatpush2.msra.mxu0 0.0
      %1141 = vmatprep.subr.mxu0 0.0
      %1142 = vmatpush2.msra.mxu0 0.0
      %1143 = vmatprep.subr.mxu0 0.0
      %1144 = vmatpush2.msra.mxu0 0.0
      %1145 = vmatprep.subr.mxu0 0.0
      %1146 = vmatpush2.msra.mxu0 0.0
      %1147 = vmatprep.subr.mxu0 0.0
      %1148 = vmatpush2.msra.mxu0 0.0
      %1149 = vmatprep.mubr.f32.mxu0 0.0
      %1150 = vmatmul.mubr.f32.gmra.mxu0 %v1080
      %v1151 = vpop.f32.mrf.mxu0
      %v1152 = vadd.f32 0.0, %v1151
      %v1153 = vpop.f32.mrf.mxu0
      %v1154 = vadd.f32 0.0, %v1153
      %1155 = vmatprep.mubr.f32.mxu0 0.0
      %1156 = vmatmul.mubr.f32.gmra.mxu0 %v1083
      %v1157 = vpop.f32.mrf.mxu0
      %v1158 = vadd.f32 0.0, %v1157
      %v1159 = vpop.f32.mrf.mxu0
      %v1160 = vadd.f32 0.0, %v1159
      %1161 = vdwg.mxu0
      %1162 = vmatprep.subr.mxu0 0.0
      %1163 = vmatpush1.msra.mxu0 0.0
      %1164 = vmatprep.subr.mxu0 0.0
      %1165 = vmatpush1.msra.mxu0 0.0
      %1166 = vmatprep.subr.mxu0 0.0
      %1167 = vmatpush1.msra.mxu0 0.0
      %1168 = vmatprep.subr.mxu0 0.0
      %1169 = vmatpush1.msra.mxu0 0.0
      %1170 = vmatprep.subr.mxu0 0.0
      %1171 = vmatpush1.msra.mxu0 0.0
      %1172 = vmatprep.subr.mxu0 0.0
      %1173 = vmatpush1.msra.mxu0 0.0
      %1174 = vmatprep.subr.mxu0 0.0
      %1175 = vmatpush1.msra.mxu0 0.0
      %1176 = vmatprep.subr.mxu0 0.0
      %1177 = vmatpush1.msra.mxu0 0.0
      %1178 = vmatprep.subr.mxu0 %v1074
      %1179 = vmatpush1.msra.mxu0 %v1073
      %1180 = vmatprep.subr.mxu0 %v1066
      %1181 = vmatpush1.msra.mxu0 %v1065
      %1182 = vmatprep.subr.mxu0 %v1058
      %1183 = vmatpush1.msra.mxu0 %v1057
      %1184 = vmatprep.subr.mxu0 %v1050
      %1185 = vmatpush1.msra.mxu0 %v1049
      %1186 = vmatprep.subr.mxu0 %v1042
      %1187 = vmatpush1.msra.mxu0 %v1041
      %1188 = vmatprep.subr.mxu0 %v1034
      %1189 = vmatpush1.msra.mxu0 %v1033
      %1190 = vmatprep.subr.mxu0 %v1026
      %1191 = vmatpush1.msra.mxu0 %v1025
      %1192 = vmatprep.subr.mxu0 %v1018
      %1193 = vmatpush1.msra.mxu0 %v1017
      %1194 = vmatprep.subr.mxu0 0.0
      %1195 = vmatpush2.msra.mxu0 0.0
      %1196 = vmatprep.subr.mxu0 0.0
      %1197 = vmatpush2.msra.mxu0 0.0
      %1198 = vmatprep.subr.mxu0 0.0
      %1199 = vmatpush2.msra.mxu0 0.0
      %1200 = vmatprep.subr.mxu0 0.0
      %1201 = vmatpush2.msra.mxu0 0.0
      %1202 = vmatprep.subr.mxu0 0.0
      %1203 = vmatpush2.msra.mxu0 0.0
      %1204 = vmatprep.subr.mxu0 0.0
      %1205 = vmatpush2.msra.mxu0 0.0
      %1206 = vmatprep.subr.mxu0 0.0
      %1207 = vmatpush2.msra.mxu0 0.0
      %1208 = vmatprep.subr.mxu0 0.0
      %1209 = vmatpush2.msra.mxu0 0.0
      %1210 = vmatprep.subr.mxu0 0.0
      %1211 = vmatpush2.msra.mxu0 0.0
      %1212 = vmatprep.subr.mxu0 0.0
      %1213 = vmatpush2.msra.mxu0 0.0
      %1214 = vmatprep.subr.mxu0 0.0
      %1215 = vmatpush2.msra.mxu0 0.0
      %1216 = vmatprep.subr.mxu0 0.0
      %1217 = vmatpush2.msra.mxu0 0.0
      %1218 = vmatprep.subr.mxu0 0.0
      %1219 = vmatpush2.msra.mxu0 0.0
      %1220 = vmatprep.subr.mxu0 0.0
      %1221 = vmatpush2.msra.mxu0 0.0
      %1222 = vmatprep.subr.mxu0 0.0
      %1223 = vmatpush2.msra.mxu0 0.0
      %1224 = vmatprep.subr.mxu0 0.0
      %1225 = vmatpush2.msra.mxu0 0.0
      %1226 = vmatprep.mubr.f32.mxu0 0.0
      %1227 = vmatmul.mubr.f32.gmra.mxu0 %v1080
      %v1228 = vpop.f32.mrf.mxu0
      %v1229 = vadd.f32 0.0, %v1228
      %v1230 = vpop.f32.mrf.mxu0
      %v1231 = vadd.f32 0.0, %v1230
      %1232 = vmatprep.mubr.f32.mxu0 0.0
      %1233 = vmatmul.mubr.f32.gmra.mxu0 %v1083
      %v1234 = vpop.f32.mrf.mxu0
      %v1235 = vadd.f32 0.0, %v1234
      %v1236 = vpop.f32.mrf.mxu0
      %v1237 = vadd.f32 0.0, %v1236
      %1238 = vdwg.mxu0
      %1239 = vmatprep.subr.mxu0 0.0
      %1240 = vmatpush1.msra.mxu0 0.0
      %1241 = vmatprep.subr.mxu0 0.0
      %1242 = vmatpush1.msra.mxu0 0.0
      %1243 = vmatprep.subr.mxu0 0.0
      %1244 = vmatpush1.msra.mxu0 0.0
      %1245 = vmatprep.subr.mxu0 0.0
      %1246 = vmatpush1.msra.mxu0 0.0
      %1247 = vmatprep.subr.mxu0 0.0
      %1248 = vmatpush1.msra.mxu0 0.0
      %1249 = vmatprep.subr.mxu0 0.0
      %1250 = vmatpush1.msra.mxu0 0.0
      %1251 = vmatprep.subr.mxu0 0.0
      %1252 = vmatpush1.msra.mxu0 0.0
      %1253 = vmatprep.subr.mxu0 0.0
      %1254 = vmatpush1.msra.mxu0 0.0
      %1255 = vmatprep.subr.mxu0 %v1076
      %1256 = vmatpush1.msra.mxu0 %v1075
      %1257 = vmatprep.subr.mxu0 %v1068
      %1258 = vmatpush1.msra.mxu0 %v1067
      %1259 = vmatprep.subr.mxu0 %v1060
      %1260 = vmatpush1.msra.mxu0 %v1059
      %1261 = vmatprep.subr.mxu0 %v1052
      %1262 = vmatpush1.msra.mxu0 %v1051
      %1263 = vmatprep.subr.mxu0 %v1044
      %1264 = vmatpush1.msra.mxu0 %v1043
      %1265 = vmatprep.subr.mxu0 %v1036
      %1266 = vmatpush1.msra.mxu0 %v1035
      %1267 = vmatprep.subr.mxu0 %v1028
      %1268 = vmatpush1.msra.mxu0 %v1027
      %1269 = vmatprep.subr.mxu0 %v1020
      %1270 = vmatpush1.msra.mxu0 %v1019
      %1271 = vmatprep.subr.mxu0 0.0
      %1272 = vmatpush2.msra.mxu0 0.0
      %1273 = vmatprep.subr.mxu0 0.0
      %1274 = vmatpush2.msra.mxu0 0.0
      %1275 = vmatprep.subr.mxu0 0.0
      %1276 = vmatpush2.msra.mxu0 0.0
      %1277 = vmatprep.subr.mxu0 0.0
      %1278 = vmatpush2.msra.mxu0 0.0
      %1279 = vmatprep.subr.mxu0 0.0
      %1280 = vmatpush2.msra.mxu0 0.0
      %1281 = vmatprep.subr.mxu0 0.0
      %1282 = vmatpush2.msra.mxu0 0.0
      %1283 = vmatprep.subr.mxu0 0.0
      %1284 = vmatpush2.msra.mxu0 0.0
      %1285 = vmatprep.subr.mxu0 0.0
      %1286 = vmatpush2.msra.mxu0 0.0
      %1287 = vmatprep.subr.mxu0 0.0
      %1288 = vmatpush2.msra.mxu0 0.0
      %1289 = vmatprep.subr.mxu0 0.0
      %1290 = vmatpush2.msra.mxu0 0.0
      %1291 = vmatprep.subr.mxu0 0.0
      %1292 = vmatpush2.msra.mxu0 0.0
      %1293 = vmatprep.subr.mxu0 0.0
      %1294 = vmatpush2.msra.mxu0 0.0
      %1295 = vmatprep.subr.mxu0 0.0
      %1296 = vmatpush2.msra.mxu0 0.0
      %1297 = vmatprep.subr.mxu0 0.0
      %1298 = vmatpush2.msra.mxu0 0.0
      %1299 = vmatprep.subr.mxu0 0.0
      %1300 = vmatpush2.msra.mxu0 0.0
      %1301 = vmatprep.subr.mxu0 0.0
      %1302 = vmatpush2.msra.mxu0 0.0
      %1303 = vmatprep.mubr.f32.mxu0 0.0
      %1304 = vmatmul.mubr.f32.gmra.mxu0 %v1080
      %v1305 = vpop.f32.mrf.mxu0
      %v1306 = vadd.f32 0.0, %v1305
      %v1307 = vpop.f32.mrf.mxu0
      %v1308 = vadd.f32 0.0, %v1307
      %1309 = vmatprep.mubr.f32.mxu0 0.0
      %1310 = vmatmul.mubr.f32.gmra.mxu0 %v1083
      %v1311 = vpop.f32.mrf.mxu0
      %v1312 = vadd.f32 0.0, %v1311
      %v1313 = vpop.f32.mrf.mxu0
      %v1314 = vadd.f32 0.0, %v1313
      %1315 = vdwg.mxu0
      %1316 = vmatprep.subr.mxu0 0.0
      %1317 = vmatpush1.msra.mxu0 0.0
      %1318 = vmatprep.subr.mxu0 0.0
      %1319 = vmatpush1.msra.mxu0 0.0
      %1320 = vmatprep.subr.mxu0 0.0
      %1321 = vmatpush1.msra.mxu0 0.0
      %1322 = vmatprep.subr.mxu0 0.0
      %1323 = vmatpush1.msra.mxu0 0.0
      %1324 = vmatprep.subr.mxu0 0.0
      %1325 = vmatpush1.msra.mxu0 0.0
      %1326 = vmatprep.subr.mxu0 0.0
      %1327 = vmatpush1.msra.mxu0 0.0
      %1328 = vmatprep.subr.mxu0 0.0
      %1329 = vmatpush1.msra.mxu0 0.0
      %1330 = vmatprep.subr.mxu0 0.0
      %1331 = vmatpush1.msra.mxu0 0.0
      %1332 = vmatprep.subr.mxu0 %v1078
      %1333 = vmatpush1.msra.mxu0 %v1077
      %1334 = vmatprep.subr.mxu0 %v1070
      %1335 = vmatpush1.msra.mxu0 %v1069
      %1336 = vmatprep.subr.mxu0 %v1062
      %1337 = vmatpush1.msra.mxu0 %v1061
      %1338 = vmatprep.subr.mxu0 %v1054
      %1339 = vmatpush1.msra.mxu0 %v1053
      %1340 = vmatprep.subr.mxu0 %v1046
      %1341 = vmatpush1.msra.mxu0 %v1045
      %1342 = vmatprep.subr.mxu0 %v1038
      %1343 = vmatpush1.msra.mxu0 %v1037
      %1344 = vmatprep.subr.mxu0 %v1030
      %1345 = vmatpush1.msra.mxu0 %v1029
      %1346 = vmatprep.subr.mxu0 %v1022
      %1347 = vmatpush1.msra.mxu0 %v1021
      %1348 = vmatprep.subr.mxu0 0.0
      %1349 = vmatpush2.msra.mxu0 0.0
      %1350 = vmatprep.subr.mxu0 0.0
      %1351 = vmatpush2.msra.mxu0 0.0
      %1352 = vmatprep.subr.mxu0 0.0
      %1353 = vmatpush2.msra.mxu0 0.0
      %1354 = vmatprep.subr.mxu0 0.0
      %1355 = vmatpush2.msra.mxu0 0.0
      %1356 = vmatprep.subr.mxu0 0.0
      %1357 = vmatpush2.msra.mxu0 0.0
      %1358 = vmatprep.subr.mxu0 0.0
      %1359 = vmatpush2.msra.mxu0 0.0
      %1360 = vmatprep.subr.mxu0 0.0
      %1361 = vmatpush2.msra.mxu0 0.0
      %1362 = vmatprep.subr.mxu0 0.0
      %1363 = vmatpush2.msra.mxu0 0.0
      %1364 = vmatprep.subr.mxu0 0.0
      %1365 = vmatpush2.msra.mxu0 0.0
      %1366 = vmatprep.subr.mxu0 0.0
      %1367 = vmatpush2.msra.mxu0 0.0
      %1368 = vmatprep.subr.mxu0 0.0
      %1369 = vmatpush2.msra.mxu0 0.0
      %1370 = vmatprep.subr.mxu0 0.0
      %1371 = vmatpush2.msra.mxu0 0.0
      %1372 = vmatprep.subr.mxu0 0.0
      %1373 = vmatpush2.msra.mxu0 0.0
      %1374 = vmatprep.subr.mxu0 0.0
      %1375 = vmatpush2.msra.mxu0 0.0
      %1376 = vmatprep.subr.mxu0 0.0
      %1377 = vmatpush2.msra.mxu0 0.0
      %1378 = vmatprep.subr.mxu0 0.0
      %1379 = vmatpush2.msra.mxu0 0.0
      %1380 = vmatprep.mubr.f32.mxu0 0.0
      %1381 = vmatmul.mubr.f32.gmra.mxu0 %v1080
      %v1382 = vpop.f32.mrf.mxu0
      %v1383 = vadd.f32 0.0, %v1382
      %v1384 = vpop.f32.mrf.mxu0
      %v1385 = vadd.f32 0.0, %v1384
      %1386 = vmatprep.mubr.f32.mxu0 0.0
      %1387 = vmatmul.mubr.f32.gmra.mxu0 %v1083
      %v1388 = vpop.f32.mrf.mxu0
      %v1389 = vadd.f32 0.0, %v1388
      %v1390 = vpop.f32.mrf.mxu0
      %v1391 = vadd.f32 0.0, %v1390
      %1392 = vdwg.mxu0
      %v1393 = vadd.f32 %v762, %v1152
      %v1394 = vadd.f32 %v764, %v1154
      %v1395 = vadd.f32 %v839, %v1229
      %v1396 = vadd.f32 %v841, %v1231
      %v1397 = vadd.f32 %v916, %v1306
      %v1398 = vadd.f32 %v918, %v1308
      %v1399 = vadd.f32 %v993, %v1383
      %v1400 = vadd.f32 %v995, %v1385
      %v1401 = vadd.f32 %v768, %v1158
      %v1402 = vadd.f32 %v770, %v1160
      %v1403 = vadd.f32 %v845, %v1235
      %v1404 = vadd.f32 %v847, %v1237
      %v1405 = vadd.f32 %v922, %v1312
      %v1406 = vadd.f32 %v924, %v1314
      %v1407 = vadd.f32 %v999, %v1389
      %v1408 = vadd.f32 %v1001, %v1391
      %v1409 = vld [vmem:[%s2] sm:$0xff]
      %v1411 = vlaneseq
      %v1412 = vshrl.u32 %v1411, 7
      %v1413 = vsub.s32 0, %v1412
      %v1414 = vrot.slane %v1409, %v1413
      %v1415 = vlaneseq
      %v1416 = vshrl.u32 %v1415, 7
      %v1417 = vsub.s32 1, %v1416
      %v1418 = vrot.slane %v1409, %v1417
      %v1419 = vlaneseq
      %v1420 = vshrl.u32 %v1419, 7
      %v1421 = vsub.s32 2, %v1420
      %v1422 = vrot.slane %v1409, %v1421
      %v1423 = vlaneseq
      %v1424 = vshrl.u32 %v1423, 7
      %v1425 = vsub.s32 3, %v1424
      %v1426 = vrot.slane %v1409, %v1425
      %v1427 = vlaneseq
      %v1428 = vshrl.u32 %v1427, 7
      %v1429 = vsub.s32 4, %v1428
      %v1430 = vrot.slane %v1409, %v1429
      %v1431 = vlaneseq
      %v1432 = vshrl.u32 %v1431, 7
      %v1433 = vsub.s32 5, %v1432
      %v1434 = vrot.slane %v1409, %v1433
      %v1435 = vlaneseq
      %v1436 = vshrl.u32 %v1435, 7
      %v1437 = vsub.s32 6, %v1436
      %v1438 = vrot.slane %v1409, %v1437
      %v1439 = vlaneseq
      %v1440 = vshrl.u32 %v1439, 7
      %v1441 = vsub.s32 7, %v1440
      %v1442 = vrot.slane %v1409, %v1441
      %v1451 = vadd.f32 %v1393, %v1414
      %v1452 = vadd.f32 %v1394, %v1418
      %v1453 = vadd.f32 %v1395, %v1422
      %v1454 = vadd.f32 %v1396, %v1426
      %v1455 = vadd.f32 %v1397, %v1430
      %v1456 = vadd.f32 %v1398, %v1434
      %v1457 = vadd.f32 %v1399, %v1438
      %v1458 = vadd.f32 %v1400, %v1442
      %v1459 = vadd.f32 %v1401, %v1414
      %v1460 = vadd.f32 %v1402, %v1418
      %v1461 = vadd.f32 %v1403, %v1422
      %v1462 = vadd.f32 %v1404, %v1426
      %v1463 = vadd.f32 %v1405, %v1430
      %v1464 = vadd.f32 %v1406, %v1434
      %v1465 = vadd.f32 %v1407, %v1438
      %v1466 = vadd.f32 %v1408, %v1442
      %v1467 = vmax.f32 %v1451, 0.0
      %v1468 = vmax.f32 %v1452, 0.0
      %v1469 = vmax.f32 %v1453, 0.0
      %v1470 = vmax.f32 %v1454, 0.0
      %v1471 = vmax.f32 %v1455, 0.0
      %v1472 = vmax.f32 %v1456, 0.0
      %v1473 = vmax.f32 %v1457, 0.0
      %v1474 = vmax.f32 %v1458, 0.0
      %v1475 = vmax.f32 %v1459, 0.0
      %v1476 = vmax.f32 %v1460, 0.0
      %v1477 = vmax.f32 %v1461, 0.0
      %v1478 = vmax.f32 %v1462, 0.0
      %v1479 = vmax.f32 %v1463, 0.0
      %v1480 = vmax.f32 %v1464, 0.0
      %v1481 = vmax.f32 %v1465, 0.0
      %v1482 = vmax.f32 %v1466, 0.0
      %s1483 = scalar_lea.vmem %s3, 1024
      %v1484 = vld [vmem:[%s1483] sm:$0xff]
      %v1485 = vld [vmem:[%s1483 + $0x8] sm:$0xff]
      %v1486 = vld [vmem:[%s1483 + $0x10] sm:$0xff]
      %v1487 = vld [vmem:[%s1483 + $0x18] sm:$0xff]
      %v1488 = vld [vmem:[%s1483 + $0x20] sm:$0xff]
      %v1489 = vld [vmem:[%s1483 + $0x28] sm:$0xff]
      %v1490 = vld [vmem:[%s1483 + $0x30] sm:$0xff]
      %v1491 = vld [vmem:[%s1483 + $0x38] sm:$0xff]
      %v1492 = vld [vmem:[%s1483 + $0x40] sm:$0xff]
      %v1493 = vld [vmem:[%s1483 + $0x48] sm:$0xff]
      %v1494 = vld [vmem:[%s1483 + $0x50] sm:$0xff]
      %v1495 = vld [vmem:[%s1483 + $0x58] sm:$0xff]
      %v1496 = vld [vmem:[%s1483 + $0x60] sm:$0xff]
      %v1497 = vld [vmem:[%s1483 + $0x68] sm:$0xff]
      %v1498 = vld [vmem:[%s1483 + $0x70] sm:$0xff]
      %v1499 = vld [vmem:[%s1483 + $0x78] sm:$0xff]
      %v1500 = vld [vmem:[%s1483 + $0x80] sm:$0xff]
      %v1501 = vld [vmem:[%s1483 + $0x88] sm:$0xff]
      %v1502 = vld [vmem:[%s1483 + $0x90] sm:$0xff]
      %v1503 = vld [vmem:[%s1483 + $0x98] sm:$0xff]
      %v1504 = vld [vmem:[%s1483 + $0xa0] sm:$0xff]
      %v1505 = vld [vmem:[%s1483 + $0xa8] sm:$0xff]
      %v1506 = vld [vmem:[%s1483 + $0xb0] sm:$0xff]
      %v1507 = vld [vmem:[%s1483 + $0xb8] sm:$0xff]
      %v1508 = vld [vmem:[%s1483 + $0xc0] sm:$0xff]
      %v1509 = vld [vmem:[%s1483 + $0xc8] sm:$0xff]
      %v1510 = vld [vmem:[%s1483 + $0xd0] sm:$0xff]
      %v1511 = vld [vmem:[%s1483 + $0xd8] sm:$0xff]
      %v1512 = vld [vmem:[%s1483 + $0xe0] sm:$0xff]
      %v1513 = vld [vmem:[%s1483 + $0xe8] sm:$0xff]
      %v1514 = vld [vmem:[%s1483 + $0xf0] sm:$0xff]
      %v1515 = vld [vmem:[%s1483 + $0xf8] sm:$0xff]
      %v1516 = vld [vmem:[%s1483 + $0x100] sm:$0xff]
      %v1517 = vld [vmem:[%s1483 + $0x108] sm:$0xff]
      %v1518 = vld [vmem:[%s1483 + $0x110] sm:$0xff]
      %v1519 = vld [vmem:[%s1483 + $0x118] sm:$0xff]
      %v1520 = vld [vmem:[%s1483 + $0x120] sm:$0xff]
      %v1521 = vld [vmem:[%s1483 + $0x128] sm:$0xff]
      %v1522 = vld [vmem:[%s1483 + $0x130] sm:$0xff]
      %v1523 = vld [vmem:[%s1483 + $0x138] sm:$0xff]
      %v1524 = vld [vmem:[%s1483 + $0x140] sm:$0xff]
      %v1525 = vld [vmem:[%s1483 + $0x148] sm:$0xff]
      %v1526 = vld [vmem:[%s1483 + $0x150] sm:$0xff]
      %v1527 = vld [vmem:[%s1483 + $0x158] sm:$0xff]
      %v1528 = vld [vmem:[%s1483 + $0x160] sm:$0xff]
      %v1529 = vld [vmem:[%s1483 + $0x168] sm:$0xff]
      %v1530 = vld [vmem:[%s1483 + $0x170] sm:$0xff]
      %v1531 = vld [vmem:[%s1483 + $0x178] sm:$0xff]
      %v1532 = vld [vmem:[%s1483 + $0x180] sm:$0xff]
      %v1533 = vld [vmem:[%s1483 + $0x188] sm:$0xff]
      %v1534 = vld [vmem:[%s1483 + $0x190] sm:$0xff]
      %v1535 = vld [vmem:[%s1483 + $0x198] sm:$0xff]
      %v1536 = vld [vmem:[%s1483 + $0x1a0] sm:$0xff]
      %v1537 = vld [vmem:[%s1483 + $0x1a8] sm:$0xff]
      %v1538 = vld [vmem:[%s1483 + $0x1b0] sm:$0xff]
      %v1539 = vld [vmem:[%s1483 + $0x1b8] sm:$0xff]
      %v1540 = vld [vmem:[%s1483 + $0x1c0] sm:$0xff]
      %v1541 = vld [vmem:[%s1483 + $0x1c8] sm:$0xff]
      %v1542 = vld [vmem:[%s1483 + $0x1d0] sm:$0xff]
      %v1543 = vld [vmem:[%s1483 + $0x1d8] sm:$0xff]
      %v1544 = vld [vmem:[%s1483 + $0x1e0] sm:$0xff]
      %v1545 = vld [vmem:[%s1483 + $0x1e8] sm:$0xff]
      %v1546 = vld [vmem:[%s1483 + $0x1f0] sm:$0xff]
      %v1547 = vld [vmem:[%s1483 + $0x1f8] sm:$0xff]
      %v1548 = vld [vmem:[%s1483 + $0x200] sm:$0xff]
      %v1549 = vld [vmem:[%s1483 + $0x208] sm:$0xff]
      %v1550 = vld [vmem:[%s1483 + $0x210] sm:$0xff]
      %v1551 = vld [vmem:[%s1483 + $0x218] sm:$0xff]
      %v1552 = vld [vmem:[%s1483 + $0x220] sm:$0xff]
      %v1553 = vld [vmem:[%s1483 + $0x228] sm:$0xff]
      %v1554 = vld [vmem:[%s1483 + $0x230] sm:$0xff]
      %v1555 = vld [vmem:[%s1483 + $0x238] sm:$0xff]
      %v1556 = vld [vmem:[%s1483 + $0x240] sm:$0xff]
      %v1557 = vld [vmem:[%s1483 + $0x248] sm:$0xff]
      %v1558 = vld [vmem:[%s1483 + $0x250] sm:$0xff]
      %v1559 = vld [vmem:[%s1483 + $0x258] sm:$0xff]
      %v1560 = vld [vmem:[%s1483 + $0x260] sm:$0xff]
      %v1561 = vld [vmem:[%s1483 + $0x268] sm:$0xff]
      %v1562 = vld [vmem:[%s1483 + $0x270] sm:$0xff]
      %v1563 = vld [vmem:[%s1483 + $0x278] sm:$0xff]
      %v1564 = vld [vmem:[%s1483 + $0x280] sm:$0xff]
      %v1565 = vld [vmem:[%s1483 + $0x288] sm:$0xff]
      %v1566 = vld [vmem:[%s1483 + $0x290] sm:$0xff]
      %v1567 = vld [vmem:[%s1483 + $0x298] sm:$0xff]
      %v1568 = vld [vmem:[%s1483 + $0x2a0] sm:$0xff]
      %v1569 = vld [vmem:[%s1483 + $0x2a8] sm:$0xff]
      %v1570 = vld [vmem:[%s1483 + $0x2b0] sm:$0xff]
      %v1571 = vld [vmem:[%s1483 + $0x2b8] sm:$0xff]
      %v1572 = vld [vmem:[%s1483 + $0x2c0] sm:$0xff]
      %v1573 = vld [vmem:[%s1483 + $0x2c8] sm:$0xff]
      %v1574 = vld [vmem:[%s1483 + $0x2d0] sm:$0xff]
      %v1575 = vld [vmem:[%s1483 + $0x2d8] sm:$0xff]
      %v1576 = vld [vmem:[%s1483 + $0x2e0] sm:$0xff]
      %v1577 = vld [vmem:[%s1483 + $0x2e8] sm:$0xff]
      %v1578 = vld [vmem:[%s1483 + $0x2f0] sm:$0xff]
      %v1579 = vld [vmem:[%s1483 + $0x2f8] sm:$0xff]
      %v1580 = vld [vmem:[%s1483 + $0x300] sm:$0xff]
      %v1581 = vld [vmem:[%s1483 + $0x308] sm:$0xff]
      %v1582 = vld [vmem:[%s1483 + $0x310] sm:$0xff]
      %v1583 = vld [vmem:[%s1483 + $0x318] sm:$0xff]
      %v1584 = vld [vmem:[%s1483 + $0x320] sm:$0xff]
      %v1585 = vld [vmem:[%s1483 + $0x328] sm:$0xff]
      %v1586 = vld [vmem:[%s1483 + $0x330] sm:$0xff]
      %v1587 = vld [vmem:[%s1483 + $0x338] sm:$0xff]
      %v1588 = vld [vmem:[%s1483 + $0x340] sm:$0xff]
      %v1589 = vld [vmem:[%s1483 + $0x348] sm:$0xff]
      %v1590 = vld [vmem:[%s1483 + $0x350] sm:$0xff]
      %v1591 = vld [vmem:[%s1483 + $0x358] sm:$0xff]
      %v1592 = vld [vmem:[%s1483 + $0x360] sm:$0xff]
      %v1593 = vld [vmem:[%s1483 + $0x368] sm:$0xff]
      %v1594 = vld [vmem:[%s1483 + $0x370] sm:$0xff]
      %v1595 = vld [vmem:[%s1483 + $0x378] sm:$0xff]
      %v1596 = vld [vmem:[%s1483 + $0x380] sm:$0xff]
      %v1597 = vld [vmem:[%s1483 + $0x388] sm:$0xff]
      %v1598 = vld [vmem:[%s1483 + $0x390] sm:$0xff]
      %v1599 = vld [vmem:[%s1483 + $0x398] sm:$0xff]
      %v1600 = vld [vmem:[%s1483 + $0x3a0] sm:$0xff]
      %v1601 = vld [vmem:[%s1483 + $0x3a8] sm:$0xff]
      %v1602 = vld [vmem:[%s1483 + $0x3b0] sm:$0xff]
      %v1603 = vld [vmem:[%s1483 + $0x3b8] sm:$0xff]
      %v1604 = vld [vmem:[%s1483 + $0x3c0] sm:$0xff]
      %v1605 = vld [vmem:[%s1483 + $0x3c8] sm:$0xff]
      %v1606 = vld [vmem:[%s1483 + $0x3d0] sm:$0xff]
      %v1607 = vld [vmem:[%s1483 + $0x3d8] sm:$0xff]
      %v1608 = vld [vmem:[%s1483 + $0x3e0] sm:$0xff]
      %v1609 = vld [vmem:[%s1483 + $0x3e8] sm:$0xff]
      %v1610 = vld [vmem:[%s1483 + $0x3f0] sm:$0xff]
      %v1611 = vld [vmem:[%s1483 + $0x3f8] sm:$0xff]
      %v1612 = vrot.slane %v1467, 7
      %v1613 = vrot.slane %v1468, 7
      %v1614 = vrot.slane %v1469, 7
      %v1615 = vrot.slane %v1470, 7
      %v1616 = vrot.slane %v1471, 7
      %v1617 = vrot.slane %v1472, 7
      %v1618 = vrot.slane %v1473, 7
      %v1619 = vrot.slane %v1474, 7
      %v1620 = vrot.slane %v1475, 7
      %v1621 = vrot.slane %v1476, 7
      %v1622 = vrot.slane %v1477, 7
      %v1623 = vrot.slane %v1478, 7
      %v1624 = vrot.slane %v1479, 7
      %v1625 = vrot.slane %v1480, 7
      %v1626 = vrot.slane %v1481, 7
      %v1627 = vrot.slane %v1482, 7
      %v1628 = vsel %vm301, %v1612, %v1620
      %v1629 = vsel %vm301, %v1613, %v1621
      %v1630 = vsel %vm301, %v1614, %v1622
      %v1631 = vsel %vm301, %v1615, %v1623
      %v1632 = vsel %vm301, %v1616, %v1624
      %v1633 = vsel %vm301, %v1617, %v1625
      %v1634 = vsel %vm301, %v1618, %v1626
      %v1635 = vsel %vm301, %v1619, %v1627
      %v1636 = vsel %vm301, %v1620, %v1612
      %v1637 = vsel %vm301, %v1621, %v1613
      %v1638 = vsel %vm301, %v1622, %v1614
      %v1639 = vsel %vm301, %v1623, %v1615
      %v1640 = vsel %vm301, %v1624, %v1616
      %v1641 = vsel %vm301, %v1625, %v1617
      %v1642 = vsel %vm301, %v1626, %v1618
      %v1643 = vsel %vm301, %v1627, %v1619
      %v1644 = vsel %vm306, 0.0, %v1636
      %v1645 = vsel %vm306, 0.0, %v1637
      %v1646 = vsel %vm306, 0.0, %v1638
      %v1647 = vsel %vm306, 0.0, %v1639
      %v1648 = vsel %vm306, 0.0, %v1640
      %v1649 = vsel %vm306, 0.0, %v1641
      %v1650 = vsel %vm306, 0.0, %v1642
      %v1651 = vsel %vm306, 0.0, %v1643
      %v1652 = vsel %vm307, 0.0, %v1628
      %v1653 = vsel %vm307, 0.0, %v1629
      %v1654 = vsel %vm307, 0.0, %v1630
      %v1655 = vsel %vm307, 0.0, %v1631
      %v1656 = vsel %vm307, 0.0, %v1632
      %v1657 = vsel %vm307, 0.0, %v1633
      %v1658 = vsel %vm307, 0.0, %v1634
      %v1659 = vsel %vm307, 0.0, %v1635
      %v1660 = vld [vmem:[%s3] sm:$0xff]
      %v1661 = vld [vmem:[%s3 + $0x8] sm:$0xff]
      %v1662 = vld [vmem:[%s3 + $0x10] sm:$0xff]
      %v1663 = vld [vmem:[%s3 + $0x18] sm:$0xff]
      %v1664 = vld [vmem:[%s3 + $0x20] sm:$0xff]
      %v1665 = vld [vmem:[%s3 + $0x28] sm:$0xff]
      %v1666 = vld [vmem:[%s3 + $0x30] sm:$0xff]
      %v1667 = vld [vmem:[%s3 + $0x38] sm:$0xff]
      %v1668 = vld [vmem:[%s3 + $0x40] sm:$0xff]
      %v1669 = vld [vmem:[%s3 + $0x48] sm:$0xff]
      %v1670 = vld [vmem:[%s3 + $0x50] sm:$0xff]
      %v1671 = vld [vmem:[%s3 + $0x58] sm:$0xff]
      %v1672 = vld [vmem:[%s3 + $0x60] sm:$0xff]
      %v1673 = vld [vmem:[%s3 + $0x68] sm:$0xff]
      %v1674 = vld [vmem:[%s3 + $0x70] sm:$0xff]
      %v1675 = vld [vmem:[%s3 + $0x78] sm:$0xff]
      %v1676 = vld [vmem:[%s3 + $0x80] sm:$0xff]
      %v1677 = vld [vmem:[%s3 + $0x88] sm:$0xff]
      %v1678 = vld [vmem:[%s3 + $0x90] sm:$0xff]
      %v1679 = vld [vmem:[%s3 + $0x98] sm:$0xff]
      %v1680 = vld [vmem:[%s3 + $0xa0] sm:$0xff]
      %v1681 = vld [vmem:[%s3 + $0xa8] sm:$0xff]
      %v1682 = vld [vmem:[%s3 + $0xb0] sm:$0xff]
      %v1683 = vld [vmem:[%s3 + $0xb8] sm:$0xff]
      %v1684 = vld [vmem:[%s3 + $0xc0] sm:$0xff]
      %v1685 = vld [vmem:[%s3 + $0xc8] sm:$0xff]
      %v1686 = vld [vmem:[%s3 + $0xd0] sm:$0xff]
      %v1687 = vld [vmem:[%s3 + $0xd8] sm:$0xff]
      %v1688 = vld [vmem:[%s3 + $0xe0] sm:$0xff]
      %v1689 = vld [vmem:[%s3 + $0xe8] sm:$0xff]
      %v1690 = vld [vmem:[%s3 + $0xf0] sm:$0xff]
      %v1691 = vld [vmem:[%s3 + $0xf8] sm:$0xff]
      %v1692 = vld [vmem:[%s3 + $0x100] sm:$0xff]
      %v1693 = vld [vmem:[%s3 + $0x108] sm:$0xff]
      %v1694 = vld [vmem:[%s3 + $0x110] sm:$0xff]
      %v1695 = vld [vmem:[%s3 + $0x118] sm:$0xff]
      %v1696 = vld [vmem:[%s3 + $0x120] sm:$0xff]
      %v1697 = vld [vmem:[%s3 + $0x128] sm:$0xff]
      %v1698 = vld [vmem:[%s3 + $0x130] sm:$0xff]
      %v1699 = vld [vmem:[%s3 + $0x138] sm:$0xff]
      %v1700 = vld [vmem:[%s3 + $0x140] sm:$0xff]
      %v1701 = vld [vmem:[%s3 + $0x148] sm:$0xff]
      %v1702 = vld [vmem:[%s3 + $0x150] sm:$0xff]
      %v1703 = vld [vmem:[%s3 + $0x158] sm:$0xff]
      %v1704 = vld [vmem:[%s3 + $0x160] sm:$0xff]
      %v1705 = vld [vmem:[%s3 + $0x168] sm:$0xff]
      %v1706 = vld [vmem:[%s3 + $0x170] sm:$0xff]
      %v1707 = vld [vmem:[%s3 + $0x178] sm:$0xff]
      %v1708 = vld [vmem:[%s3 + $0x180] sm:$0xff]
      %v1709 = vld [vmem:[%s3 + $0x188] sm:$0xff]
      %v1710 = vld [vmem:[%s3 + $0x190] sm:$0xff]
      %v1711 = vld [vmem:[%s3 + $0x198] sm:$0xff]
      %v1712 = vld [vmem:[%s3 + $0x1a0] sm:$0xff]
      %v1713 = vld [vmem:[%s3 + $0x1a8] sm:$0xff]
      %v1714 = vld [vmem:[%s3 + $0x1b0] sm:$0xff]
      %v1715 = vld [vmem:[%s3 + $0x1b8] sm:$0xff]
      %v1716 = vld [vmem:[%s3 + $0x1c0] sm:$0xff]
      %v1717 = vld [vmem:[%s3 + $0x1c8] sm:$0xff]
      %v1718 = vld [vmem:[%s3 + $0x1d0] sm:$0xff]
      %v1719 = vld [vmem:[%s3 + $0x1d8] sm:$0xff]
      %v1720 = vld [vmem:[%s3 + $0x1e0] sm:$0xff]
      %v1721 = vld [vmem:[%s3 + $0x1e8] sm:$0xff]
      %v1722 = vld [vmem:[%s3 + $0x1f0] sm:$0xff]
      %v1723 = vld [vmem:[%s3 + $0x1f8] sm:$0xff]
      %v1724 = vld [vmem:[%s3 + $0x200] sm:$0xff]
      %v1725 = vld [vmem:[%s3 + $0x208] sm:$0xff]
      %v1726 = vld [vmem:[%s3 + $0x210] sm:$0xff]
      %v1727 = vld [vmem:[%s3 + $0x218] sm:$0xff]
      %v1728 = vld [vmem:[%s3 + $0x220] sm:$0xff]
      %v1729 = vld [vmem:[%s3 + $0x228] sm:$0xff]
      %v1730 = vld [vmem:[%s3 + $0x230] sm:$0xff]
      %v1731 = vld [vmem:[%s3 + $0x238] sm:$0xff]
      %v1732 = vld [vmem:[%s3 + $0x240] sm:$0xff]
      %v1733 = vld [vmem:[%s3 + $0x248] sm:$0xff]
      %v1734 = vld [vmem:[%s3 + $0x250] sm:$0xff]
      %v1735 = vld [vmem:[%s3 + $0x258] sm:$0xff]
      %v1736 = vld [vmem:[%s3 + $0x260] sm:$0xff]
      %v1737 = vld [vmem:[%s3 + $0x268] sm:$0xff]
      %v1738 = vld [vmem:[%s3 + $0x270] sm:$0xff]
      %v1739 = vld [vmem:[%s3 + $0x278] sm:$0xff]
      %v1740 = vld [vmem:[%s3 + $0x280] sm:$0xff]
      %v1741 = vld [vmem:[%s3 + $0x288] sm:$0xff]
      %v1742 = vld [vmem:[%s3 + $0x290] sm:$0xff]
      %v1743 = vld [vmem:[%s3 + $0x298] sm:$0xff]
      %v1744 = vld [vmem:[%s3 + $0x2a0] sm:$0xff]
      %v1745 = vld [vmem:[%s3 + $0x2a8] sm:$0xff]
      %v1746 = vld [vmem:[%s3 + $0x2b0] sm:$0xff]
      %v1747 = vld [vmem:[%s3 + $0x2b8] sm:$0xff]
      %v1748 = vld [vmem:[%s3 + $0x2c0] sm:$0xff]
      %v1749 = vld [vmem:[%s3 + $0x2c8] sm:$0xff]
      %v1750 = vld [vmem:[%s3 + $0x2d0] sm:$0xff]
      %v1751 = vld [vmem:[%s3 + $0x2d8] sm:$0xff]
      %v1752 = vld [vmem:[%s3 + $0x2e0] sm:$0xff]
      %v1753 = vld [vmem:[%s3 + $0x2e8] sm:$0xff]
      %v1754 = vld [vmem:[%s3 + $0x2f0] sm:$0xff]
      %v1755 = vld [vmem:[%s3 + $0x2f8] sm:$0xff]
      %v1756 = vld [vmem:[%s3 + $0x300] sm:$0xff]
      %v1757 = vld [vmem:[%s3 + $0x308] sm:$0xff]
      %v1758 = vld [vmem:[%s3 + $0x310] sm:$0xff]
      %v1759 = vld [vmem:[%s3 + $0x318] sm:$0xff]
      %v1760 = vld [vmem:[%s3 + $0x320] sm:$0xff]
      %v1761 = vld [vmem:[%s3 + $0x328] sm:$0xff]
      %v1762 = vld [vmem:[%s3 + $0x330] sm:$0xff]
      %v1763 = vld [vmem:[%s3 + $0x338] sm:$0xff]
      %v1764 = vld [vmem:[%s3 + $0x340] sm:$0xff]
      %v1765 = vld [vmem:[%s3 + $0x348] sm:$0xff]
      %v1766 = vld [vmem:[%s3 + $0x350] sm:$0xff]
      %v1767 = vld [vmem:[%s3 + $0x358] sm:$0xff]
      %v1768 = vld [vmem:[%s3 + $0x360] sm:$0xff]
      %v1769 = vld [vmem:[%s3 + $0x368] sm:$0xff]
      %v1770 = vld [vmem:[%s3 + $0x370] sm:$0xff]
      %v1771 = vld [vmem:[%s3 + $0x378] sm:$0xff]
      %v1772 = vld [vmem:[%s3 + $0x380] sm:$0xff]
      %v1773 = vld [vmem:[%s3 + $0x388] sm:$0xff]
      %v1774 = vld [vmem:[%s3 + $0x390] sm:$0xff]
      %v1775 = vld [vmem:[%s3 + $0x398] sm:$0xff]
      %v1776 = vld [vmem:[%s3 + $0x3a0] sm:$0xff]
      %v1777 = vld [vmem:[%s3 + $0x3a8] sm:$0xff]
      %v1778 = vld [vmem:[%s3 + $0x3b0] sm:$0xff]
      %v1779 = vld [vmem:[%s3 + $0x3b8] sm:$0xff]
      %v1780 = vld [vmem:[%s3 + $0x3c0] sm:$0xff]
      %v1781 = vld [vmem:[%s3 + $0x3c8] sm:$0xff]
      %v1782 = vld [vmem:[%s3 + $0x3d0] sm:$0xff]
      %v1783 = vld [vmem:[%s3 + $0x3d8] sm:$0xff]
      %v1784 = vld [vmem:[%s3 + $0x3e0] sm:$0xff]
      %v1785 = vld [vmem:[%s3 + $0x3e8] sm:$0xff]
      %v1786 = vld [vmem:[%s3 + $0x3f0] sm:$0xff]
      %v1787 = vld [vmem:[%s3 + $0x3f8] sm:$0xff]
      %1788 = vmatprep.subr.mxu0 0.0
      %1789 = vmatpush1.msra.mxu0 %v1675
      %1790 = vmatprep.subr.mxu0 0.0
      %1791 = vmatpush1.msra.mxu0 %v1674
      %1792 = vmatprep.subr.mxu0 0.0
      %1793 = vmatpush1.msra.mxu0 %v1673
      %1794 = vmatprep.subr.mxu0 0.0
      %1795 = vmatpush1.msra.mxu0 %v1672
      %1796 = vmatprep.subr.mxu0 0.0
      %1797 = vmatpush1.msra.mxu0 %v1671
      %1798 = vmatprep.subr.mxu0 0.0
      %1799 = vmatpush1.msra.mxu0 %v1670
      %1800 = vmatprep.subr.mxu0 0.0
      %1801 = vmatpush1.msra.mxu0 %v1669
      %1802 = vmatprep.subr.mxu0 0.0
      %1803 = vmatpush1.msra.mxu0 %v1668
      %1804 = vmatprep.subr.mxu0 0.0
      %1805 = vmatpush1.msra.mxu0 %v1667
      %1806 = vmatprep.subr.mxu0 0.0
      %1807 = vmatpush1.msra.mxu0 %v1666
      %1808 = vmatprep.subr.mxu0 0.0
      %1809 = vmatpush1.msra.mxu0 %v1665
      %1810 = vmatprep.subr.mxu0 0.0
      %1811 = vmatpush1.msra.mxu0 %v1664
      %1812 = vmatprep.subr.mxu0 0.0
      %1813 = vmatpush1.msra.mxu0 %v1663
      %1814 = vmatprep.subr.mxu0 0.0
      %1815 = vmatpush1.msra.mxu0 %v1662
      %1816 = vmatprep.subr.mxu0 0.0
      %1817 = vmatpush1.msra.mxu0 %v1661
      %1818 = vmatprep.subr.mxu0 0.0
      %1819 = vmatpush1.msra.mxu0 %v1660
      %1820 = vmatprep.subr.mxu0 0.0
      %1821 = vmatpush2.msra.mxu0 %v1691
      %1822 = vmatprep.subr.mxu0 0.0
      %1823 = vmatpush2.msra.mxu0 %v1690
      %1824 = vmatprep.subr.mxu0 0.0
      %1825 = vmatpush2.msra.mxu0 %v1689
      %1826 = vmatprep.subr.mxu0 0.0
      %1827 = vmatpush2.msra.mxu0 %v1688
      %1828 = vmatprep.subr.mxu0 0.0
      %1829 = vmatpush2.msra.mxu0 %v1687
      %1830 = vmatprep.subr.mxu0 0.0
      %1831 = vmatpush2.msra.mxu0 %v1686
      %1832 = vmatprep.subr.mxu0 0.0
      %1833 = vmatpush2.msra.mxu0 %v1685
      %1834 = vmatprep.subr.mxu0 0.0
      %1835 = vmatpush2.msra.mxu0 %v1684
      %1836 = vmatprep.subr.mxu0 0.0
      %1837 = vmatpush2.msra.mxu0 %v1683
      %1838 = vmatprep.subr.mxu0 0.0
      %1839 = vmatpush2.msra.mxu0 %v1682
      %1840 = vmatprep.subr.mxu0 0.0
      %1841 = vmatpush2.msra.mxu0 %v1681
      %1842 = vmatprep.subr.mxu0 0.0
      %1843 = vmatpush2.msra.mxu0 %v1680
      %1844 = vmatprep.subr.mxu0 0.0
      %1845 = vmatpush2.msra.mxu0 %v1679
      %1846 = vmatprep.subr.mxu0 0.0
      %1847 = vmatpush2.msra.mxu0 %v1678
      %1848 = vmatprep.subr.mxu0 0.0
      %1849 = vmatpush2.msra.mxu0 %v1677
      %1850 = vmatprep.subr.mxu0 0.0
      %1851 = vmatpush2.msra.mxu0 %v1676
      %1852 = vmatprep.mubr.f32.mxu0 %v1645
      %1853 = vmatmul.mubr.f32.gmra.mxu0 %v1644
      %v1854 = vpop.f32.mrf.mxu0
      %v1855 = vadd.f32 0.0, %v1854
      %v1856 = vpop.f32.mrf.mxu0
      %1857 = vmatprep.mubr.f32.mxu0 %v1653
      %1858 = vmatmul.mubr.f32.gmra.mxu0 %v1652
      %v1859 = vpop.f32.mrf.mxu0
      %v1860 = vadd.f32 0.0, %v1859
      %v1861 = vpop.f32.mrf.mxu0
      %1862 = vdwg.mxu0
      %1863 = vmatprep.subr.mxu0 0.0
      %1864 = vmatpush1.msra.mxu0 %v1707
      %1865 = vmatprep.subr.mxu0 0.0
      %1866 = vmatpush1.msra.mxu0 %v1706
      %1867 = vmatprep.subr.mxu0 0.0
      %1868 = vmatpush1.msra.mxu0 %v1705
      %1869 = vmatprep.subr.mxu0 0.0
      %1870 = vmatpush1.msra.mxu0 %v1704
      %1871 = vmatprep.subr.mxu0 0.0
      %1872 = vmatpush1.msra.mxu0 %v1703
      %1873 = vmatprep.subr.mxu0 0.0
      %1874 = vmatpush1.msra.mxu0 %v1702
      %1875 = vmatprep.subr.mxu0 0.0
      %1876 = vmatpush1.msra.mxu0 %v1701
      %1877 = vmatprep.subr.mxu0 0.0
      %1878 = vmatpush1.msra.mxu0 %v1700
      %1879 = vmatprep.subr.mxu0 0.0
      %1880 = vmatpush1.msra.mxu0 %v1699
      %1881 = vmatprep.subr.mxu0 0.0
      %1882 = vmatpush1.msra.mxu0 %v1698
      %1883 = vmatprep.subr.mxu0 0.0
      %1884 = vmatpush1.msra.mxu0 %v1697
      %1885 = vmatprep.subr.mxu0 0.0
      %1886 = vmatpush1.msra.mxu0 %v1696
      %1887 = vmatprep.subr.mxu0 0.0
      %1888 = vmatpush1.msra.mxu0 %v1695
      %1889 = vmatprep.subr.mxu0 0.0
      %1890 = vmatpush1.msra.mxu0 %v1694
      %1891 = vmatprep.subr.mxu0 0.0
      %1892 = vmatpush1.msra.mxu0 %v1693
      %1893 = vmatprep.subr.mxu0 0.0
      %1894 = vmatpush1.msra.mxu0 %v1692
      %1895 = vmatprep.subr.mxu0 0.0
      %1896 = vmatpush2.msra.mxu0 %v1723
      %1897 = vmatprep.subr.mxu0 0.0
      %1898 = vmatpush2.msra.mxu0 %v1722
      %1899 = vmatprep.subr.mxu0 0.0
      %1900 = vmatpush2.msra.mxu0 %v1721
      %1901 = vmatprep.subr.mxu0 0.0
      %1902 = vmatpush2.msra.mxu0 %v1720
      %1903 = vmatprep.subr.mxu0 0.0
      %1904 = vmatpush2.msra.mxu0 %v1719
      %1905 = vmatprep.subr.mxu0 0.0
      %1906 = vmatpush2.msra.mxu0 %v1718
      %1907 = vmatprep.subr.mxu0 0.0
      %1908 = vmatpush2.msra.mxu0 %v1717
      %1909 = vmatprep.subr.mxu0 0.0
      %1910 = vmatpush2.msra.mxu0 %v1716
      %1911 = vmatprep.subr.mxu0 0.0
      %1912 = vmatpush2.msra.mxu0 %v1715
      %1913 = vmatprep.subr.mxu0 0.0
      %1914 = vmatpush2.msra.mxu0 %v1714
      %1915 = vmatprep.subr.mxu0 0.0
      %1916 = vmatpush2.msra.mxu0 %v1713
      %1917 = vmatprep.subr.mxu0 0.0
      %1918 = vmatpush2.msra.mxu0 %v1712
      %1919 = vmatprep.subr.mxu0 0.0
      %1920 = vmatpush2.msra.mxu0 %v1711
      %1921 = vmatprep.subr.mxu0 0.0
      %1922 = vmatpush2.msra.mxu0 %v1710
      %1923 = vmatprep.subr.mxu0 0.0
      %1924 = vmatpush2.msra.mxu0 %v1709
      %1925 = vmatprep.subr.mxu0 0.0
      %1926 = vmatpush2.msra.mxu0 %v1708
      %1927 = vmatprep.mubr.f32.mxu0 %v1647
      %1928 = vmatmul.mubr.f32.gmra.mxu0 %v1646
      %v1929 = vpop.f32.mrf.mxu0
      %v1930 = vadd.f32 %v1855, %v1929
      %v1931 = vpop.f32.mrf.mxu0
      %1932 = vmatprep.mubr.f32.mxu0 %v1655
      %1933 = vmatmul.mubr.f32.gmra.mxu0 %v1654
      %v1934 = vpop.f32.mrf.mxu0
      %v1935 = vadd.f32 %v1860, %v1934
      %v1936 = vpop.f32.mrf.mxu0
      %1937 = vdwg.mxu0
      %1938 = vmatprep.subr.mxu0 0.0
      %1939 = vmatpush1.msra.mxu0 %v1739
      %1940 = vmatprep.subr.mxu0 0.0
      %1941 = vmatpush1.msra.mxu0 %v1738
      %1942 = vmatprep.subr.mxu0 0.0
      %1943 = vmatpush1.msra.mxu0 %v1737
      %1944 = vmatprep.subr.mxu0 0.0
      %1945 = vmatpush1.msra.mxu0 %v1736
      %1946 = vmatprep.subr.mxu0 0.0
      %1947 = vmatpush1.msra.mxu0 %v1735
      %1948 = vmatprep.subr.mxu0 0.0
      %1949 = vmatpush1.msra.mxu0 %v1734
      %1950 = vmatprep.subr.mxu0 0.0
      %1951 = vmatpush1.msra.mxu0 %v1733
      %1952 = vmatprep.subr.mxu0 0.0
      %1953 = vmatpush1.msra.mxu0 %v1732
      %1954 = vmatprep.subr.mxu0 0.0
      %1955 = vmatpush1.msra.mxu0 %v1731
      %1956 = vmatprep.subr.mxu0 0.0
      %1957 = vmatpush1.msra.mxu0 %v1730
      %1958 = vmatprep.subr.mxu0 0.0
      %1959 = vmatpush1.msra.mxu0 %v1729
      %1960 = vmatprep.subr.mxu0 0.0
      %1961 = vmatpush1.msra.mxu0 %v1728
      %1962 = vmatprep.subr.mxu0 0.0
      %1963 = vmatpush1.msra.mxu0 %v1727
      %1964 = vmatprep.subr.mxu0 0.0
      %1965 = vmatpush1.msra.mxu0 %v1726
      %1966 = vmatprep.subr.mxu0 0.0
      %1967 = vmatpush1.msra.mxu0 %v1725
      %1968 = vmatprep.subr.mxu0 0.0
      %1969 = vmatpush1.msra.mxu0 %v1724
      %1970 = vmatprep.subr.mxu0 0.0
      %1971 = vmatpush2.msra.mxu0 %v1755
      %1972 = vmatprep.subr.mxu0 0.0
      %1973 = vmatpush2.msra.mxu0 %v1754
      %1974 = vmatprep.subr.mxu0 0.0
      %1975 = vmatpush2.msra.mxu0 %v1753
      %1976 = vmatprep.subr.mxu0 0.0
      %1977 = vmatpush2.msra.mxu0 %v1752
      %1978 = vmatprep.subr.mxu0 0.0
      %1979 = vmatpush2.msra.mxu0 %v1751
      %1980 = vmatprep.subr.mxu0 0.0
      %1981 = vmatpush2.msra.mxu0 %v1750
      %1982 = vmatprep.subr.mxu0 0.0
      %1983 = vmatpush2.msra.mxu0 %v1749
      %1984 = vmatprep.subr.mxu0 0.0
      %1985 = vmatpush2.msra.mxu0 %v1748
      %1986 = vmatprep.subr.mxu0 0.0
      %1987 = vmatpush2.msra.mxu0 %v1747
      %1988 = vmatprep.subr.mxu0 0.0
      %1989 = vmatpush2.msra.mxu0 %v1746
      %1990 = vmatprep.subr.mxu0 0.0
      %1991 = vmatpush2.msra.mxu0 %v1745
      %1992 = vmatprep.subr.mxu0 0.0
      %1993 = vmatpush2.msra.mxu0 %v1744
      %1994 = vmatprep.subr.mxu0 0.0
      %1995 = vmatpush2.msra.mxu0 %v1743
      %1996 = vmatprep.subr.mxu0 0.0
      %1997 = vmatpush2.msra.mxu0 %v1742
      %1998 = vmatprep.subr.mxu0 0.0
      %1999 = vmatpush2.msra.mxu0 %v1741
      %2000 = vmatprep.subr.mxu0 0.0
      %2001 = vmatpush2.msra.mxu0 %v1740
      %2002 = vmatprep.mubr.f32.mxu0 %v1649
      %2003 = vmatmul.mubr.f32.gmra.mxu0 %v1648
      %v2004 = vpop.f32.mrf.mxu0
      %v2005 = vadd.f32 %v1930, %v2004
      %v2006 = vpop.f32.mrf.mxu0
      %2007 = vmatprep.mubr.f32.mxu0 %v1657
      %2008 = vmatmul.mubr.f32.gmra.mxu0 %v1656
      %v2009 = vpop.f32.mrf.mxu0
      %v2010 = vadd.f32 %v1935, %v2009
      %v2011 = vpop.f32.mrf.mxu0
      %2012 = vdwg.mxu0
      %2013 = vmatprep.subr.mxu0 0.0
      %2014 = vmatpush1.msra.mxu0 %v1771
      %2015 = vmatprep.subr.mxu0 0.0
      %2016 = vmatpush1.msra.mxu0 %v1770
      %2017 = vmatprep.subr.mxu0 0.0
      %2018 = vmatpush1.msra.mxu0 %v1769
      %2019 = vmatprep.subr.mxu0 0.0
      %2020 = vmatpush1.msra.mxu0 %v1768
      %2021 = vmatprep.subr.mxu0 0.0
      %2022 = vmatpush1.msra.mxu0 %v1767
      %2023 = vmatprep.subr.mxu0 0.0
      %2024 = vmatpush1.msra.mxu0 %v1766
      %2025 = vmatprep.subr.mxu0 0.0
      %2026 = vmatpush1.msra.mxu0 %v1765
      %2027 = vmatprep.subr.mxu0 0.0
      %2028 = vmatpush1.msra.mxu0 %v1764
      %2029 = vmatprep.subr.mxu0 0.0
      %2030 = vmatpush1.msra.mxu0 %v1763
      %2031 = vmatprep.subr.mxu0 0.0
      %2032 = vmatpush1.msra.mxu0 %v1762
      %2033 = vmatprep.subr.mxu0 0.0
      %2034 = vmatpush1.msra.mxu0 %v1761
      %2035 = vmatprep.subr.mxu0 0.0
      %2036 = vmatpush1.msra.mxu0 %v1760
      %2037 = vmatprep.subr.mxu0 0.0
      %2038 = vmatpush1.msra.mxu0 %v1759
      %2039 = vmatprep.subr.mxu0 0.0
      %2040 = vmatpush1.msra.mxu0 %v1758
      %2041 = vmatprep.subr.mxu0 0.0
      %2042 = vmatpush1.msra.mxu0 %v1757
      %2043 = vmatprep.subr.mxu0 0.0
      %2044 = vmatpush1.msra.mxu0 %v1756
      %2045 = vmatprep.subr.mxu0 0.0
      %2046 = vmatpush2.msra.mxu0 %v1787
      %2047 = vmatprep.subr.mxu0 0.0
      %2048 = vmatpush2.msra.mxu0 %v1786
      %2049 = vmatprep.subr.mxu0 0.0
      %2050 = vmatpush2.msra.mxu0 %v1785
      %2051 = vmatprep.subr.mxu0 0.0
      %2052 = vmatpush2.msra.mxu0 %v1784
      %2053 = vmatprep.subr.mxu0 0.0
      %2054 = vmatpush2.msra.mxu0 %v1783
      %2055 = vmatprep.subr.mxu0 0.0
      %2056 = vmatpush2.msra.mxu0 %v1782
      %2057 = vmatprep.subr.mxu0 0.0
      %2058 = vmatpush2.msra.mxu0 %v1781
      %2059 = vmatprep.subr.mxu0 0.0
      %2060 = vmatpush2.msra.mxu0 %v1780
      %2061 = vmatprep.subr.mxu0 0.0
      %2062 = vmatpush2.msra.mxu0 %v1779
      %2063 = vmatprep.subr.mxu0 0.0
      %2064 = vmatpush2.msra.mxu0 %v1778
      %2065 = vmatprep.subr.mxu0 0.0
      %2066 = vmatpush2.msra.mxu0 %v1777
      %2067 = vmatprep.subr.mxu0 0.0
      %2068 = vmatpush2.msra.mxu0 %v1776
      %2069 = vmatprep.subr.mxu0 0.0
      %2070 = vmatpush2.msra.mxu0 %v1775
      %2071 = vmatprep.subr.mxu0 0.0
      %2072 = vmatpush2.msra.mxu0 %v1774
      %2073 = vmatprep.subr.mxu0 0.0
      %2074 = vmatpush2.msra.mxu0 %v1773
      %2075 = vmatprep.subr.mxu0 0.0
      %2076 = vmatpush2.msra.mxu0 %v1772
      %2077 = vmatprep.mubr.f32.mxu0 %v1651
      %2078 = vmatmul.mubr.f32.gmra.mxu0 %v1650
      %v2079 = vpop.f32.mrf.mxu0
      %v2080 = vadd.f32 %v2005, %v2079
      %v2081 = vpop.f32.mrf.mxu0
      %2082 = vmatprep.mubr.f32.mxu0 %v1659
      %2083 = vmatmul.mubr.f32.gmra.mxu0 %v1658
      %v2084 = vpop.f32.mrf.mxu0
      %v2085 = vadd.f32 %v2010, %v2084
      %v2086 = vpop.f32.mrf.mxu0
      %2087 = vdwg.mxu0
      %2088 = vmatprep.subr.mxu0 0.0
      %2089 = vmatpush1.msra.mxu0 %v1499
      %2090 = vmatprep.subr.mxu0 0.0
      %2091 = vmatpush1.msra.mxu0 %v1498
      %2092 = vmatprep.subr.mxu0 0.0
      %2093 = vmatpush1.msra.mxu0 %v1497
      %2094 = vmatprep.subr.mxu0 0.0
      %2095 = vmatpush1.msra.mxu0 %v1496
      %2096 = vmatprep.subr.mxu0 0.0
      %2097 = vmatpush1.msra.mxu0 %v1495
      %2098 = vmatprep.subr.mxu0 0.0
      %2099 = vmatpush1.msra.mxu0 %v1494
      %2100 = vmatprep.subr.mxu0 0.0
      %2101 = vmatpush1.msra.mxu0 %v1493
      %2102 = vmatprep.subr.mxu0 0.0
      %2103 = vmatpush1.msra.mxu0 %v1492
      %2104 = vmatprep.subr.mxu0 0.0
      %2105 = vmatpush1.msra.mxu0 %v1491
      %2106 = vmatprep.subr.mxu0 0.0
      %2107 = vmatpush1.msra.mxu0 %v1490
      %2108 = vmatprep.subr.mxu0 0.0
      %2109 = vmatpush1.msra.mxu0 %v1489
      %2110 = vmatprep.subr.mxu0 0.0
      %2111 = vmatpush1.msra.mxu0 %v1488
      %2112 = vmatprep.subr.mxu0 0.0
      %2113 = vmatpush1.msra.mxu0 %v1487
      %2114 = vmatprep.subr.mxu0 0.0
      %2115 = vmatpush1.msra.mxu0 %v1486
      %2116 = vmatprep.subr.mxu0 0.0
      %2117 = vmatpush1.msra.mxu0 %v1485
      %2118 = vmatprep.subr.mxu0 0.0
      %2119 = vmatpush1.msra.mxu0 %v1484
      %2120 = vmatprep.subr.mxu0 0.0
      %2121 = vmatpush2.msra.mxu0 %v1515
      %2122 = vmatprep.subr.mxu0 0.0
      %2123 = vmatpush2.msra.mxu0 %v1514
      %2124 = vmatprep.subr.mxu0 0.0
      %2125 = vmatpush2.msra.mxu0 %v1513
      %2126 = vmatprep.subr.mxu0 0.0
      %2127 = vmatpush2.msra.mxu0 %v1512
      %2128 = vmatprep.subr.mxu0 0.0
      %2129 = vmatpush2.msra.mxu0 %v1511
      %2130 = vmatprep.subr.mxu0 0.0
      %2131 = vmatpush2.msra.mxu0 %v1510
      %2132 = vmatprep.subr.mxu0 0.0
      %2133 = vmatpush2.msra.mxu0 %v1509
      %2134 = vmatprep.subr.mxu0 0.0
      %2135 = vmatpush2.msra.mxu0 %v1508
      %2136 = vmatprep.subr.mxu0 0.0
      %2137 = vmatpush2.msra.mxu0 %v1507
      %2138 = vmatprep.subr.mxu0 0.0
      %2139 = vmatpush2.msra.mxu0 %v1506
      %2140 = vmatprep.subr.mxu0 0.0
      %2141 = vmatpush2.msra.mxu0 %v1505
      %2142 = vmatprep.subr.mxu0 0.0
      %2143 = vmatpush2.msra.mxu0 %v1504
      %2144 = vmatprep.subr.mxu0 0.0
      %2145 = vmatpush2.msra.mxu0 %v1503
      %2146 = vmatprep.subr.mxu0 0.0
      %2147 = vmatpush2.msra.mxu0 %v1502
      %2148 = vmatprep.subr.mxu0 0.0
      %2149 = vmatpush2.msra.mxu0 %v1501
      %2150 = vmatprep.subr.mxu0 0.0
      %2151 = vmatpush2.msra.mxu0 %v1500
      %2152 = vmatprep.mubr.f32.mxu0 %v1468
      %2153 = vmatmul.mubr.f32.gmra.mxu0 %v1467
      %v2154 = vpop.f32.mrf.mxu0
      %v2155 = vadd.f32 %v2080, %v2154
      %v2156 = vpop.f32.mrf.mxu0
      %2157 = vmatprep.mubr.f32.mxu0 %v1476
      %2158 = vmatmul.mubr.f32.gmra.mxu0 %v1475
      %v2159 = vpop.f32.mrf.mxu0
      %v2160 = vadd.f32 %v2085, %v2159
      %v2161 = vpop.f32.mrf.mxu0
      %2162 = vdwg.mxu0
      %2163 = vmatprep.subr.mxu0 0.0
      %2164 = vmatpush1.msra.mxu0 %v1531
      %2165 = vmatprep.subr.mxu0 0.0
      %2166 = vmatpush1.msra.mxu0 %v1530
      %2167 = vmatprep.subr.mxu0 0.0
      %2168 = vmatpush1.msra.mxu0 %v1529
      %2169 = vmatprep.subr.mxu0 0.0
      %2170 = vmatpush1.msra.mxu0 %v1528
      %2171 = vmatprep.subr.mxu0 0.0
      %2172 = vmatpush1.msra.mxu0 %v1527
      %2173 = vmatprep.subr.mxu0 0.0
      %2174 = vmatpush1.msra.mxu0 %v1526
      %2175 = vmatprep.subr.mxu0 0.0
      %2176 = vmatpush1.msra.mxu0 %v1525
      %2177 = vmatprep.subr.mxu0 0.0
      %2178 = vmatpush1.msra.mxu0 %v1524
      %2179 = vmatprep.subr.mxu0 0.0
      %2180 = vmatpush1.msra.mxu0 %v1523
      %2181 = vmatprep.subr.mxu0 0.0
      %2182 = vmatpush1.msra.mxu0 %v1522
      %2183 = vmatprep.subr.mxu0 0.0
      %2184 = vmatpush1.msra.mxu0 %v1521
      %2185 = vmatprep.subr.mxu0 0.0
      %2186 = vmatpush1.msra.mxu0 %v1520
      %2187 = vmatprep.subr.mxu0 0.0
      %2188 = vmatpush1.msra.mxu0 %v1519
      %2189 = vmatprep.subr.mxu0 0.0
      %2190 = vmatpush1.msra.mxu0 %v1518
      %2191 = vmatprep.subr.mxu0 0.0
      %2192 = vmatpush1.msra.mxu0 %v1517
      %2193 = vmatprep.subr.mxu0 0.0
      %2194 = vmatpush1.msra.mxu0 %v1516
      %2195 = vmatprep.subr.mxu0 0.0
      %2196 = vmatpush2.msra.mxu0 %v1547
      %2197 = vmatprep.subr.mxu0 0.0
      %2198 = vmatpush2.msra.mxu0 %v1546
      %2199 = vmatprep.subr.mxu0 0.0
      %2200 = vmatpush2.msra.mxu0 %v1545
      %2201 = vmatprep.subr.mxu0 0.0
      %2202 = vmatpush2.msra.mxu0 %v1544
      %2203 = vmatprep.subr.mxu0 0.0
      %2204 = vmatpush2.msra.mxu0 %v1543
      %2205 = vmatprep.subr.mxu0 0.0
      %2206 = vmatpush2.msra.mxu0 %v1542
      %2207 = vmatprep.subr.mxu0 0.0
      %2208 = vmatpush2.msra.mxu0 %v1541
      %2209 = vmatprep.subr.mxu0 0.0
      %2210 = vmatpush2.msra.mxu0 %v1540
      %2211 = vmatprep.subr.mxu0 0.0
      %2212 = vmatpush2.msra.mxu0 %v1539
      %2213 = vmatprep.subr.mxu0 0.0
      %2214 = vmatpush2.msra.mxu0 %v1538
      %2215 = vmatprep.subr.mxu0 0.0
      %2216 = vmatpush2.msra.mxu0 %v1537
      %2217 = vmatprep.subr.mxu0 0.0
      %2218 = vmatpush2.msra.mxu0 %v1536
      %2219 = vmatprep.subr.mxu0 0.0
      %2220 = vmatpush2.msra.mxu0 %v1535
      %2221 = vmatprep.subr.mxu0 0.0
      %2222 = vmatpush2.msra.mxu0 %v1534
      %2223 = vmatprep.subr.mxu0 0.0
      %2224 = vmatpush2.msra.mxu0 %v1533
      %2225 = vmatprep.subr.mxu0 0.0
      %2226 = vmatpush2.msra.mxu0 %v1532
      %2227 = vmatprep.mubr.f32.mxu0 %v1470
      %2228 = vmatmul.mubr.f32.gmra.mxu0 %v1469
      %v2229 = vpop.f32.mrf.mxu0
      %v2230 = vadd.f32 %v2155, %v2229
      %v2231 = vpop.f32.mrf.mxu0
      %2232 = vmatprep.mubr.f32.mxu0 %v1478
      %2233 = vmatmul.mubr.f32.gmra.mxu0 %v1477
      %v2234 = vpop.f32.mrf.mxu0
      %v2235 = vadd.f32 %v2160, %v2234
      %v2236 = vpop.f32.mrf.mxu0
      %2237 = vdwg.mxu0
      %2238 = vmatprep.subr.mxu0 0.0
      %2239 = vmatpush1.msra.mxu0 %v1563
      %2240 = vmatprep.subr.mxu0 0.0
      %2241 = vmatpush1.msra.mxu0 %v1562
      %2242 = vmatprep.subr.mxu0 0.0
      %2243 = vmatpush1.msra.mxu0 %v1561
      %2244 = vmatprep.subr.mxu0 0.0
      %2245 = vmatpush1.msra.mxu0 %v1560
      %2246 = vmatprep.subr.mxu0 0.0
      %2247 = vmatpush1.msra.mxu0 %v1559
      %2248 = vmatprep.subr.mxu0 0.0
      %2249 = vmatpush1.msra.mxu0 %v1558
      %2250 = vmatprep.subr.mxu0 0.0
      %2251 = vmatpush1.msra.mxu0 %v1557
      %2252 = vmatprep.subr.mxu0 0.0
      %2253 = vmatpush1.msra.mxu0 %v1556
      %2254 = vmatprep.subr.mxu0 0.0
      %2255 = vmatpush1.msra.mxu0 %v1555
      %2256 = vmatprep.subr.mxu0 0.0
      %2257 = vmatpush1.msra.mxu0 %v1554
      %2258 = vmatprep.subr.mxu0 0.0
      %2259 = vmatpush1.msra.mxu0 %v1553
      %2260 = vmatprep.subr.mxu0 0.0
      %2261 = vmatpush1.msra.mxu0 %v1552
      %2262 = vmatprep.subr.mxu0 0.0
      %2263 = vmatpush1.msra.mxu0 %v1551
      %2264 = vmatprep.subr.mxu0 0.0
      %2265 = vmatpush1.msra.mxu0 %v1550
      %2266 = vmatprep.subr.mxu0 0.0
      %2267 = vmatpush1.msra.mxu0 %v1549
      %2268 = vmatprep.subr.mxu0 0.0
      %2269 = vmatpush1.msra.mxu0 %v1548
      %2270 = vmatprep.subr.mxu0 0.0
      %2271 = vmatpush2.msra.mxu0 %v1579
      %2272 = vmatprep.subr.mxu0 0.0
      %2273 = vmatpush2.msra.mxu0 %v1578
      %2274 = vmatprep.subr.mxu0 0.0
      %2275 = vmatpush2.msra.mxu0 %v1577
      %2276 = vmatprep.subr.mxu0 0.0
      %2277 = vmatpush2.msra.mxu0 %v1576
      %2278 = vmatprep.subr.mxu0 0.0
      %2279 = vmatpush2.msra.mxu0 %v1575
      %2280 = vmatprep.subr.mxu0 0.0
      %2281 = vmatpush2.msra.mxu0 %v1574
      %2282 = vmatprep.subr.mxu0 0.0
      %2283 = vmatpush2.msra.mxu0 %v1573
      %2284 = vmatprep.subr.mxu0 0.0
      %2285 = vmatpush2.msra.mxu0 %v1572
      %2286 = vmatprep.subr.mxu0 0.0
      %2287 = vmatpush2.msra.mxu0 %v1571
      %2288 = vmatprep.subr.mxu0 0.0
      %2289 = vmatpush2.msra.mxu0 %v1570
      %2290 = vmatprep.subr.mxu0 0.0
      %2291 = vmatpush2.msra.mxu0 %v1569
      %2292 = vmatprep.subr.mxu0 0.0
      %2293 = vmatpush2.msra.mxu0 %v1568
      %2294 = vmatprep.subr.mxu0 0.0
      %2295 = vmatpush2.msra.mxu0 %v1567
      %2296 = vmatprep.subr.mxu0 0.0
      %2297 = vmatpush2.msra.mxu0 %v1566
      %2298 = vmatprep.subr.mxu0 0.0
      %2299 = vmatpush2.msra.mxu0 %v1565
      %2300 = vmatprep.subr.mxu0 0.0
      %2301 = vmatpush2.msra.mxu0 %v1564
      %2302 = vmatprep.mubr.f32.mxu0 %v1472
      %2303 = vmatmul.mubr.f32.gmra.mxu0 %v1471
      %v2304 = vpop.f32.mrf.mxu0
      %v2305 = vadd.f32 %v2230, %v2304
      %v2306 = vpop.f32.mrf.mxu0
      %2307 = vmatprep.mubr.f32.mxu0 %v1480
      %2308 = vmatmul.mubr.f32.gmra.mxu0 %v1479
      %v2309 = vpop.f32.mrf.mxu0
      %v2310 = vadd.f32 %v2235, %v2309
      %v2311 = vpop.f32.mrf.mxu0
      %2312 = vdwg.mxu0
      %2313 = vmatprep.subr.mxu0 0.0
      %2314 = vmatpush1.msra.mxu0 %v1595
      %2315 = vmatprep.subr.mxu0 0.0
      %2316 = vmatpush1.msra.mxu0 %v1594
      %2317 = vmatprep.subr.mxu0 0.0
      %2318 = vmatpush1.msra.mxu0 %v1593
      %2319 = vmatprep.subr.mxu0 0.0
      %2320 = vmatpush1.msra.mxu0 %v1592
      %2321 = vmatprep.subr.mxu0 0.0
      %2322 = vmatpush1.msra.mxu0 %v1591
      %2323 = vmatprep.subr.mxu0 0.0
      %2324 = vmatpush1.msra.mxu0 %v1590
      %2325 = vmatprep.subr.mxu0 0.0
      %2326 = vmatpush1.msra.mxu0 %v1589
      %2327 = vmatprep.subr.mxu0 0.0
      %2328 = vmatpush1.msra.mxu0 %v1588
      %2329 = vmatprep.subr.mxu0 0.0
      %2330 = vmatpush1.msra.mxu0 %v1587
      %2331 = vmatprep.subr.mxu0 0.0
      %2332 = vmatpush1.msra.mxu0 %v1586
      %2333 = vmatprep.subr.mxu0 0.0
      %2334 = vmatpush1.msra.mxu0 %v1585
      %2335 = vmatprep.subr.mxu0 0.0
      %2336 = vmatpush1.msra.mxu0 %v1584
      %2337 = vmatprep.subr.mxu0 0.0
      %2338 = vmatpush1.msra.mxu0 %v1583
      %2339 = vmatprep.subr.mxu0 0.0
      %2340 = vmatpush1.msra.mxu0 %v1582
      %2341 = vmatprep.subr.mxu0 0.0
      %2342 = vmatpush1.msra.mxu0 %v1581
      %2343 = vmatprep.subr.mxu0 0.0
      %2344 = vmatpush1.msra.mxu0 %v1580
      %2345 = vmatprep.subr.mxu0 0.0
      %2346 = vmatpush2.msra.mxu0 %v1611
      %2347 = vmatprep.subr.mxu0 0.0
      %2348 = vmatpush2.msra.mxu0 %v1610
      %2349 = vmatprep.subr.mxu0 0.0
      %2350 = vmatpush2.msra.mxu0 %v1609
      %2351 = vmatprep.subr.mxu0 0.0
      %2352 = vmatpush2.msra.mxu0 %v1608
      %2353 = vmatprep.subr.mxu0 0.0
      %2354 = vmatpush2.msra.mxu0 %v1607
      %2355 = vmatprep.subr.mxu0 0.0
      %2356 = vmatpush2.msra.mxu0 %v1606
      %2357 = vmatprep.subr.mxu0 0.0
      %2358 = vmatpush2.msra.mxu0 %v1605
      %2359 = vmatprep.subr.mxu0 0.0
      %2360 = vmatpush2.msra.mxu0 %v1604
      %2361 = vmatprep.subr.mxu0 0.0
      %2362 = vmatpush2.msra.mxu0 %v1603
      %2363 = vmatprep.subr.mxu0 0.0
      %2364 = vmatpush2.msra.mxu0 %v1602
      %2365 = vmatprep.subr.mxu0 0.0
      %2366 = vmatpush2.msra.mxu0 %v1601
      %2367 = vmatprep.subr.mxu0 0.0
      %2368 = vmatpush2.msra.mxu0 %v1600
      %2369 = vmatprep.subr.mxu0 0.0
      %2370 = vmatpush2.msra.mxu0 %v1599
      %2371 = vmatprep.subr.mxu0 0.0
      %2372 = vmatpush2.msra.mxu0 %v1598
      %2373 = vmatprep.subr.mxu0 0.0
      %2374 = vmatpush2.msra.mxu0 %v1597
      %2375 = vmatprep.subr.mxu0 0.0
      %2376 = vmatpush2.msra.mxu0 %v1596
      %2377 = vmatprep.mubr.f32.mxu0 %v1474
      %2378 = vmatmul.mubr.f32.gmra.mxu0 %v1473
      %v2379 = vpop.f32.mrf.mxu0
      %v2380 = vadd.f32 %v2305, %v2379
      %v2381 = vpop.f32.mrf.mxu0
      %2382 = vmatprep.mubr.f32.mxu0 %v1482
      %2383 = vmatmul.mubr.f32.gmra.mxu0 %v1481
      %v2384 = vpop.f32.mrf.mxu0
      %v2385 = vadd.f32 %v2310, %v2384
      %v2386 = vpop.f32.mrf.mxu0
      %2387 = vdwg.mxu0
      %v2388 = vrot.slane %v1467, 1
      %v2389 = vrot.slane %v1468, 1
      %v2390 = vrot.slane %v1469, 1
      %v2391 = vrot.slane %v1470, 1
      %v2392 = vrot.slane %v1471, 1
      %v2393 = vrot.slane %v1472, 1
      %v2394 = vrot.slane %v1473, 1
      %v2395 = vrot.slane %v1474, 1
      %v2396 = vrot.slane %v1475, 1
      %v2397 = vrot.slane %v1476, 1
      %v2398 = vrot.slane %v1477, 1
      %v2399 = vrot.slane %v1478, 1
      %v2400 = vrot.slane %v1479, 1
      %v2401 = vrot.slane %v1480, 1
      %v2402 = vrot.slane %v1481, 1
      %v2403 = vrot.slane %v1482, 1
      %v2404 = vsel %vm1005, %v2388, %v2396
      %v2405 = vsel %vm1005, %v2389, %v2397
      %v2406 = vsel %vm1005, %v2390, %v2398
      %v2407 = vsel %vm1005, %v2391, %v2399
      %v2408 = vsel %vm1005, %v2392, %v2400
      %v2409 = vsel %vm1005, %v2393, %v2401
      %v2410 = vsel %vm1005, %v2394, %v2402
      %v2411 = vsel %vm1005, %v2395, %v2403
      %v2412 = vsel %vm1005, %v2396, %v2388
      %v2413 = vsel %vm1005, %v2397, %v2389
      %v2414 = vsel %vm1005, %v2398, %v2390
      %v2415 = vsel %vm1005, %v2399, %v2391
      %v2416 = vsel %vm1005, %v2400, %v2392
      %v2417 = vsel %vm1005, %v2401, %v2393
      %v2418 = vsel %vm1005, %v2402, %v2394
      %v2419 = vsel %vm1005, %v2403, %v2395
      %v2420 = vsel %vm1010, 0.0, %v2404
      %v2421 = vsel %vm1010, 0.0, %v2405
      %v2422 = vsel %vm1010, 0.0, %v2406
      %v2423 = vsel %vm1010, 0.0, %v2407
      %v2424 = vsel %vm1010, 0.0, %v2408
      %v2425 = vsel %vm1010, 0.0, %v2409
      %v2426 = vsel %vm1010, 0.0, %v2410
      %v2427 = vsel %vm1010, 0.0, %v2411
      %v2428 = vsel %vm1011, 0.0, %v2412
      %v2429 = vsel %vm1011, 0.0, %v2413
      %v2430 = vsel %vm1011, 0.0, %v2414
      %v2431 = vsel %vm1011, 0.0, %v2415
      %v2432 = vsel %vm1011, 0.0, %v2416
      %v2433 = vsel %vm1011, 0.0, %v2417
      %v2434 = vsel %vm1011, 0.0, %v2418
      %v2435 = vsel %vm1011, 0.0, %v2419
      %s2436 = scalar_lea.vmem %s3, 2048
      %v2437 = vld [vmem:[%s2436] sm:$0xff]
      %v2438 = vld [vmem:[%s2436 + $0x8] sm:$0xff]
      %v2439 = vld [vmem:[%s2436 + $0x10] sm:$0xff]
      %v2440 = vld [vmem:[%s2436 + $0x18] sm:$0xff]
      %v2441 = vld [vmem:[%s2436 + $0x20] sm:$0xff]
      %v2442 = vld [vmem:[%s2436 + $0x28] sm:$0xff]
      %v2443 = vld [vmem:[%s2436 + $0x30] sm:$0xff]
      %v2444 = vld [vmem:[%s2436 + $0x38] sm:$0xff]
      %v2445 = vld [vmem:[%s2436 + $0x40] sm:$0xff]
      %v2446 = vld [vmem:[%s2436 + $0x48] sm:$0xff]
      %v2447 = vld [vmem:[%s2436 + $0x50] sm:$0xff]
      %v2448 = vld [vmem:[%s2436 + $0x58] sm:$0xff]
      %v2449 = vld [vmem:[%s2436 + $0x60] sm:$0xff]
      %v2450 = vld [vmem:[%s2436 + $0x68] sm:$0xff]
      %v2451 = vld [vmem:[%s2436 + $0x70] sm:$0xff]
      %v2452 = vld [vmem:[%s2436 + $0x78] sm:$0xff]
      %v2453 = vld [vmem:[%s2436 + $0x80] sm:$0xff]
      %v2454 = vld [vmem:[%s2436 + $0x88] sm:$0xff]
      %v2455 = vld [vmem:[%s2436 + $0x90] sm:$0xff]
      %v2456 = vld [vmem:[%s2436 + $0x98] sm:$0xff]
      %v2457 = vld [vmem:[%s2436 + $0xa0] sm:$0xff]
      %v2458 = vld [vmem:[%s2436 + $0xa8] sm:$0xff]
      %v2459 = vld [vmem:[%s2436 + $0xb0] sm:$0xff]
      %v2460 = vld [vmem:[%s2436 + $0xb8] sm:$0xff]
      %v2461 = vld [vmem:[%s2436 + $0xc0] sm:$0xff]
      %v2462 = vld [vmem:[%s2436 + $0xc8] sm:$0xff]
      %v2463 = vld [vmem:[%s2436 + $0xd0] sm:$0xff]
      %v2464 = vld [vmem:[%s2436 + $0xd8] sm:$0xff]
      %v2465 = vld [vmem:[%s2436 + $0xe0] sm:$0xff]
      %v2466 = vld [vmem:[%s2436 + $0xe8] sm:$0xff]
      %v2467 = vld [vmem:[%s2436 + $0xf0] sm:$0xff]
      %v2468 = vld [vmem:[%s2436 + $0xf8] sm:$0xff]
      %v2469 = vld [vmem:[%s2436 + $0x100] sm:$0xff]
      %v2470 = vld [vmem:[%s2436 + $0x108] sm:$0xff]
      %v2471 = vld [vmem:[%s2436 + $0x110] sm:$0xff]
      %v2472 = vld [vmem:[%s2436 + $0x118] sm:$0xff]
      %v2473 = vld [vmem:[%s2436 + $0x120] sm:$0xff]
      %v2474 = vld [vmem:[%s2436 + $0x128] sm:$0xff]
      %v2475 = vld [vmem:[%s2436 + $0x130] sm:$0xff]
      %v2476 = vld [vmem:[%s2436 + $0x138] sm:$0xff]
      %v2477 = vld [vmem:[%s2436 + $0x140] sm:$0xff]
      %v2478 = vld [vmem:[%s2436 + $0x148] sm:$0xff]
      %v2479 = vld [vmem:[%s2436 + $0x150] sm:$0xff]
      %v2480 = vld [vmem:[%s2436 + $0x158] sm:$0xff]
      %v2481 = vld [vmem:[%s2436 + $0x160] sm:$0xff]
      %v2482 = vld [vmem:[%s2436 + $0x168] sm:$0xff]
      %v2483 = vld [vmem:[%s2436 + $0x170] sm:$0xff]
      %v2484 = vld [vmem:[%s2436 + $0x178] sm:$0xff]
      %v2485 = vld [vmem:[%s2436 + $0x180] sm:$0xff]
      %v2486 = vld [vmem:[%s2436 + $0x188] sm:$0xff]
      %v2487 = vld [vmem:[%s2436 + $0x190] sm:$0xff]
      %v2488 = vld [vmem:[%s2436 + $0x198] sm:$0xff]
      %v2489 = vld [vmem:[%s2436 + $0x1a0] sm:$0xff]
      %v2490 = vld [vmem:[%s2436 + $0x1a8] sm:$0xff]
      %v2491 = vld [vmem:[%s2436 + $0x1b0] sm:$0xff]
      %v2492 = vld [vmem:[%s2436 + $0x1b8] sm:$0xff]
      %v2493 = vld [vmem:[%s2436 + $0x1c0] sm:$0xff]
      %v2494 = vld [vmem:[%s2436 + $0x1c8] sm:$0xff]
      %v2495 = vld [vmem:[%s2436 + $0x1d0] sm:$0xff]
      %v2496 = vld [vmem:[%s2436 + $0x1d8] sm:$0xff]
      %v2497 = vld [vmem:[%s2436 + $0x1e0] sm:$0xff]
      %v2498 = vld [vmem:[%s2436 + $0x1e8] sm:$0xff]
      %v2499 = vld [vmem:[%s2436 + $0x1f0] sm:$0xff]
      %v2500 = vld [vmem:[%s2436 + $0x1f8] sm:$0xff]
      %v2501 = vld [vmem:[%s2436 + $0x200] sm:$0xff]
      %v2502 = vld [vmem:[%s2436 + $0x208] sm:$0xff]
      %v2503 = vld [vmem:[%s2436 + $0x210] sm:$0xff]
      %v2504 = vld [vmem:[%s2436 + $0x218] sm:$0xff]
      %v2505 = vld [vmem:[%s2436 + $0x220] sm:$0xff]
      %v2506 = vld [vmem:[%s2436 + $0x228] sm:$0xff]
      %v2507 = vld [vmem:[%s2436 + $0x230] sm:$0xff]
      %v2508 = vld [vmem:[%s2436 + $0x238] sm:$0xff]
      %v2509 = vld [vmem:[%s2436 + $0x240] sm:$0xff]
      %v2510 = vld [vmem:[%s2436 + $0x248] sm:$0xff]
      %v2511 = vld [vmem:[%s2436 + $0x250] sm:$0xff]
      %v2512 = vld [vmem:[%s2436 + $0x258] sm:$0xff]
      %v2513 = vld [vmem:[%s2436 + $0x260] sm:$0xff]
      %v2514 = vld [vmem:[%s2436 + $0x268] sm:$0xff]
      %v2515 = vld [vmem:[%s2436 + $0x270] sm:$0xff]
      %v2516 = vld [vmem:[%s2436 + $0x278] sm:$0xff]
      %v2517 = vld [vmem:[%s2436 + $0x280] sm:$0xff]
      %v2518 = vld [vmem:[%s2436 + $0x288] sm:$0xff]
      %v2519 = vld [vmem:[%s2436 + $0x290] sm:$0xff]
      %v2520 = vld [vmem:[%s2436 + $0x298] sm:$0xff]
      %v2521 = vld [vmem:[%s2436 + $0x2a0] sm:$0xff]
      %v2522 = vld [vmem:[%s2436 + $0x2a8] sm:$0xff]
      %v2523 = vld [vmem:[%s2436 + $0x2b0] sm:$0xff]
      %v2524 = vld [vmem:[%s2436 + $0x2b8] sm:$0xff]
      %v2525 = vld [vmem:[%s2436 + $0x2c0] sm:$0xff]
      %v2526 = vld [vmem:[%s2436 + $0x2c8] sm:$0xff]
      %v2527 = vld [vmem:[%s2436 + $0x2d0] sm:$0xff]
      %v2528 = vld [vmem:[%s2436 + $0x2d8] sm:$0xff]
      %v2529 = vld [vmem:[%s2436 + $0x2e0] sm:$0xff]
      %v2530 = vld [vmem:[%s2436 + $0x2e8] sm:$0xff]
      %v2531 = vld [vmem:[%s2436 + $0x2f0] sm:$0xff]
      %v2532 = vld [vmem:[%s2436 + $0x2f8] sm:$0xff]
      %v2533 = vld [vmem:[%s2436 + $0x300] sm:$0xff]
      %v2534 = vld [vmem:[%s2436 + $0x308] sm:$0xff]
      %v2535 = vld [vmem:[%s2436 + $0x310] sm:$0xff]
      %v2536 = vld [vmem:[%s2436 + $0x318] sm:$0xff]
      %v2537 = vld [vmem:[%s2436 + $0x320] sm:$0xff]
      %v2538 = vld [vmem:[%s2436 + $0x328] sm:$0xff]
      %v2539 = vld [vmem:[%s2436 + $0x330] sm:$0xff]
      %v2540 = vld [vmem:[%s2436 + $0x338] sm:$0xff]
      %v2541 = vld [vmem:[%s2436 + $0x340] sm:$0xff]
      %v2542 = vld [vmem:[%s2436 + $0x348] sm:$0xff]
      %v2543 = vld [vmem:[%s2436 + $0x350] sm:$0xff]
      %v2544 = vld [vmem:[%s2436 + $0x358] sm:$0xff]
      %v2545 = vld [vmem:[%s2436 + $0x360] sm:$0xff]
      %v2546 = vld [vmem:[%s2436 + $0x368] sm:$0xff]
      %v2547 = vld [vmem:[%s2436 + $0x370] sm:$0xff]
      %v2548 = vld [vmem:[%s2436 + $0x378] sm:$0xff]
      %v2549 = vld [vmem:[%s2436 + $0x380] sm:$0xff]
      %v2550 = vld [vmem:[%s2436 + $0x388] sm:$0xff]
      %v2551 = vld [vmem:[%s2436 + $0x390] sm:$0xff]
      %v2552 = vld [vmem:[%s2436 + $0x398] sm:$0xff]
      %v2553 = vld [vmem:[%s2436 + $0x3a0] sm:$0xff]
      %v2554 = vld [vmem:[%s2436 + $0x3a8] sm:$0xff]
      %v2555 = vld [vmem:[%s2436 + $0x3b0] sm:$0xff]
      %v2556 = vld [vmem:[%s2436 + $0x3b8] sm:$0xff]
      %v2557 = vld [vmem:[%s2436 + $0x3c0] sm:$0xff]
      %v2558 = vld [vmem:[%s2436 + $0x3c8] sm:$0xff]
      %v2559 = vld [vmem:[%s2436 + $0x3d0] sm:$0xff]
      %v2560 = vld [vmem:[%s2436 + $0x3d8] sm:$0xff]
      %v2561 = vld [vmem:[%s2436 + $0x3e0] sm:$0xff]
      %v2562 = vld [vmem:[%s2436 + $0x3e8] sm:$0xff]
      %v2563 = vld [vmem:[%s2436 + $0x3f0] sm:$0xff]
      %v2564 = vld [vmem:[%s2436 + $0x3f8] sm:$0xff]
      %2565 = vmatprep.subr.mxu0 0.0
      %2566 = vmatpush1.msra.mxu0 %v2452
      %2567 = vmatprep.subr.mxu0 0.0
      %2568 = vmatpush1.msra.mxu0 %v2451
      %2569 = vmatprep.subr.mxu0 0.0
      %2570 = vmatpush1.msra.mxu0 %v2450
      %2571 = vmatprep.subr.mxu0 0.0
      %2572 = vmatpush1.msra.mxu0 %v2449
      %2573 = vmatprep.subr.mxu0 0.0
      %2574 = vmatpush1.msra.mxu0 %v2448
      %2575 = vmatprep.subr.mxu0 0.0
      %2576 = vmatpush1.msra.mxu0 %v2447
      %2577 = vmatprep.subr.mxu0 0.0
      %2578 = vmatpush1.msra.mxu0 %v2446
      %2579 = vmatprep.subr.mxu0 0.0
      %2580 = vmatpush1.msra.mxu0 %v2445
      %2581 = vmatprep.subr.mxu0 0.0
      %2582 = vmatpush1.msra.mxu0 %v2444
      %2583 = vmatprep.subr.mxu0 0.0
      %2584 = vmatpush1.msra.mxu0 %v2443
      %2585 = vmatprep.subr.mxu0 0.0
      %2586 = vmatpush1.msra.mxu0 %v2442
      %2587 = vmatprep.subr.mxu0 0.0
      %2588 = vmatpush1.msra.mxu0 %v2441
      %2589 = vmatprep.subr.mxu0 0.0
      %2590 = vmatpush1.msra.mxu0 %v2440
      %2591 = vmatprep.subr.mxu0 0.0
      %2592 = vmatpush1.msra.mxu0 %v2439
      %2593 = vmatprep.subr.mxu0 0.0
      %2594 = vmatpush1.msra.mxu0 %v2438
      %2595 = vmatprep.subr.mxu0 0.0
      %2596 = vmatpush1.msra.mxu0 %v2437
      %2597 = vmatprep.subr.mxu0 0.0
      %2598 = vmatpush2.msra.mxu0 %v2468
      %2599 = vmatprep.subr.mxu0 0.0
      %2600 = vmatpush2.msra.mxu0 %v2467
      %2601 = vmatprep.subr.mxu0 0.0
      %2602 = vmatpush2.msra.mxu0 %v2466
      %2603 = vmatprep.subr.mxu0 0.0
      %2604 = vmatpush2.msra.mxu0 %v2465
      %2605 = vmatprep.subr.mxu0 0.0
      %2606 = vmatpush2.msra.mxu0 %v2464
      %2607 = vmatprep.subr.mxu0 0.0
      %2608 = vmatpush2.msra.mxu0 %v2463
      %2609 = vmatprep.subr.mxu0 0.0
      %2610 = vmatpush2.msra.mxu0 %v2462
      %2611 = vmatprep.subr.mxu0 0.0
      %2612 = vmatpush2.msra.mxu0 %v2461
      %2613 = vmatprep.subr.mxu0 0.0
      %2614 = vmatpush2.msra.mxu0 %v2460
      %2615 = vmatprep.subr.mxu0 0.0
      %2616 = vmatpush2.msra.mxu0 %v2459
      %2617 = vmatprep.subr.mxu0 0.0
      %2618 = vmatpush2.msra.mxu0 %v2458
      %2619 = vmatprep.subr.mxu0 0.0
      %2620 = vmatpush2.msra.mxu0 %v2457
      %2621 = vmatprep.subr.mxu0 0.0
      %2622 = vmatpush2.msra.mxu0 %v2456
      %2623 = vmatprep.subr.mxu0 0.0
      %2624 = vmatpush2.msra.mxu0 %v2455
      %2625 = vmatprep.subr.mxu0 0.0
      %2626 = vmatpush2.msra.mxu0 %v2454
      %2627 = vmatprep.subr.mxu0 0.0
      %2628 = vmatpush2.msra.mxu0 %v2453
      %2629 = vmatprep.mubr.f32.mxu0 %v2421
      %2630 = vmatmul.mubr.f32.gmra.mxu0 %v2420
      %v2631 = vpop.f32.mrf.mxu0
      %v2632 = vadd.f32 0.0, %v2631
      %v2633 = vpop.f32.mrf.mxu0
      %2634 = vmatprep.mubr.f32.mxu0 %v2429
      %2635 = vmatmul.mubr.f32.gmra.mxu0 %v2428
      %v2636 = vpop.f32.mrf.mxu0
      %v2637 = vadd.f32 0.0, %v2636
      %v2638 = vpop.f32.mrf.mxu0
      %2639 = vdwg.mxu0
      %2640 = vmatprep.subr.mxu0 0.0
      %2641 = vmatpush1.msra.mxu0 %v2484
      %2642 = vmatprep.subr.mxu0 0.0
      %2643 = vmatpush1.msra.mxu0 %v2483
      %2644 = vmatprep.subr.mxu0 0.0
      %2645 = vmatpush1.msra.mxu0 %v2482
      %2646 = vmatprep.subr.mxu0 0.0
      %2647 = vmatpush1.msra.mxu0 %v2481
      %2648 = vmatprep.subr.mxu0 0.0
      %2649 = vmatpush1.msra.mxu0 %v2480
      %2650 = vmatprep.subr.mxu0 0.0
      %2651 = vmatpush1.msra.mxu0 %v2479
      %2652 = vmatprep.subr.mxu0 0.0
      %2653 = vmatpush1.msra.mxu0 %v2478
      %2654 = vmatprep.subr.mxu0 0.0
      %2655 = vmatpush1.msra.mxu0 %v2477
      %2656 = vmatprep.subr.mxu0 0.0
      %2657 = vmatpush1.msra.mxu0 %v2476
      %2658 = vmatprep.subr.mxu0 0.0
      %2659 = vmatpush1.msra.mxu0 %v2475
      %2660 = vmatprep.subr.mxu0 0.0
      %2661 = vmatpush1.msra.mxu0 %v2474
      %2662 = vmatprep.subr.mxu0 0.0
      %2663 = vmatpush1.msra.mxu0 %v2473
      %2664 = vmatprep.subr.mxu0 0.0
      %2665 = vmatpush1.msra.mxu0 %v2472
      %2666 = vmatprep.subr.mxu0 0.0
      %2667 = vmatpush1.msra.mxu0 %v2471
      %2668 = vmatprep.subr.mxu0 0.0
      %2669 = vmatpush1.msra.mxu0 %v2470
      %2670 = vmatprep.subr.mxu0 0.0
      %2671 = vmatpush1.msra.mxu0 %v2469
      %2672 = vmatprep.subr.mxu0 0.0
      %2673 = vmatpush2.msra.mxu0 %v2500
      %2674 = vmatprep.subr.mxu0 0.0
      %2675 = vmatpush2.msra.mxu0 %v2499
      %2676 = vmatprep.subr.mxu0 0.0
      %2677 = vmatpush2.msra.mxu0 %v2498
      %2678 = vmatprep.subr.mxu0 0.0
      %2679 = vmatpush2.msra.mxu0 %v2497
      %2680 = vmatprep.subr.mxu0 0.0
      %2681 = vmatpush2.msra.mxu0 %v2496
      %2682 = vmatprep.subr.mxu0 0.0
      %2683 = vmatpush2.msra.mxu0 %v2495
      %2684 = vmatprep.subr.mxu0 0.0
      %2685 = vmatpush2.msra.mxu0 %v2494
      %2686 = vmatprep.subr.mxu0 0.0
      %2687 = vmatpush2.msra.mxu0 %v2493
      %2688 = vmatprep.subr.mxu0 0.0
      %2689 = vmatpush2.msra.mxu0 %v2492
      %2690 = vmatprep.subr.mxu0 0.0
      %2691 = vmatpush2.msra.mxu0 %v2491
      %2692 = vmatprep.subr.mxu0 0.0
      %2693 = vmatpush2.msra.mxu0 %v2490
      %2694 = vmatprep.subr.mxu0 0.0
      %2695 = vmatpush2.msra.mxu0 %v2489
      %2696 = vmatprep.subr.mxu0 0.0
      %2697 = vmatpush2.msra.mxu0 %v2488
      %2698 = vmatprep.subr.mxu0 0.0
      %2699 = vmatpush2.msra.mxu0 %v2487
      %2700 = vmatprep.subr.mxu0 0.0
      %2701 = vmatpush2.msra.mxu0 %v2486
      %2702 = vmatprep.subr.mxu0 0.0
      %2703 = vmatpush2.msra.mxu0 %v2485
      %2704 = vmatprep.mubr.f32.mxu0 %v2423
      %2705 = vmatmul.mubr.f32.gmra.mxu0 %v2422
      %v2706 = vpop.f32.mrf.mxu0
      %v2707 = vadd.f32 %v2632, %v2706
      %v2708 = vpop.f32.mrf.mxu0
      %2709 = vmatprep.mubr.f32.mxu0 %v2431
      %2710 = vmatmul.mubr.f32.gmra.mxu0 %v2430
      %v2711 = vpop.f32.mrf.mxu0
      %v2712 = vadd.f32 %v2637, %v2711
      %v2713 = vpop.f32.mrf.mxu0
      %2714 = vdwg.mxu0
      %2715 = vmatprep.subr.mxu0 0.0
      %2716 = vmatpush1.msra.mxu0 %v2516
      %2717 = vmatprep.subr.mxu0 0.0
      %2718 = vmatpush1.msra.mxu0 %v2515
      %2719 = vmatprep.subr.mxu0 0.0
      %2720 = vmatpush1.msra.mxu0 %v2514
      %2721 = vmatprep.subr.mxu0 0.0
      %2722 = vmatpush1.msra.mxu0 %v2513
      %2723 = vmatprep.subr.mxu0 0.0
      %2724 = vmatpush1.msra.mxu0 %v2512
      %2725 = vmatprep.subr.mxu0 0.0
      %2726 = vmatpush1.msra.mxu0 %v2511
      %2727 = vmatprep.subr.mxu0 0.0
      %2728 = vmatpush1.msra.mxu0 %v2510
      %2729 = vmatprep.subr.mxu0 0.0
      %2730 = vmatpush1.msra.mxu0 %v2509
      %2731 = vmatprep.subr.mxu0 0.0
      %2732 = vmatpush1.msra.mxu0 %v2508
      %2733 = vmatprep.subr.mxu0 0.0
      %2734 = vmatpush1.msra.mxu0 %v2507
      %2735 = vmatprep.subr.mxu0 0.0
      %2736 = vmatpush1.msra.mxu0 %v2506
      %2737 = vmatprep.subr.mxu0 0.0
      %2738 = vmatpush1.msra.mxu0 %v2505
      %2739 = vmatprep.subr.mxu0 0.0
      %2740 = vmatpush1.msra.mxu0 %v2504
      %2741 = vmatprep.subr.mxu0 0.0
      %2742 = vmatpush1.msra.mxu0 %v2503
      %2743 = vmatprep.subr.mxu0 0.0
      %2744 = vmatpush1.msra.mxu0 %v2502
      %2745 = vmatprep.subr.mxu0 0.0
      %2746 = vmatpush1.msra.mxu0 %v2501
      %2747 = vmatprep.subr.mxu0 0.0
      %2748 = vmatpush2.msra.mxu0 %v2532
      %2749 = vmatprep.subr.mxu0 0.0
      %2750 = vmatpush2.msra.mxu0 %v2531
      %2751 = vmatprep.subr.mxu0 0.0
      %2752 = vmatpush2.msra.mxu0 %v2530
      %2753 = vmatprep.subr.mxu0 0.0
      %2754 = vmatpush2.msra.mxu0 %v2529
      %2755 = vmatprep.subr.mxu0 0.0
      %2756 = vmatpush2.msra.mxu0 %v2528
      %2757 = vmatprep.subr.mxu0 0.0
      %2758 = vmatpush2.msra.mxu0 %v2527
      %2759 = vmatprep.subr.mxu0 0.0
      %2760 = vmatpush2.msra.mxu0 %v2526
      %2761 = vmatprep.subr.mxu0 0.0
      %2762 = vmatpush2.msra.mxu0 %v2525
      %2763 = vmatprep.subr.mxu0 0.0
      %2764 = vmatpush2.msra.mxu0 %v2524
      %2765 = vmatprep.subr.mxu0 0.0
      %2766 = vmatpush2.msra.mxu0 %v2523
      %2767 = vmatprep.subr.mxu0 0.0
      %2768 = vmatpush2.msra.mxu0 %v2522
      %2769 = vmatprep.subr.mxu0 0.0
      %2770 = vmatpush2.msra.mxu0 %v2521
      %2771 = vmatprep.subr.mxu0 0.0
      %2772 = vmatpush2.msra.mxu0 %v2520
      %2773 = vmatprep.subr.mxu0 0.0
      %2774 = vmatpush2.msra.mxu0 %v2519
      %2775 = vmatprep.subr.mxu0 0.0
      %2776 = vmatpush2.msra.mxu0 %v2518
      %2777 = vmatprep.subr.mxu0 0.0
      %2778 = vmatpush2.msra.mxu0 %v2517
      %2779 = vmatprep.mubr.f32.mxu0 %v2425
      %2780 = vmatmul.mubr.f32.gmra.mxu0 %v2424
      %v2781 = vpop.f32.mrf.mxu0
      %v2782 = vadd.f32 %v2707, %v2781
      %v2783 = vpop.f32.mrf.mxu0
      %2784 = vmatprep.mubr.f32.mxu0 %v2433
      %2785 = vmatmul.mubr.f32.gmra.mxu0 %v2432
      %v2786 = vpop.f32.mrf.mxu0
      %v2787 = vadd.f32 %v2712, %v2786
      %v2788 = vpop.f32.mrf.mxu0
      %2789 = vdwg.mxu0
      %2790 = vmatprep.subr.mxu0 0.0
      %2791 = vmatpush1.msra.mxu0 %v2548
      %2792 = vmatprep.subr.mxu0 0.0
      %2793 = vmatpush1.msra.mxu0 %v2547
      %2794 = vmatprep.subr.mxu0 0.0
      %2795 = vmatpush1.msra.mxu0 %v2546
      %2796 = vmatprep.subr.mxu0 0.0
      %2797 = vmatpush1.msra.mxu0 %v2545
      %2798 = vmatprep.subr.mxu0 0.0
      %2799 = vmatpush1.msra.mxu0 %v2544
      %2800 = vmatprep.subr.mxu0 0.0
      %2801 = vmatpush1.msra.mxu0 %v2543
      %2802 = vmatprep.subr.mxu0 0.0
      %2803 = vmatpush1.msra.mxu0 %v2542
      %2804 = vmatprep.subr.mxu0 0.0
      %2805 = vmatpush1.msra.mxu0 %v2541
      %2806 = vmatprep.subr.mxu0 0.0
      %2807 = vmatpush1.msra.mxu0 %v2540
      %2808 = vmatprep.subr.mxu0 0.0
      %2809 = vmatpush1.msra.mxu0 %v2539
      %2810 = vmatprep.subr.mxu0 0.0
      %2811 = vmatpush1.msra.mxu0 %v2538
      %2812 = vmatprep.subr.mxu0 0.0
      %2813 = vmatpush1.msra.mxu0 %v2537
      %2814 = vmatprep.subr.mxu0 0.0
      %2815 = vmatpush1.msra.mxu0 %v2536
      %2816 = vmatprep.subr.mxu0 0.0
      %2817 = vmatpush1.msra.mxu0 %v2535
      %2818 = vmatprep.subr.mxu0 0.0
      %2819 = vmatpush1.msra.mxu0 %v2534
      %2820 = vmatprep.subr.mxu0 0.0
      %2821 = vmatpush1.msra.mxu0 %v2533
      %2822 = vmatprep.subr.mxu0 0.0
      %2823 = vmatpush2.msra.mxu0 %v2564
      %2824 = vmatprep.subr.mxu0 0.0
      %2825 = vmatpush2.msra.mxu0 %v2563
      %2826 = vmatprep.subr.mxu0 0.0
      %2827 = vmatpush2.msra.mxu0 %v2562
      %2828 = vmatprep.subr.mxu0 0.0
      %2829 = vmatpush2.msra.mxu0 %v2561
      %2830 = vmatprep.subr.mxu0 0.0
      %2831 = vmatpush2.msra.mxu0 %v2560
      %2832 = vmatprep.subr.mxu0 0.0
      %2833 = vmatpush2.msra.mxu0 %v2559
      %2834 = vmatprep.subr.mxu0 0.0
      %2835 = vmatpush2.msra.mxu0 %v2558
      %2836 = vmatprep.subr.mxu0 0.0
      %2837 = vmatpush2.msra.mxu0 %v2557
      %2838 = vmatprep.subr.mxu0 0.0
      %2839 = vmatpush2.msra.mxu0 %v2556
      %2840 = vmatprep.subr.mxu0 0.0
      %2841 = vmatpush2.msra.mxu0 %v2555
      %2842 = vmatprep.subr.mxu0 0.0
      %2843 = vmatpush2.msra.mxu0 %v2554
      %2844 = vmatprep.subr.mxu0 0.0
      %2845 = vmatpush2.msra.mxu0 %v2553
      %2846 = vmatprep.subr.mxu0 0.0
      %2847 = vmatpush2.msra.mxu0 %v2552
      %2848 = vmatprep.subr.mxu0 0.0
      %2849 = vmatpush2.msra.mxu0 %v2551
      %2850 = vmatprep.subr.mxu0 0.0
      %2851 = vmatpush2.msra.mxu0 %v2550
      %2852 = vmatprep.subr.mxu0 0.0
      %2853 = vmatpush2.msra.mxu0 %v2549
      %2854 = vmatprep.mubr.f32.mxu0 %v2427
      %2855 = vmatmul.mubr.f32.gmra.mxu0 %v2426
      %v2856 = vpop.f32.mrf.mxu0
      %v2857 = vadd.f32 %v2782, %v2856
      %v2858 = vpop.f32.mrf.mxu0
      %2859 = vmatprep.mubr.f32.mxu0 %v2435
      %2860 = vmatmul.mubr.f32.gmra.mxu0 %v2434
      %v2861 = vpop.f32.mrf.mxu0
      %v2862 = vadd.f32 %v2787, %v2861
      %v2863 = vpop.f32.mrf.mxu0
      %2864 = vdwg.mxu0
      %v2865 = vadd.f32 %v2380, %v2857
      %v2866 = vadd.f32 %v2385, %v2862
      %v2867 = vld [vmem:[%s4] sm:$0x1]
      %v2869 = vlaneseq
      %v2870 = vshrl.u32 %v2869, 7
      %v2871 = vsub.s32 0, %v2870
      %v2872 = vrot.slane %v2867, %v2871
      %v2874 = vadd.f32 %v2865, %v2872
      %v2875 = vadd.f32 %v2866, %v2872
      %v2876 = vmax.f32 %v2874, 0.0
      %v2877 = vmax.f32 %v2875, 0.0
      %v2878 = vadd.f32 %v225, %v2876
      %v2879 = vadd.f32 %v226, %v2877
      %2880 = vst.msk [vmem:[%s224] sm:$0xff] %vm374, %v2878
      %2881 = vst.msk [vmem:[%s224 + $0x8] sm:$0xff] %vm374, %v2879
      %p2882 = scmp.lt.s32.totalorder %s16, 1
      %s2883 = scalar_select %p2882, %s16, 1
      %s2884 = smul.addr %s2883, 2
      %s2885 = smul.addr %s2884, 8
      %s2886 = scalar_lea.vmem %s5, %s2885
      // Predicated region
      $region41: #{residual_block_pallas.1} parent=39 // pred_check
        %p2887 = pneg %p144
      $region42: #{residual_block_pallas.1} parent=39 // pred_check_branch
        %2889 = sbr.rel (%p2887) target = $region44
      $region43: #{residual_block_pallas.1} parent=39 // pred_region
        _
      $region44: #{residual_block_pallas.1} parent=39 // pred_fallthru
        _
    $region40: #{residual_block_pallas.1} parent=5 // pred_fallthru
      _
    %p2890 = scmp.le.s32.totalorder 2, %s11
    // Predicated region
    $region45: #{residual_block_pallas.1} parent=5 // pred_check
      %p2891 = pneg %p2890
    $region46: #{residual_block_pallas.1} parent=5 // pred_check_branch
      %2893 = sbr.rel (%p2891) target = $region48
    $region47: #{residual_block_pallas.1} parent=5 // pred_region
      %s2894 = ssub.s32 %s11, 2
      // Predicated region
      $region49: #{residual_block_pallas.1} parent=47 // pred_check
        %p2895 = pneg %p150
      $region50: #{residual_block_pallas.1} parent=47 // pred_check_branch
        %2897 = sbr.rel (%p2895) target = $region52
      $region51: #{residual_block_pallas.1} parent=47 // pred_region
        %p2898 = scmp.lt.s32.totalorder %s17, 1
        %s2899 = scalar_select %p2898, %s17, 1
        %s2900 = smul.addr %s2899, 2
        %s2901 = smul.addr %s2900, 8
        %s2902 = scalar_lea.vmem %s5, %s2901
      $region52: #{residual_block_pallas.1} parent=47 // pred_fallthru
        _
    $region48: #{residual_block_pallas.1} parent=5 // pred_fallthru
      _
  $region6: #{residual_block_pallas.1} parent=0 // loop_footer
    %s15 = sadd.s32 1, %s11
  $region7: #{residual_block_pallas.1} parent=0 // loop_footer_branch
    %10 = sbr.rel target = $region3
  $region8: #{residual_block_pallas.1} parent=0 // loop_exit
    _

</llo_original>
